<compile_context>
chip_gen: v6e
topology: v6e:2x2x1
jax: 0.10.0
libtpu: 0.0.40
codegen_flags: <defaults>
</compile_context>

<pallas_src>
import functools

import jax
import jax.numpy as jnp
from jax.experimental import pallas as pl
from jax.experimental.pallas import tpu as pltpu


# ------------------------------- fused kernel ------------------------------- #

def _bab_decoder_kernel(x_ref, w1_ref, wm_ref, wf_ref, s_ref, b_ref,
                        sf_ref, bf_ref, mask_ref, o_ref,
                        x1_ref, x2_ref, xcat_ref, pm_ref,
                        *, n, Wp, C1, C2, C3, d1, d2):
    """One image per grid step.  Layout: (channels, Hp*Wp) with HW on lanes.

    x_ref:    (C1, n)  bf16    zero-padded, flattened input (n = Hp*Wp)
    w1_ref:   (C2, 9*C1)  bf16   conv1 weight, tap-major columns
    wm_ref:   (4, C2, 9*C2) bf16 conv1_dila / conv2 / conv2_dila / conv3
    wf_ref:   (C3, 27*C2) bf16   conv_fuse weight (concat channel order)
    s_ref/b_ref:  (5, C2, 1) f32 folded BN scale / bias (first 5 layers)
    sf_ref/bf_ref:(C3, 1)    f32 folded BN scale / bias (conv_fuse)
    mask_ref: (1, n) f32     1.0 at interior (non-halo) columns, 0.0 at halo
    o_ref:    (C3, n) f32    padded output (wrapper slices the interior)

    scratch (all bf16, halos kept exactly zero by the masked BN write):
      x1_ref   (C2, n)      x1
      x2_ref   (C2, n)      x2
      xcat_ref (3*C2, n)    [x1_dila | x2_dila | x3]  (the torch.cat buffer)
      pm_ref   (max(9*C1, 27*C2), n)   im2col patch rows, reused per conv
    """
    interior = mask_ref[...] > 0.5            # (1, n) bool, broadcasts below

    def build_patches(src_ref, cin, dil):
        # Tap (kh, kw) at dilation `dil` is a pure lane shift of the flat
        # padded grid by off = dil*((kh-1)*Wp + (kw-1)).  Columns that the
        # shifted copy cannot fill are stale, but they only ever feed halo
        # output columns, which the interior mask zeroes.
        for kh in range(3):
            for kw in range(3):
                off = dil * ((kh - 1) * Wp + (kw - 1))
                r0 = (kh * 3 + kw) * cin
                if off >= 0:
                    pm_ref[r0:r0 + cin, 0:n - off] = src_ref[:, off:n]
                else:
                    pm_ref[r0:r0 + cin, -off:n] = src_ref[:, 0:n + off]
        return pm_ref[0:9 * cin, :]                        # (9*cin, n) bf16

    def conv_bn(src_ref, cin, dil, w, scale, bias):
        pm = build_patches(src_ref, cin, dil)
        y = jnp.dot(w, pm, preferred_element_type=jnp.float32)   # (Cout, n) f32
        # Masked BN epilogue: interior -> scale*y + bias, halo -> exact 0.
        return jnp.where(interior, y * scale + bias, 0.0)

    # conv1: x -> x1
    x1_ref[...] = conv_bn(x_ref, C1, 1, w1_ref[...],
                          s_ref[0], b_ref[0]).astype(x1_ref.dtype)
    # conv1_Dila (dil=d1): x1 -> xcat[0:C2]
    xcat_ref[0:C2, :] = conv_bn(x1_ref, C2, d1, wm_ref[0],
                                s_ref[1], b_ref[1]).astype(xcat_ref.dtype)
    # conv2: x1 -> x2
    x2_ref[...] = conv_bn(x1_ref, C2, 1, wm_ref[1],
                          s_ref[2], b_ref[2]).astype(x2_ref.dtype)
    # conv2_Dila (dil=d2): x2 -> xcat[C2:2*C2]
    xcat_ref[C2:2 * C2, :] = conv_bn(x2_ref, C2, d2, wm_ref[2],
                                     s_ref[3], b_ref[3]).astype(xcat_ref.dtype)
    # conv3: x2 -> xcat[2*C2:3*C2]
    xcat_ref[2 * C2:3 * C2, :] = conv_bn(x2_ref, C2, 1, wm_ref[3],
                                         s_ref[4], b_ref[4]).astype(xcat_ref.dtype)
    # conv_fuse on the already-concatenated buffer: one K = 27*C2 matmul.
    o_ref[...] = conv_bn(xcat_ref, 3 * C2, 1, wf_ref[...],
                         sf_ref[...], bf_ref[...]).astype(o_ref.dtype)


# --------------------------------- wrapper ---------------------------------- #

def bab_decoder_forward(x_nchw, params, dilation_1=3, dilation_2=2):
    """Mirrors BAB_Decoder.forward.  Input/output in NCHW like PyTorch."""
    d1, d2 = int(dilation_1), int(dilation_2)
    assert d1 >= 1 and d2 >= 1
    P = max(d1, d2, 1)                      # one uniform halo for every buffer

    N, C1, H, W = x_nchw.shape
    Hp, Wp = H + 2 * P, W + 2 * P
    n = Hp * Wp
    C2 = params["conv1"]["w"].shape[-1]
    C3 = params["conv_fuse"]["w"].shape[-1]
    bf16, f32 = jnp.bfloat16, jnp.float32

    # NCHW-native staging: zero-pad the halo once and flatten H,W onto lanes.
    xp = jnp.pad(x_nchw, ((0, 0), (0, 0), (P, P), (P, P)))
    xp = xp.reshape(N, C1, n).astype(bf16)

    def w2d(w_hwio):                        # (3,3,Cin,Cout) -> (Cout, 9*Cin)
        co = w_hwio.shape[-1]
        return jnp.transpose(w_hwio, (3, 0, 1, 2)).reshape(co, -1)

    w1 = w2d(params["conv1"]["w"]).astype(bf16)                       # (C2, 9*C1)
    wm = jnp.stack([w2d(params[k]["w"]) for k in
                    ("conv1_dila", "conv2", "conv2_dila", "conv3")]
                   ).astype(bf16)                                     # (4, C2, 9*C2)
    wf = w2d(params["conv_fuse"]["w"]).astype(bf16)                   # (C3, 27*C2)

    names = ("conv1", "conv1_dila", "conv2", "conv2_dila", "conv3")
    s = jnp.stack([params[k]["scale"] for k in names]).reshape(5, C2, 1).astype(f32)
    b = jnp.stack([params[k]["bias"] for k in names]).reshape(5, C2, 1).astype(f32)
    sf = params["conv_fuse"]["scale"].reshape(C3, 1).astype(f32)
    bfu = params["conv_fuse"]["bias"].reshape(C3, 1).astype(f32)

    # Interior (non-halo) column mask over the flat padded grid.
    row = jnp.arange(Hp)[:, None]
    col = jnp.arange(Wp)[None, :]
    mask = ((row >= P) & (row < P + H) & (col >= P) & (col < P + W))
    mask = mask.reshape(1, n).astype(f32)

    pm_rows = max(9 * C1, 27 * C2)
    kernel = functools.partial(_bab_decoder_kernel, n=n, Wp=Wp,
                               C1=C1, C2=C2, C3=C3, d1=d1, d2=d2)

    out_p = pl.pallas_call(
        kernel,
        out_shape=jax.ShapeDtypeStruct((N, C3, n), f32),
        grid=(N,),
        in_specs=[
            pl.BlockSpec((None, C1, n), lambda i: (i, 0, 0)),     # x (per image)
            pl.BlockSpec((C2, 9 * C1), lambda i: (0, 0)),
            pl.BlockSpec((4, C2, 9 * C2), lambda i: (0, 0, 0)),
            pl.BlockSpec((C3, 27 * C2), lambda i: (0, 0)),
            pl.BlockSpec((5, C2, 1), lambda i: (0, 0, 0)),
            pl.BlockSpec((5, C2, 1), lambda i: (0, 0, 0)),
            pl.BlockSpec((C3, 1), lambda i: (0, 0)),
            pl.BlockSpec((C3, 1), lambda i: (0, 0)),
            pl.BlockSpec((1, n), lambda i: (0, 0)),
        ],
        out_specs=pl.BlockSpec((None, C3, n), lambda i: (i, 0, 0)),
        scratch_shapes=[
            pltpu.VMEM((C2, n), bf16),            # x1
            pltpu.VMEM((C2, n), bf16),            # x2
            pltpu.VMEM((3 * C2, n), bf16),        # cat(x1_dila, x2_dila, x3)
            pltpu.VMEM((pm_rows, n), bf16),       # im2col patch rows (reused)
        ],
        compiler_params=pltpu.CompilerParams(
            dimension_semantics=("parallel",),    # shard images across TCs
        ),
    )(xp, w1, wm, wf, s, b, sf, bfu, mask)

    # Lane-dense padded output -> NCHW interior (tiny XLA slice, no transpose).
    out = out_p.reshape(N, C3, Hp, Wp)[:, :, P:P + H, P:P + W]
    return out


# --------------------------- parameter construction -------------------------- #

def make_conv_bn_params(key, cin, cout, eps=1e-5):
    kw_, kg, kb, km, kv = jax.random.split(key, 5)
    w = jax.random.normal(kw_, (3, 3, cin, cout), jnp.float32) * 0.05
    gamma = 1.0 + 0.1 * jax.random.normal(kg, (cout,), jnp.float32)
    beta = 0.1 * jax.random.normal(kb, (cout,), jnp.float32)
    running_mean = 0.1 * jax.random.normal(km, (cout,), jnp.float32)
    running_var = jax.random.uniform(kv, (cout,), jnp.float32, 0.5, 1.5)
    scale = gamma / jnp.sqrt(running_var + eps)      # fold eval-mode BatchNorm
    bias = beta - running_mean * scale
    return {"w": w, "scale": scale, "bias": bias}


def make_bab_decoder_params(key, channel_1, channel_2, channel_3):
    keys = jax.random.split(key, 6)
    return {
        "conv1":      make_conv_bn_params(keys[0], channel_1, channel_2),
        "conv1_dila": make_conv_bn_params(keys[1], channel_2, channel_2),
        "conv2":      make_conv_bn_params(keys[2], channel_2, channel_2),
        "conv2_dila": make_conv_bn_params(keys[3], channel_2, channel_2),
        "conv3":      make_conv_bn_params(keys[4], channel_2, channel_2),
        "conv_fuse":  make_conv_bn_params(keys[5], channel_2 * 3, channel_3),
    }


# -------------------------------- JAX reference ------------------------------ #

def _conv_bn_ref(x, w, scale, bias, dilation):
    # BasicConv2d: Conv2d(3x3, stride 1, padding=dilation, bias=False) + BN.
    # (The module defines ReLU but does NOT apply it in forward.)
    y = jax.lax.conv_general_dilated(
        x, w, window_strides=(1, 1),
        padding=[(dilation, dilation), (dilation, dilation)],
        rhs_dilation=(dilation, dilation),
        dimension_numbers=("NCHW", "HWIO", "NCHW"),
        precision=jax.lax.Precision.HIGHEST)
    return y * scale[None, :, None, None] + bias[None, :, None, None]


def bab_decoder_ref(x_nchw, params, dilation_1=3, dilation_2=2):
    p = params
    x1 = _conv_bn_ref(x_nchw, p["conv1"]["w"], p["conv1"]["scale"],
                      p["conv1"]["bias"], 1)
    x1_d = _conv_bn_ref(x1, p["conv1_dila"]["w"], p["conv1_dila"]["scale"],
                        p["conv1_dila"]["bias"], dilation_1)
    x2 = _conv_bn_ref(x1, p["conv2"]["w"], p["conv2"]["scale"],
                      p["conv2"]["bias"], 1)
    x2_d = _conv_bn_ref(x2, p["conv2_dila"]["w"], p["conv2_dila"]["scale"],
                        p["conv2_dila"]["bias"], dilation_2)
    x3 = _conv_bn_ref(x2, p["conv3"]["w"], p["conv3"]["scale"],
                      p["conv3"]["bias"], 1)
    x_cat = jnp.concatenate([x1_d, x2_d, x3], axis=1)
    return _conv_bn_ref(x_cat, p["conv_fuse"]["w"], p["conv_fuse"]["scale"],
                        p["conv_fuse"]["bias"], 1)


# ------------------------------------ main ----------------------------------- #

if __name__ == "__main__":
    # small shapes consistent with BAB_Decoder(channel_1, channel_2, channel_3)
    N, C1, C2, C3, H, W = 2, 16, 16, 8, 16, 16
    key = jax.random.PRNGKey(0)
    kx, kp = jax.random.split(key)

    x = jax.random.normal(kx, (N, C1, H, W), jnp.float32)   # NCHW, like PyTorch
    params = make_bab_decoder_params(kp, C1, C2, C3)

    fwd = jax.jit(bab_decoder_forward)
    out = jax.block_until_ready(fwd(x, params))
    ref = jax.block_until_ready(bab_decoder_ref(x, params))

    assert out.shape == (N, C3, H, W), out.shape
    max_err = float(jnp.max(jnp.abs(out - ref)))
    # bf16 MXU operands / bf16 activation scratch vs a pure-f32 reference
    assert jnp.allclose(out, ref, rtol=2e-2, atol=2e-2), max_err

    print("KERNEL_OK")
</pallas_src>

<mosaic_0001>
module attributes {stable_mosaic.version = 11 : i64} {
  func.func @_bab_decoder_kernel(%arg0: i32, %arg1: memref<1x16x484xbf16, #tpu.memory_space<vmem>>, %arg2: memref<16x144xbf16, #tpu.memory_space<vmem>>, %arg3: memref<4x16x144xbf16, #tpu.memory_space<vmem>>, %arg4: memref<8x432xbf16, #tpu.memory_space<vmem>>, %arg5: memref<5x16x1xf32, #tpu.memory_space<vmem>>, %arg6: memref<5x16x1xf32, #tpu.memory_space<vmem>>, %arg7: memref<8x1xf32, #tpu.memory_space<vmem>>, %arg8: memref<8x1xf32, #tpu.memory_space<vmem>>, %arg9: memref<1x484xf32, #tpu.memory_space<vmem>>, %arg10: memref<1x8x484xf32, #tpu.memory_space<vmem>>, %arg11: memref<16x484xbf16, #tpu.memory_space<vmem>>, %arg12: memref<16x484xbf16, #tpu.memory_space<vmem>>, %arg13: memref<48x484xbf16, #tpu.memory_space<vmem>>, %arg14: memref<432x484xbf16, #tpu.memory_space<vmem>>) attributes {dimension_semantics = [#tpu.dimension_semantics<parallel>], iteration_bounds = array<i64: 2>, scalar_prefetch = 0 : i64, scratch_operands = 4 : i64, tpu.core_type = #tpu.core_type<tc>, window_params = [{transform_indices = @transform_0, window_bounds = array<i64: 1, 16, 484>}, {pipeline_mode = #tpu.pipeline_mode<synchronous>, transform_indices = @transform_1, window_bounds = array<i64: 16, 144>}, {pipeline_mode = #tpu.pipeline_mode<synchronous>, transform_indices = @transform_2, window_bounds = array<i64: 4, 16, 144>}, {pipeline_mode = #tpu.pipeline_mode<synchronous>, transform_indices = @transform_3, window_bounds = array<i64: 8, 432>}, {pipeline_mode = #tpu.pipeline_mode<synchronous>, transform_indices = @transform_4, window_bounds = array<i64: 5, 16, 1>}, {pipeline_mode = #tpu.pipeline_mode<synchronous>, transform_indices = @transform_5, window_bounds = array<i64: 5, 16, 1>}, {pipeline_mode = #tpu.pipeline_mode<synchronous>, transform_indices = @transform_6, window_bounds = array<i64: 8, 1>}, {pipeline_mode = #tpu.pipeline_mode<synchronous>, transform_indices = @transform_7, window_bounds = array<i64: 8, 1>}, {pipeline_mode = #tpu.pipeline_mode<synchronous>, transform_indices = @transform_8, window_bounds = array<i64: 1, 484>}, {transform_indices = @transform_9, window_bounds = array<i64: 1, 8, 484>}]} {
    %c0 = arith.constant 0 : index
    %c0_0 = arith.constant 0 : index
    %0 = vector.load %arg9[%c0, %c0_0] : memref<1x484xf32, #tpu.memory_space<vmem>>, vector<1x484xf32>
    %cst = arith.constant 5.000000e-01 : f32
    %1 = vector.broadcast %cst : f32 to vector<1x484xf32>
    %2 = arith.cmpf ogt, %0, %1 : vector<1x484xf32>
    %c0_1 = arith.constant 0 : index
    %c0_2 = arith.constant 0 : index
    %3 = vector.load %arg2[%c0_1, %c0_2] : memref<16x144xbf16, #tpu.memory_space<vmem>>, vector<16x144xbf16>
    %c0_3 = arith.constant 0 : index
    %c0_4 = arith.constant 0 : index
    %c0_5 = arith.constant 0 : index
    %4 = vector.load %arg5[%c0_3, %c0_4, %c0_5] : memref<5x16x1xf32, #tpu.memory_space<vmem>>, vector<1x16x1xf32>
    %5 = vector.shape_cast %4 : vector<1x16x1xf32> to vector<16x1xf32>
    %c0_6 = arith.constant 0 : index
    %c0_7 = arith.constant 0 : index
    %c0_8 = arith.constant 0 : index
    %6 = vector.load %arg6[%c0_6, %c0_7, %c0_8] : memref<5x16x1xf32, #tpu.memory_space<vmem>>, vector<1x16x1xf32>
    %7 = vector.shape_cast %6 : vector<1x16x1xf32> to vector<16x1xf32>
    %c0_9 = arith.constant 0 : index
    %c0_10 = arith.constant 0 : index
    %c0_11 = arith.constant 0 : index
    %8 = vector.load %arg1[%c0_9, %c0_10, %c0_11] : memref<1x16x484xbf16, #tpu.memory_space<vmem>>, vector<1x16x461xbf16>
    %9 = vector.shape_cast %8 : vector<1x16x461xbf16> to vector<16x461xbf16>
    %c0_12 = arith.constant 0 : index
    %c23 = arith.constant 23 : index
    %10 = vector.load %arg14[%c0_12, %c23] : memref<432x484xbf16, #tpu.memory_space<vmem>>, vector<16x461xbf16>
    tpu.vector_store %arg14[%c0_12, %c23], %9 {strides = array<i32>} : memref<432x484xbf16, #tpu.memory_space<vmem>>, vector<16x461xbf16>,
    %c0_13 = arith.constant 0 : index
    %c0_14 = arith.constant 0 : index
    %c0_15 = arith.constant 0 : index
    %11 = vector.load %arg1[%c0_13, %c0_14, %c0_15] : memref<1x16x484xbf16, #tpu.memory_space<vmem>>, vector<1x16x462xbf16>
    %12 = vector.shape_cast %11 : vector<1x16x462xbf16> to vector<16x462xbf16>
    %c16 = arith.constant 16 : index
    %c22 = arith.constant 22 : index
    %13 = vector.load %arg14[%c16, %c22] : memref<432x484xbf16, #tpu.memory_space<vmem>>, vector<16x462xbf16>
    tpu.vector_store %arg14[%c16, %c22], %12 {strides = array<i32>} : memref<432x484xbf16, #tpu.memory_space<vmem>>, vector<16x462xbf16>,
    %c0_16 = arith.constant 0 : index
    %c0_17 = arith.constant 0 : index
    %c0_18 = arith.constant 0 : index
    %14 = vector.load %arg1[%c0_16, %c0_17, %c0_18] : memref<1x16x484xbf16, #tpu.memory_space<vmem>>, vector<1x16x463xbf16>
    %15 = vector.shape_cast %14 : vector<1x16x463xbf16> to vector<16x463xbf16>
    %c32 = arith.constant 32 : index
    %c21 = arith.constant 21 : index
    %16 = vector.load %arg14[%c32, %c21] : memref<432x484xbf16, #tpu.memory_space<vmem>>, vector<16x463xbf16>
    tpu.vector_store %arg14[%c32, %c21], %15 {strides = array<i32>} : memref<432x484xbf16, #tpu.memory_space<vmem>>, vector<16x463xbf16>,
    %c0_19 = arith.constant 0 : index
    %c0_20 = arith.constant 0 : index
    %c0_21 = arith.constant 0 : index
    %17 = vector.load %arg1[%c0_19, %c0_20, %c0_21] : memref<1x16x484xbf16, #tpu.memory_space<vmem>>, vector<1x16x483xbf16>
    %18 = vector.shape_cast %17 : vector<1x16x483xbf16> to vector<16x483xbf16>
    %c48 = arith.constant 48 : index
    %c1 = arith.constant 1 : index
    %19 = vector.load %arg14[%c48, %c1] : memref<432x484xbf16, #tpu.memory_space<vmem>>, vector<16x483xbf16>
    tpu.vector_store %arg14[%c48, %c1], %18 {strides = array<i32>} : memref<432x484xbf16, #tpu.memory_space<vmem>>, vector<16x483xbf16>,
    %c0_22 = arith.constant 0 : index
    %c0_23 = arith.constant 0 : index
    %c0_24 = arith.constant 0 : index
    %20 = vector.load %arg1[%c0_22, %c0_23, %c0_24] : memref<1x16x484xbf16, #tpu.memory_space<vmem>>, vector<1x16x484xbf16>
    %21 = vector.shape_cast %20 : vector<1x16x484xbf16> to vector<16x484xbf16>
    %c64 = arith.constant 64 : index
    %c0_25 = arith.constant 0 : index
    %22 = vector.load %arg14[%c64, %c0_25] : memref<432x484xbf16, #tpu.memory_space<vmem>>, vector<16x484xbf16>
    tpu.vector_store %arg14[%c64, %c0_25], %21 {strides = array<i32>} : memref<432x484xbf16, #tpu.memory_space<vmem>>, vector<16x484xbf16>,
    %c0_26 = arith.constant 0 : index
    %c0_27 = arith.constant 0 : index
    %c1_28 = arith.constant 1 : index
    %23 = vector.load %arg1[%c0_26, %c0_27, %c1_28] : memref<1x16x484xbf16, #tpu.memory_space<vmem>>, vector<1x16x483xbf16>
    %24 = vector.shape_cast %23 : vector<1x16x483xbf16> to vector<16x483xbf16>
    %c80 = arith.constant 80 : index
    %c0_29 = arith.constant 0 : index
    %25 = vector.load %arg14[%c80, %c0_29] : memref<432x484xbf16, #tpu.memory_space<vmem>>, vector<16x483xbf16>
    tpu.vector_store %arg14[%c80, %c0_29], %24 {strides = array<i32>} : memref<432x484xbf16, #tpu.memory_space<vmem>>, vector<16x483xbf16>,
    %c0_30 = arith.constant 0 : index
    %c0_31 = arith.constant 0 : index
    %c21_32 = arith.constant 21 : index
    %26 = vector.load %arg1[%c0_30, %c0_31, %c21_32] : memref<1x16x484xbf16, #tpu.memory_space<vmem>>, vector<1x16x463xbf16>
    %27 = vector.shape_cast %26 : vector<1x16x463xbf16> to vector<16x463xbf16>
    %c96 = arith.constant 96 : index
    %c0_33 = arith.constant 0 : index
    %28 = vector.load %arg14[%c96, %c0_33] : memref<432x484xbf16, #tpu.memory_space<vmem>>, vector<16x463xbf16>
    tpu.vector_store %arg14[%c96, %c0_33], %27 {strides = array<i32>} : memref<432x484xbf16, #tpu.memory_space<vmem>>, vector<16x463xbf16>,
    %c0_34 = arith.constant 0 : index
    %c0_35 = arith.constant 0 : index
    %c22_36 = arith.constant 22 : index
    %29 = vector.load %arg1[%c0_34, %c0_35, %c22_36] : memref<1x16x484xbf16, #tpu.memory_space<vmem>>, vector<1x16x462xbf16>
    %30 = vector.shape_cast %29 : vector<1x16x462xbf16> to vector<16x462xbf16>
    %c112 = arith.constant 112 : index
    %c0_37 = arith.constant 0 : index
    %31 = vector.load %arg14[%c112, %c0_37] : memref<432x484xbf16, #tpu.memory_space<vmem>>, vector<16x462xbf16>
    tpu.vector_store %arg14[%c112, %c0_37], %30 {strides = array<i32>} : memref<432x484xbf16, #tpu.memory_space<vmem>>, vector<16x462xbf16>,
    %c0_38 = arith.constant 0 : index
    %c0_39 = arith.constant 0 : index
    %c23_40 = arith.constant 23 : index
    %32 = vector.load %arg1[%c0_38, %c0_39, %c23_40] : memref<1x16x484xbf16, #tpu.memory_space<vmem>>, vector<1x16x461xbf16>
    %33 = vector.shape_cast %32 : vector<1x16x461xbf16> to vector<16x461xbf16>
    %c128 = arith.constant 128 : index
    %c0_41 = arith.constant 0 : index
    %34 = vector.load %arg14[%c128, %c0_41] : memref<432x484xbf16, #tpu.memory_space<vmem>>, vector<16x461xbf16>
    tpu.vector_store %arg14[%c128, %c0_41], %33 {strides = array<i32>} : memref<432x484xbf16, #tpu.memory_space<vmem>>, vector<16x461xbf16>,
    %c0_42 = arith.constant 0 : index
    %c0_43 = arith.constant 0 : index
    %35 = vector.load %arg14[%c0_42, %c0_43] : memref<432x484xbf16, #tpu.memory_space<vmem>>, vector<144x484xbf16>
    %cst_44 = arith.constant dense<0.000000e+00> : vector<16x484xf32>
    %36 = tpu.matmul %3, %35, %cst_44 {dimension_numbers = #tpu.dot_dimension_numbers<[1], [0], [0], [1], [0, 0, 1, 1], [], []>} : vector<16x144xbf16>, vector<144x484xbf16>, vector<16x484xf32> -> vector<16x484xf32>
    %37 = vector.broadcast %5 : vector<16x1xf32> to vector<16x484xf32>
    %38 = arith.mulf %36, %37 : vector<16x484xf32>
    %39 = vector.broadcast %7 : vector<16x1xf32> to vector<16x484xf32>
    %40 = arith.addf %38, %39 : vector<16x484xf32>
    %cst_45 = arith.constant 0.000000e+00 : f32
    %41 = vector.shape_cast %2 : vector<1x484xi1> to vector<1x484xi1>
    %42 = vector.broadcast %41 : vector<1x484xi1> to vector<16x484xi1>
    %43 = vector.broadcast %cst_45 : f32 to vector<16x484xf32>
    %44 = arith.select %42, %40, %43 : vector<16x484xi1>, vector<16x484xf32>
    %45 = arith.truncf %44 : vector<16x484xf32> to vector<16x484xbf16>
    %c0_46 = arith.constant 0 : index
    %c0_47 = arith.constant 0 : index
    %46 = vector.load %arg11[%c0_46, %c0_47] : memref<16x484xbf16, #tpu.memory_space<vmem>>, vector<16x484xbf16>
    tpu.vector_store %arg11[%c0_46, %c0_47], %45 {strides = array<i32>} : memref<16x484xbf16, #tpu.memory_space<vmem>>, vector<16x484xbf16>,
    %c0_48 = arith.constant 0 : index
    %c0_49 = arith.constant 0 : index
    %c0_50 = arith.constant 0 : index
    %47 = vector.load %arg3[%c0_48, %c0_49, %c0_50] : memref<4x16x144xbf16, #tpu.memory_space<vmem>>, vector<1x16x144xbf16>
    %48 = vector.shape_cast %47 : vector<1x16x144xbf16> to vector<16x144xbf16>
    %c1_51 = arith.constant 1 : index
    %c0_52 = arith.constant 0 : index
    %c0_53 = arith.constant 0 : index
    %49 = vector.load %arg5[%c1_51, %c0_52, %c0_53] : memref<5x16x1xf32, #tpu.memory_space<vmem>>, vector<1x16x1xf32>
    %50 = vector.shape_cast %49 : vector<1x16x1xf32> to vector<16x1xf32>
    %c1_54 = arith.constant 1 : index
    %c0_55 = arith.constant 0 : index
    %c0_56 = arith.constant 0 : index
    %51 = vector.load %arg6[%c1_54, %c0_55, %c0_56] : memref<5x16x1xf32, #tpu.memory_space<vmem>>, vector<1x16x1xf32>
    %52 = vector.shape_cast %51 : vector<1x16x1xf32> to vector<16x1xf32>
    %c0_57 = arith.constant 0 : index
    %c0_58 = arith.constant 0 : index
    %53 = vector.load %arg11[%c0_57, %c0_58] : memref<16x484xbf16, #tpu.memory_space<vmem>>, vector<16x415xbf16>
    %c0_59 = arith.constant 0 : index
    %c69 = arith.constant 69 : index
    %54 = vector.load %arg14[%c0_59, %c69] : memref<432x484xbf16, #tpu.memory_space<vmem>>, vector<16x415xbf16>
    tpu.vector_store %arg14[%c0_59, %c69], %53 {strides = array<i32>} : memref<432x484xbf16, #tpu.memory_space<vmem>>, vector<16x415xbf16>,
    %c0_60 = arith.constant 0 : index
    %c0_61 = arith.constant 0 : index
    %55 = vector.load %arg11[%c0_60, %c0_61] : memref<16x484xbf16, #tpu.memory_space<vmem>>, vector<16x418xbf16>
    %c16_62 = arith.constant 16 : index
    %c66 = arith.constant 66 : index
    %56 = vector.load %arg14[%c16_62, %c66] : memref<432x484xbf16, #tpu.memory_space<vmem>>, vector<16x418xbf16>
    tpu.vector_store %arg14[%c16_62, %c66], %55 {strides = array<i32>} : memref<432x484xbf16, #tpu.memory_space<vmem>>, vector<16x418xbf16>,
    %c0_63 = arith.constant 0 : index
    %c0_64 = arith.constant 0 : index
    %57 = vector.load %arg11[%c0_63, %c0_64] : memref<16x484xbf16, #tpu.memory_space<vmem>>, vector<16x421xbf16>
    %c32_65 = arith.constant 32 : index
    %c63 = arith.constant 63 : index
    %58 = vector.load %arg14[%c32_65, %c63] : memref<432x484xbf16, #tpu.memory_space<vmem>>, vector<16x421xbf16>
    tpu.vector_store %arg14[%c32_65, %c63], %57 {strides = array<i32>} : memref<432x484xbf16, #tpu.memory_space<vmem>>, vector<16x421xbf16>,
    %c0_66 = arith.constant 0 : index
    %c0_67 = arith.constant 0 : index
    %59 = vector.load %arg11[%c0_66, %c0_67] : memref<16x484xbf16, #tpu.memory_space<vmem>>, vector<16x481xbf16>
    %c48_68 = arith.constant 48 : index
    %c3 = arith.constant 3 : index
    %60 = vector.load %arg14[%c48_68, %c3] : memref<432x484xbf16, #tpu.memory_space<vmem>>, vector<16x481xbf16>
    tpu.vector_store %arg14[%c48_68, %c3], %59 {strides = array<i32>} : memref<432x484xbf16, #tpu.memory_space<vmem>>, vector<16x481xbf16>,
    %c0_69 = arith.constant 0 : index
    %c0_70 = arith.constant 0 : index
    %61 = vector.load %arg11[%c0_69, %c0_70] : memref<16x484xbf16, #tpu.memory_space<vmem>>, vector<16x484xbf16>
    %c64_71 = arith.constant 64 : index
    %c0_72 = arith.constant 0 : index
    %62 = vector.load %arg14[%c64_71, %c0_72] : memref<432x484xbf16, #tpu.memory_space<vmem>>, vector<16x484xbf16>
    tpu.vector_store %arg14[%c64_71, %c0_72], %61 {strides = array<i32>} : memref<432x484xbf16, #tpu.memory_space<vmem>>, vector<16x484xbf16>,
    %c0_73 = arith.constant 0 : index
    %c3_74 = arith.constant 3 : index
    %63 = vector.load %arg11[%c0_73, %c3_74] : memref<16x484xbf16, #tpu.memory_space<vmem>>, vector<16x481xbf16>
    %c80_75 = arith.constant 80 : index
    %c0_76 = arith.constant 0 : index
    %64 = vector.load %arg14[%c80_75, %c0_76] : memref<432x484xbf16, #tpu.memory_space<vmem>>, vector<16x481xbf16>
    tpu.vector_store %arg14[%c80_75, %c0_76], %63 {strides = array<i32>} : memref<432x484xbf16, #tpu.memory_space<vmem>>, vector<16x481xbf16>,
    %c0_77 = arith.constant 0 : index
    %c63_78 = arith.constant 63 : index
    %65 = vector.load %arg11[%c0_77, %c63_78] : memref<16x484xbf16, #tpu.memory_space<vmem>>, vector<16x421xbf16>
    %c96_79 = arith.constant 96 : index
    %c0_80 = arith.constant 0 : index
    %66 = vector.load %arg14[%c96_79, %c0_80] : memref<432x484xbf16, #tpu.memory_space<vmem>>, vector<16x421xbf16>
    tpu.vector_store %arg14[%c96_79, %c0_80], %65 {strides = array<i32>} : memref<432x484xbf16, #tpu.memory_space<vmem>>, vector<16x421xbf16>,
    %c0_81 = arith.constant 0 : index
    %c66_82 = arith.constant 66 : index
    %67 = vector.load %arg11[%c0_81, %c66_82] : memref<16x484xbf16, #tpu.memory_space<vmem>>, vector<16x418xbf16>
    %c112_83 = arith.constant 112 : index
    %c0_84 = arith.constant 0 : index
    %68 = vector.load %arg14[%c112_83, %c0_84] : memref<432x484xbf16, #tpu.memory_space<vmem>>, vector<16x418xbf16>
    tpu.vector_store %arg14[%c112_83, %c0_84], %67 {strides = array<i32>} : memref<432x484xbf16, #tpu.memory_space<vmem>>, vector<16x418xbf16>,
    %c0_85 = arith.constant 0 : index
    %c69_86 = arith.constant 69 : index
    %69 = vector.load %arg11[%c0_85, %c69_86] : memref<16x484xbf16, #tpu.memory_space<vmem>>, vector<16x415xbf16>
    %c128_87 = arith.constant 128 : index
    %c0_88 = arith.constant 0 : index
    %70 = vector.load %arg14[%c128_87, %c0_88] : memref<432x484xbf16, #tpu.memory_space<vmem>>, vector<16x415xbf16>
    tpu.vector_store %arg14[%c128_87, %c0_88], %69 {strides = array<i32>} : memref<432x484xbf16, #tpu.memory_space<vmem>>, vector<16x415xbf16>,
    %c0_89 = arith.constant 0 : index
    %c0_90 = arith.constant 0 : index
    %71 = vector.load %arg14[%c0_89, %c0_90] : memref<432x484xbf16, #tpu.memory_space<vmem>>, vector<144x484xbf16>
    %cst_91 = arith.constant dense<0.000000e+00> : vector<16x484xf32>
    %72 = tpu.matmul %48, %71, %cst_91 {dimension_numbers = #tpu.dot_dimension_numbers<[1], [0], [0], [1], [0, 0, 1, 1], [], []>} : vector<16x144xbf16>, vector<144x484xbf16>, vector<16x484xf32> -> vector<16x484xf32>
    %73 = vector.broadcast %50 : vector<16x1xf32> to vector<16x484xf32>
    %74 = arith.mulf %72, %73 : vector<16x484xf32>
    %75 = vector.broadcast %52 : vector<16x1xf32> to vector<16x484xf32>
    %76 = arith.addf %74, %75 : vector<16x484xf32>
    %cst_92 = arith.constant 0.000000e+00 : f32
    %77 = vector.shape_cast %2 : vector<1x484xi1> to vector<1x484xi1>
    %78 = vector.broadcast %77 : vector<1x484xi1> to vector<16x484xi1>
    %79 = vector.broadcast %cst_92 : f32 to vector<16x484xf32>
    %80 = arith.select %78, %76, %79 : vector<16x484xi1>, vector<16x484xf32>
    %81 = arith.truncf %80 : vector<16x484xf32> to vector<16x484xbf16>
    %c0_93 = arith.constant 0 : index
    %c0_94 = arith.constant 0 : index
    %82 = vector.load %arg13[%c0_93, %c0_94] : memref<48x484xbf16, #tpu.memory_space<vmem>>, vector<16x484xbf16>
    tpu.vector_store %arg13[%c0_93, %c0_94], %81 {strides = array<i32>} : memref<48x484xbf16, #tpu.memory_space<vmem>>, vector<16x484xbf16>,
    %c1_95 = arith.constant 1 : index
    %c0_96 = arith.constant 0 : index
    %c0_97 = arith.constant 0 : index
    %83 = vector.load %arg3[%c1_95, %c0_96, %c0_97] : memref<4x16x144xbf16, #tpu.memory_space<vmem>>, vector<1x16x144xbf16>
    %84 = vector.shape_cast %83 : vector<1x16x144xbf16> to vector<16x144xbf16>
    %c2 = arith.constant 2 : index
    %c0_98 = arith.constant 0 : index
    %c0_99 = arith.constant 0 : index
    %85 = vector.load %arg5[%c2, %c0_98, %c0_99] : memref<5x16x1xf32, #tpu.memory_space<vmem>>, vector<1x16x1xf32>
    %86 = vector.shape_cast %85 : vector<1x16x1xf32> to vector<16x1xf32>
    %c2_100 = arith.constant 2 : index
    %c0_101 = arith.constant 0 : index
    %c0_102 = arith.constant 0 : index
    %87 = vector.load %arg6[%c2_100, %c0_101, %c0_102] : memref<5x16x1xf32, #tpu.memory_space<vmem>>, vector<1x16x1xf32>
    %88 = vector.shape_cast %87 : vector<1x16x1xf32> to vector<16x1xf32>
    %c0_103 = arith.constant 0 : index
    %c0_104 = arith.constant 0 : index
    %89 = vector.load %arg11[%c0_103, %c0_104] : memref<16x484xbf16, #tpu.memory_space<vmem>>, vector<16x461xbf16>
    %c0_105 = arith.constant 0 : index
    %c23_106 = arith.constant 23 : index
    %90 = vector.load %arg14[%c0_105, %c23_106] : memref<432x484xbf16, #tpu.memory_space<vmem>>, vector<16x461xbf16>
    tpu.vector_store %arg14[%c0_105, %c23_106], %89 {strides = array<i32>} : memref<432x484xbf16, #tpu.memory_space<vmem>>, vector<16x461xbf16>,
    %c0_107 = arith.constant 0 : index
    %c0_108 = arith.constant 0 : index
    %91 = vector.load %arg11[%c0_107, %c0_108] : memref<16x484xbf16, #tpu.memory_space<vmem>>, vector<16x462xbf16>
    %c16_109 = arith.constant 16 : index
    %c22_110 = arith.constant 22 : index
    %92 = vector.load %arg14[%c16_109, %c22_110] : memref<432x484xbf16, #tpu.memory_space<vmem>>, vector<16x462xbf16>
    tpu.vector_store %arg14[%c16_109, %c22_110], %91 {strides = array<i32>} : memref<432x484xbf16, #tpu.memory_space<vmem>>, vector<16x462xbf16>,
    %c0_111 = arith.constant 0 : index
    %c0_112 = arith.constant 0 : index
    %93 = vector.load %arg11[%c0_111, %c0_112] : memref<16x484xbf16, #tpu.memory_space<vmem>>, vector<16x463xbf16>
    %c32_113 = arith.constant 32 : index
    %c21_114 = arith.constant 21 : index
    %94 = vector.load %arg14[%c32_113, %c21_114] : memref<432x484xbf16, #tpu.memory_space<vmem>>, vector<16x463xbf16>
    tpu.vector_store %arg14[%c32_113, %c21_114], %93 {strides = array<i32>} : memref<432x484xbf16, #tpu.memory_space<vmem>>, vector<16x463xbf16>,
    %c0_115 = arith.constant 0 : index
    %c0_116 = arith.constant 0 : index
    %95 = vector.load %arg11[%c0_115, %c0_116] : memref<16x484xbf16, #tpu.memory_space<vmem>>, vector<16x483xbf16>
    %c48_117 = arith.constant 48 : index
    %c1_118 = arith.constant 1 : index
    %96 = vector.load %arg14[%c48_117, %c1_118] : memref<432x484xbf16, #tpu.memory_space<vmem>>, vector<16x483xbf16>
    tpu.vector_store %arg14[%c48_117, %c1_118], %95 {strides = array<i32>} : memref<432x484xbf16, #tpu.memory_space<vmem>>, vector<16x483xbf16>,
    %c0_119 = arith.constant 0 : index
    %c0_120 = arith.constant 0 : index
    %97 = vector.load %arg11[%c0_119, %c0_120] : memref<16x484xbf16, #tpu.memory_space<vmem>>, vector<16x484xbf16>
    %c64_121 = arith.constant 64 : index
    %c0_122 = arith.constant 0 : index
    %98 = vector.load %arg14[%c64_121, %c0_122] : memref<432x484xbf16, #tpu.memory_space<vmem>>, vector<16x484xbf16>
    tpu.vector_store %arg14[%c64_121, %c0_122], %97 {strides = array<i32>} : memref<432x484xbf16, #tpu.memory_space<vmem>>, vector<16x484xbf16>,
    %c0_123 = arith.constant 0 : index
    %c1_124 = arith.constant 1 : index
    %99 = vector.load %arg11[%c0_123, %c1_124] : memref<16x484xbf16, #tpu.memory_space<vmem>>, vector<16x483xbf16>
    %c80_125 = arith.constant 80 : index
    %c0_126 = arith.constant 0 : index
    %100 = vector.load %arg14[%c80_125, %c0_126] : memref<432x484xbf16, #tpu.memory_space<vmem>>, vector<16x483xbf16>
    tpu.vector_store %arg14[%c80_125, %c0_126], %99 {strides = array<i32>} : memref<432x484xbf16, #tpu.memory_space<vmem>>, vector<16x483xbf16>,
    %c0_127 = arith.constant 0 : index
    %c21_128 = arith.constant 21 : index
    %101 = vector.load %arg11[%c0_127, %c21_128] : memref<16x484xbf16, #tpu.memory_space<vmem>>, vector<16x463xbf16>
    %c96_129 = arith.constant 96 : index
    %c0_130 = arith.constant 0 : index
    %102 = vector.load %arg14[%c96_129, %c0_130] : memref<432x484xbf16, #tpu.memory_space<vmem>>, vector<16x463xbf16>
    tpu.vector_store %arg14[%c96_129, %c0_130], %101 {strides = array<i32>} : memref<432x484xbf16, #tpu.memory_space<vmem>>, vector<16x463xbf16>,
    %c0_131 = arith.constant 0 : index
    %c22_132 = arith.constant 22 : index
    %103 = vector.load %arg11[%c0_131, %c22_132] : memref<16x484xbf16, #tpu.memory_space<vmem>>, vector<16x462xbf16>
    %c112_133 = arith.constant 112 : index
    %c0_134 = arith.constant 0 : index
    %104 = vector.load %arg14[%c112_133, %c0_134] : memref<432x484xbf16, #tpu.memory_space<vmem>>, vector<16x462xbf16>
    tpu.vector_store %arg14[%c112_133, %c0_134], %103 {strides = array<i32>} : memref<432x484xbf16, #tpu.memory_space<vmem>>, vector<16x462xbf16>,
    %c0_135 = arith.constant 0 : index
    %c23_136 = arith.constant 23 : index
    %105 = vector.load %arg11[%c0_135, %c23_136] : memref<16x484xbf16, #tpu.memory_space<vmem>>, vector<16x461xbf16>
    %c128_137 = arith.constant 128 : index
    %c0_138 = arith.constant 0 : index
    %106 = vector.load %arg14[%c128_137, %c0_138] : memref<432x484xbf16, #tpu.memory_space<vmem>>, vector<16x461xbf16>
    tpu.vector_store %arg14[%c128_137, %c0_138], %105 {strides = array<i32>} : memref<432x484xbf16, #tpu.memory_space<vmem>>, vector<16x461xbf16>,
    %c0_139 = arith.constant 0 : index
    %c0_140 = arith.constant 0 : index
    %107 = vector.load %arg14[%c0_139, %c0_140] : memref<432x484xbf16, #tpu.memory_space<vmem>>, vector<144x484xbf16>
    %cst_141 = arith.constant dense<0.000000e+00> : vector<16x484xf32>
    %108 = tpu.matmul %84, %107, %cst_141 {dimension_numbers = #tpu.dot_dimension_numbers<[1], [0], [0], [1], [0, 0, 1, 1], [], []>} : vector<16x144xbf16>, vector<144x484xbf16>, vector<16x484xf32> -> vector<16x484xf32>
    %109 = vector.broadcast %86 : vector<16x1xf32> to vector<16x484xf32>
    %110 = arith.mulf %108, %109 : vector<16x484xf32>
    %111 = vector.broadcast %88 : vector<16x1xf32> to vector<16x484xf32>
    %112 = arith.addf %110, %111 : vector<16x484xf32>
    %cst_142 = arith.constant 0.000000e+00 : f32
    %113 = vector.shape_cast %2 : vector<1x484xi1> to vector<1x484xi1>
    %114 = vector.broadcast %113 : vector<1x484xi1> to vector<16x484xi1>
    %115 = vector.broadcast %cst_142 : f32 to vector<16x484xf32>
    %116 = arith.select %114, %112, %115 : vector<16x484xi1>, vector<16x484xf32>
    %117 = arith.truncf %116 : vector<16x484xf32> to vector<16x484xbf16>
    %c0_143 = arith.constant 0 : index
    %c0_144 = arith.constant 0 : index
    %118 = vector.load %arg12[%c0_143, %c0_144] : memref<16x484xbf16, #tpu.memory_space<vmem>>, vector<16x484xbf16>
    tpu.vector_store %arg12[%c0_143, %c0_144], %117 {strides = array<i32>} : memref<16x484xbf16, #tpu.memory_space<vmem>>, vector<16x484xbf16>,
    %c2_145 = arith.constant 2 : index
    %c0_146 = arith.constant 0 : index
    %c0_147 = arith.constant 0 : index
    %119 = vector.load %arg3[%c2_145, %c0_146, %c0_147] : memref<4x16x144xbf16, #tpu.memory_space<vmem>>, vector<1x16x144xbf16>
    %120 = vector.shape_cast %119 : vector<1x16x144xbf16> to vector<16x144xbf16>
    %c3_148 = arith.constant 3 : index
    %c0_149 = arith.constant 0 : index
    %c0_150 = arith.constant 0 : index
    %121 = vector.load %arg5[%c3_148, %c0_149, %c0_150] : memref<5x16x1xf32, #tpu.memory_space<vmem>>, vector<1x16x1xf32>
    %122 = vector.shape_cast %121 : vector<1x16x1xf32> to vector<16x1xf32>
    %c3_151 = arith.constant 3 : index
    %c0_152 = arith.constant 0 : index
    %c0_153 = arith.constant 0 : index
    %123 = vector.load %arg6[%c3_151, %c0_152, %c0_153] : memref<5x16x1xf32, #tpu.memory_space<vmem>>, vector<1x16x1xf32>
    %124 = vector.shape_cast %123 : vector<1x16x1xf32> to vector<16x1xf32>
    %c0_154 = arith.constant 0 : index
    %c0_155 = arith.constant 0 : index
    %125 = vector.load %arg12[%c0_154, %c0_155] : memref<16x484xbf16, #tpu.memory_space<vmem>>, vector<16x438xbf16>
    %c0_156 = arith.constant 0 : index
    %c46 = arith.constant 46 : index
    %126 = vector.load %arg14[%c0_156, %c46] : memref<432x484xbf16, #tpu.memory_space<vmem>>, vector<16x438xbf16>
    tpu.vector_store %arg14[%c0_156, %c46], %125 {strides = array<i32>} : memref<432x484xbf16, #tpu.memory_space<vmem>>, vector<16x438xbf16>,
    %c0_157 = arith.constant 0 : index
    %c0_158 = arith.constant 0 : index
    %127 = vector.load %arg12[%c0_157, %c0_158] : memref<16x484xbf16, #tpu.memory_space<vmem>>, vector<16x440xbf16>
    %c16_159 = arith.constant 16 : index
    %c44 = arith.constant 44 : index
    %128 = vector.load %arg14[%c16_159, %c44] : memref<432x484xbf16, #tpu.memory_space<vmem>>, vector<16x440xbf16>
    tpu.vector_store %arg14[%c16_159, %c44], %127 {strides = array<i32>} : memref<432x484xbf16, #tpu.memory_space<vmem>>, vector<16x440xbf16>,
    %c0_160 = arith.constant 0 : index
    %c0_161 = arith.constant 0 : index
    %129 = vector.load %arg12[%c0_160, %c0_161] : memref<16x484xbf16, #tpu.memory_space<vmem>>, vector<16x442xbf16>
    %c32_162 = arith.constant 32 : index
    %c42 = arith.constant 42 : index
    %130 = vector.load %arg14[%c32_162, %c42] : memref<432x484xbf16, #tpu.memory_space<vmem>>, vector<16x442xbf16>
    tpu.vector_store %arg14[%c32_162, %c42], %129 {strides = array<i32>} : memref<432x484xbf16, #tpu.memory_space<vmem>>, vector<16x442xbf16>,
    %c0_163 = arith.constant 0 : index
    %c0_164 = arith.constant 0 : index
    %131 = vector.load %arg12[%c0_163, %c0_164] : memref<16x484xbf16, #tpu.memory_space<vmem>>, vector<16x482xbf16>
    %c48_165 = arith.constant 48 : index
    %c2_166 = arith.constant 2 : index
    %132 = vector.load %arg14[%c48_165, %c2_166] : memref<432x484xbf16, #tpu.memory_space<vmem>>, vector<16x482xbf16>
    tpu.vector_store %arg14[%c48_165, %c2_166], %131 {strides = array<i32>} : memref<432x484xbf16, #tpu.memory_space<vmem>>, vector<16x482xbf16>,
    %c0_167 = arith.constant 0 : index
    %c0_168 = arith.constant 0 : index
    %133 = vector.load %arg12[%c0_167, %c0_168] : memref<16x484xbf16, #tpu.memory_space<vmem>>, vector<16x484xbf16>
    %c64_169 = arith.constant 64 : index
    %c0_170 = arith.constant 0 : index
    %134 = vector.load %arg14[%c64_169, %c0_170] : memref<432x484xbf16, #tpu.memory_space<vmem>>, vector<16x484xbf16>
    tpu.vector_store %arg14[%c64_169, %c0_170], %133 {strides = array<i32>} : memref<432x484xbf16, #tpu.memory_space<vmem>>, vector<16x484xbf16>,
    %c0_171 = arith.constant 0 : index
    %c2_172 = arith.constant 2 : index
    %135 = vector.load %arg12[%c0_171, %c2_172] : memref<16x484xbf16, #tpu.memory_space<vmem>>, vector<16x482xbf16>
    %c80_173 = arith.constant 80 : index
    %c0_174 = arith.constant 0 : index
    %136 = vector.load %arg14[%c80_173, %c0_174] : memref<432x484xbf16, #tpu.memory_space<vmem>>, vector<16x482xbf16>
    tpu.vector_store %arg14[%c80_173, %c0_174], %135 {strides = array<i32>} : memref<432x484xbf16, #tpu.memory_space<vmem>>, vector<16x482xbf16>,
    %c0_175 = arith.constant 0 : index
    %c42_176 = arith.constant 42 : index
    %137 = vector.load %arg12[%c0_175, %c42_176] : memref<16x484xbf16, #tpu.memory_space<vmem>>, vector<16x442xbf16>
    %c96_177 = arith.constant 96 : index
    %c0_178 = arith.constant 0 : index
    %138 = vector.load %arg14[%c96_177, %c0_178] : memref<432x484xbf16, #tpu.memory_space<vmem>>, vector<16x442xbf16>
    tpu.vector_store %arg14[%c96_177, %c0_178], %137 {strides = array<i32>} : memref<432x484xbf16, #tpu.memory_space<vmem>>, vector<16x442xbf16>,
    %c0_179 = arith.constant 0 : index
    %c44_180 = arith.constant 44 : index
    %139 = vector.load %arg12[%c0_179, %c44_180] : memref<16x484xbf16, #tpu.memory_space<vmem>>, vector<16x440xbf16>
    %c112_181 = arith.constant 112 : index
    %c0_182 = arith.constant 0 : index
    %140 = vector.load %arg14[%c112_181, %c0_182] : memref<432x484xbf16, #tpu.memory_space<vmem>>, vector<16x440xbf16>
    tpu.vector_store %arg14[%c112_181, %c0_182], %139 {strides = array<i32>} : memref<432x484xbf16, #tpu.memory_space<vmem>>, vector<16x440xbf16>,
    %c0_183 = arith.constant 0 : index
    %c46_184 = arith.constant 46 : index
    %141 = vector.load %arg12[%c0_183, %c46_184] : memref<16x484xbf16, #tpu.memory_space<vmem>>, vector<16x438xbf16>
    %c128_185 = arith.constant 128 : index
    %c0_186 = arith.constant 0 : index
    %142 = vector.load %arg14[%c128_185, %c0_186] : memref<432x484xbf16, #tpu.memory_space<vmem>>, vector<16x438xbf16>
    tpu.vector_store %arg14[%c128_185, %c0_186], %141 {strides = array<i32>} : memref<432x484xbf16, #tpu.memory_space<vmem>>, vector<16x438xbf16>,
    %c0_187 = arith.constant 0 : index
    %c0_188 = arith.constant 0 : index
    %143 = vector.load %arg14[%c0_187, %c0_188] : memref<432x484xbf16, #tpu.memory_space<vmem>>, vector<144x484xbf16>
    %cst_189 = arith.constant dense<0.000000e+00> : vector<16x484xf32>
    %144 = tpu.matmul %120, %143, %cst_189 {dimension_numbers = #tpu.dot_dimension_numbers<[1], [0], [0], [1], [0, 0, 1, 1], [], []>} : vector<16x144xbf16>, vector<144x484xbf16>, vector<16x484xf32> -> vector<16x484xf32>
    %145 = vector.broadcast %122 : vector<16x1xf32> to vector<16x484xf32>
    %146 = arith.mulf %144, %145 : vector<16x484xf32>
    %147 = vector.broadcast %124 : vector<16x1xf32> to vector<16x484xf32>
    %148 = arith.addf %146, %147 : vector<16x484xf32>
    %cst_190 = arith.constant 0.000000e+00 : f32
    %149 = vector.shape_cast %2 : vector<1x484xi1> to vector<1x484xi1>
    %150 = vector.broadcast %149 : vector<1x484xi1> to vector<16x484xi1>
    %151 = vector.broadcast %cst_190 : f32 to vector<16x484xf32>
    %152 = arith.select %150, %148, %151 : vector<16x484xi1>, vector<16x484xf32>
    %153 = arith.truncf %152 : vector<16x484xf32> to vector<16x484xbf16>
    %c16_191 = arith.constant 16 : index
    %c0_192 = arith.constant 0 : index
    %154 = vector.load %arg13[%c16_191, %c0_192] : memref<48x484xbf16, #tpu.memory_space<vmem>>, vector<16x484xbf16>
    tpu.vector_store %arg13[%c16_191, %c0_192], %153 {strides = array<i32>} : memref<48x484xbf16, #tpu.memory_space<vmem>>, vector<16x484xbf16>,
    %c3_193 = arith.constant 3 : index
    %c0_194 = arith.constant 0 : index
    %c0_195 = arith.constant 0 : index
    %155 = vector.load %arg3[%c3_193, %c0_194, %c0_195] : memref<4x16x144xbf16, #tpu.memory_space<vmem>>, vector<1x16x144xbf16>
    %156 = vector.shape_cast %155 : vector<1x16x144xbf16> to vector<16x144xbf16>
    %c4 = arith.constant 4 : index
    %c0_196 = arith.constant 0 : index
    %c0_197 = arith.constant 0 : index
    %157 = vector.load %arg5[%c4, %c0_196, %c0_197] : memref<5x16x1xf32, #tpu.memory_space<vmem>>, vector<1x16x1xf32>
    %158 = vector.shape_cast %157 : vector<1x16x1xf32> to vector<16x1xf32>
    %c4_198 = arith.constant 4 : index
    %c0_199 = arith.constant 0 : index
    %c0_200 = arith.constant 0 : index
    %159 = vector.load %arg6[%c4_198, %c0_199, %c0_200] : memref<5x16x1xf32, #tpu.memory_space<vmem>>, vector<1x16x1xf32>
    %160 = vector.shape_cast %159 : vector<1x16x1xf32> to vector<16x1xf32>
    %c0_201 = arith.constant 0 : index
    %c0_202 = arith.constant 0 : index
    %161 = vector.load %arg12[%c0_201, %c0_202] : memref<16x484xbf16, #tpu.memory_space<vmem>>, vector<16x461xbf16>
    %c0_203 = arith.constant 0 : index
    %c23_204 = arith.constant 23 : index
    %162 = vector.load %arg14[%c0_203, %c23_204] : memref<432x484xbf16, #tpu.memory_space<vmem>>, vector<16x461xbf16>
    tpu.vector_store %arg14[%c0_203, %c23_204], %161 {strides = array<i32>} : memref<432x484xbf16, #tpu.memory_space<vmem>>, vector<16x461xbf16>,
    %c0_205 = arith.constant 0 : index
    %c0_206 = arith.constant 0 : index
    %163 = vector.load %arg12[%c0_205, %c0_206] : memref<16x484xbf16, #tpu.memory_space<vmem>>, vector<16x462xbf16>
    %c16_207 = arith.constant 16 : index
    %c22_208 = arith.constant 22 : index
    %164 = vector.load %arg14[%c16_207, %c22_208] : memref<432x484xbf16, #tpu.memory_space<vmem>>, vector<16x462xbf16>
    tpu.vector_store %arg14[%c16_207, %c22_208], %163 {strides = array<i32>} : memref<432x484xbf16, #tpu.memory_space<vmem>>, vector<16x462xbf16>,
    %c0_209 = arith.constant 0 : index
    %c0_210 = arith.constant 0 : index
    %165 = vector.load %arg12[%c0_209, %c0_210] : memref<16x484xbf16, #tpu.memory_space<vmem>>, vector<16x463xbf16>
    %c32_211 = arith.constant 32 : index
    %c21_212 = arith.constant 21 : index
    %166 = vector.load %arg14[%c32_211, %c21_212] : memref<432x484xbf16, #tpu.memory_space<vmem>>, vector<16x463xbf16>
    tpu.vector_store %arg14[%c32_211, %c21_212], %165 {strides = array<i32>} : memref<432x484xbf16, #tpu.memory_space<vmem>>, vector<16x463xbf16>,
    %c0_213 = arith.constant 0 : index
    %c0_214 = arith.constant 0 : index
    %167 = vector.load %arg12[%c0_213, %c0_214] : memref<16x484xbf16, #tpu.memory_space<vmem>>, vector<16x483xbf16>
    %c48_215 = arith.constant 48 : index
    %c1_216 = arith.constant 1 : index
    %168 = vector.load %arg14[%c48_215, %c1_216] : memref<432x484xbf16, #tpu.memory_space<vmem>>, vector<16x483xbf16>
    tpu.vector_store %arg14[%c48_215, %c1_216], %167 {strides = array<i32>} : memref<432x484xbf16, #tpu.memory_space<vmem>>, vector<16x483xbf16>,
    %c0_217 = arith.constant 0 : index
    %c0_218 = arith.constant 0 : index
    %169 = vector.load %arg12[%c0_217, %c0_218] : memref<16x484xbf16, #tpu.memory_space<vmem>>, vector<16x484xbf16>
    %c64_219 = arith.constant 64 : index
    %c0_220 = arith.constant 0 : index
    %170 = vector.load %arg14[%c64_219, %c0_220] : memref<432x484xbf16, #tpu.memory_space<vmem>>, vector<16x484xbf16>
    tpu.vector_store %arg14[%c64_219, %c0_220], %169 {strides = array<i32>} : memref<432x484xbf16, #tpu.memory_space<vmem>>, vector<16x484xbf16>,
    %c0_221 = arith.constant 0 : index
    %c1_222 = arith.constant 1 : index
    %171 = vector.load %arg12[%c0_221, %c1_222] : memref<16x484xbf16, #tpu.memory_space<vmem>>, vector<16x483xbf16>
    %c80_223 = arith.constant 80 : index
    %c0_224 = arith.constant 0 : index
    %172 = vector.load %arg14[%c80_223, %c0_224] : memref<432x484xbf16, #tpu.memory_space<vmem>>, vector<16x483xbf16>
    tpu.vector_store %arg14[%c80_223, %c0_224], %171 {strides = array<i32>} : memref<432x484xbf16, #tpu.memory_space<vmem>>, vector<16x483xbf16>,
    %c0_225 = arith.constant 0 : index
    %c21_226 = arith.constant 21 : index
    %173 = vector.load %arg12[%c0_225, %c21_226] : memref<16x484xbf16, #tpu.memory_space<vmem>>, vector<16x463xbf16>
    %c96_227 = arith.constant 96 : index
    %c0_228 = arith.constant 0 : index
    %174 = vector.load %arg14[%c96_227, %c0_228] : memref<432x484xbf16, #tpu.memory_space<vmem>>, vector<16x463xbf16>
    tpu.vector_store %arg14[%c96_227, %c0_228], %173 {strides = array<i32>} : memref<432x484xbf16, #tpu.memory_space<vmem>>, vector<16x463xbf16>,
    %c0_229 = arith.constant 0 : index
    %c22_230 = arith.constant 22 : index
    %175 = vector.load %arg12[%c0_229, %c22_230] : memref<16x484xbf16, #tpu.memory_space<vmem>>, vector<16x462xbf16>
    %c112_231 = arith.constant 112 : index
    %c0_232 = arith.constant 0 : index
    %176 = vector.load %arg14[%c112_231, %c0_232] : memref<432x484xbf16, #tpu.memory_space<vmem>>, vector<16x462xbf16>
    tpu.vector_store %arg14[%c112_231, %c0_232], %175 {strides = array<i32>} : memref<432x484xbf16, #tpu.memory_space<vmem>>, vector<16x462xbf16>,
    %c0_233 = arith.constant 0 : index
    %c23_234 = arith.constant 23 : index
    %177 = vector.load %arg12[%c0_233, %c23_234] : memref<16x484xbf16, #tpu.memory_space<vmem>>, vector<16x461xbf16>
    %c128_235 = arith.constant 128 : index
    %c0_236 = arith.constant 0 : index
    %178 = vector.load %arg14[%c128_235, %c0_236] : memref<432x484xbf16, #tpu.memory_space<vmem>>, vector<16x461xbf16>
    tpu.vector_store %arg14[%c128_235, %c0_236], %177 {strides = array<i32>} : memref<432x484xbf16, #tpu.memory_space<vmem>>, vector<16x461xbf16>,
    %c0_237 = arith.constant 0 : index
    %c0_238 = arith.constant 0 : index
    %179 = vector.load %arg14[%c0_237, %c0_238] : memref<432x484xbf16, #tpu.memory_space<vmem>>, vector<144x484xbf16>
    %cst_239 = arith.constant dense<0.000000e+00> : vector<16x484xf32>
    %180 = tpu.matmul %156, %179, %cst_239 {dimension_numbers = #tpu.dot_dimension_numbers<[1], [0], [0], [1], [0, 0, 1, 1], [], []>} : vector<16x144xbf16>, vector<144x484xbf16>, vector<16x484xf32> -> vector<16x484xf32>
    %181 = vector.broadcast %158 : vector<16x1xf32> to vector<16x484xf32>
    %182 = arith.mulf %180, %181 : vector<16x484xf32>
    %183 = vector.broadcast %160 : vector<16x1xf32> to vector<16x484xf32>
    %184 = arith.addf %182, %183 : vector<16x484xf32>
    %cst_240 = arith.constant 0.000000e+00 : f32
    %185 = vector.shape_cast %2 : vector<1x484xi1> to vector<1x484xi1>
    %186 = vector.broadcast %185 : vector<1x484xi1> to vector<16x484xi1>
    %187 = vector.broadcast %cst_240 : f32 to vector<16x484xf32>
    %188 = arith.select %186, %184, %187 : vector<16x484xi1>, vector<16x484xf32>
    %189 = arith.truncf %188 : vector<16x484xf32> to vector<16x484xbf16>
    %c32_241 = arith.constant 32 : index
    %c0_242 = arith.constant 0 : index
    %190 = vector.load %arg13[%c32_241, %c0_242] : memref<48x484xbf16, #tpu.memory_space<vmem>>, vector<16x484xbf16>
    tpu.vector_store %arg13[%c32_241, %c0_242], %189 {strides = array<i32>} : memref<48x484xbf16, #tpu.memory_space<vmem>>, vector<16x484xbf16>,
    %c0_243 = arith.constant 0 : index
    %c0_244 = arith.constant 0 : index
    %191 = vector.load %arg4[%c0_243, %c0_244] : memref<8x432xbf16, #tpu.memory_space<vmem>>, vector<8x432xbf16>
    %c0_245 = arith.constant 0 : index
    %c0_246 = arith.constant 0 : index
    %192 = vector.load %arg7[%c0_245, %c0_246] : memref<8x1xf32, #tpu.memory_space<vmem>>, vector<8x1xf32>
    %c0_247 = arith.constant 0 : index
    %c0_248 = arith.constant 0 : index
    %193 = vector.load %arg8[%c0_247, %c0_248] : memref<8x1xf32, #tpu.memory_space<vmem>>, vector<8x1xf32>
    %c0_249 = arith.constant 0 : index
    %c0_250 = arith.constant 0 : index
    %194 = vector.load %arg13[%c0_249, %c0_250] : memref<48x484xbf16, #tpu.memory_space<vmem>>, vector<48x461xbf16>
    %c0_251 = arith.constant 0 : index
    %c23_252 = arith.constant 23 : index
    %195 = vector.load %arg14[%c0_251, %c23_252] : memref<432x484xbf16, #tpu.memory_space<vmem>>, vector<48x461xbf16>
    tpu.vector_store %arg14[%c0_251, %c23_252], %194 {strides = array<i32>} : memref<432x484xbf16, #tpu.memory_space<vmem>>, vector<48x461xbf16>,
    %c0_253 = arith.constant 0 : index
    %c0_254 = arith.constant 0 : index
    %196 = vector.load %arg13[%c0_253, %c0_254] : memref<48x484xbf16, #tpu.memory_space<vmem>>, vector<48x462xbf16>
    %c48_255 = arith.constant 48 : index
    %c22_256 = arith.constant 22 : index
    %197 = vector.load %arg14[%c48_255, %c22_256] : memref<432x484xbf16, #tpu.memory_space<vmem>>, vector<48x462xbf16>
    tpu.vector_store %arg14[%c48_255, %c22_256], %196 {strides = array<i32>} : memref<432x484xbf16, #tpu.memory_space<vmem>>, vector<48x462xbf16>,
    %c0_257 = arith.constant 0 : index
    %c0_258 = arith.constant 0 : index
    %198 = vector.load %arg13[%c0_257, %c0_258] : memref<48x484xbf16, #tpu.memory_space<vmem>>, vector<48x463xbf16>
    %c96_259 = arith.constant 96 : index
    %c21_260 = arith.constant 21 : index
    %199 = vector.load %arg14[%c96_259, %c21_260] : memref<432x484xbf16, #tpu.memory_space<vmem>>, vector<48x463xbf16>
    tpu.vector_store %arg14[%c96_259, %c21_260], %198 {strides = array<i32>} : memref<432x484xbf16, #tpu.memory_space<vmem>>, vector<48x463xbf16>,
    %c0_261 = arith.constant 0 : index
    %c0_262 = arith.constant 0 : index
    %200 = vector.load %arg13[%c0_261, %c0_262] : memref<48x484xbf16, #tpu.memory_space<vmem>>, vector<48x483xbf16>
    %c144 = arith.constant 144 : index
    %c1_263 = arith.constant 1 : index
    %201 = vector.load %arg14[%c144, %c1_263] : memref<432x484xbf16, #tpu.memory_space<vmem>>, vector<48x483xbf16>
    tpu.vector_store %arg14[%c144, %c1_263], %200 {strides = array<i32>} : memref<432x484xbf16, #tpu.memory_space<vmem>>, vector<48x483xbf16>,
    %c0_264 = arith.constant 0 : index
    %c0_265 = arith.constant 0 : index
    %202 = vector.load %arg13[%c0_264, %c0_265] : memref<48x484xbf16, #tpu.memory_space<vmem>>, vector<48x484xbf16>
    %c192 = arith.constant 192 : index
    %c0_266 = arith.constant 0 : index
    %203 = vector.load %arg14[%c192, %c0_266] : memref<432x484xbf16, #tpu.memory_space<vmem>>, vector<48x484xbf16>
    tpu.vector_store %arg14[%c192, %c0_266], %202 {strides = array<i32>} : memref<432x484xbf16, #tpu.memory_space<vmem>>, vector<48x484xbf16>,
    %c0_267 = arith.constant 0 : index
    %c1_268 = arith.constant 1 : index
    %204 = vector.load %arg13[%c0_267, %c1_268] : memref<48x484xbf16, #tpu.memory_space<vmem>>, vector<48x483xbf16>
    %c240 = arith.constant 240 : index
    %c0_269 = arith.constant 0 : index
    %205 = vector.load %arg14[%c240, %c0_269] : memref<432x484xbf16, #tpu.memory_space<vmem>>, vector<48x483xbf16>
    tpu.vector_store %arg14[%c240, %c0_269], %204 {strides = array<i32>} : memref<432x484xbf16, #tpu.memory_space<vmem>>, vector<48x483xbf16>,
    %c0_270 = arith.constant 0 : index
    %c21_271 = arith.constant 21 : index
    %206 = vector.load %arg13[%c0_270, %c21_271] : memref<48x484xbf16, #tpu.memory_space<vmem>>, vector<48x463xbf16>
    %c288 = arith.constant 288 : index
    %c0_272 = arith.constant 0 : index
    %207 = vector.load %arg14[%c288, %c0_272] : memref<432x484xbf16, #tpu.memory_space<vmem>>, vector<48x463xbf16>
    tpu.vector_store %arg14[%c288, %c0_272], %206 {strides = array<i32>} : memref<432x484xbf16, #tpu.memory_space<vmem>>, vector<48x463xbf16>,
    %c0_273 = arith.constant 0 : index
    %c22_274 = arith.constant 22 : index
    %208 = vector.load %arg13[%c0_273, %c22_274] : memref<48x484xbf16, #tpu.memory_space<vmem>>, vector<48x462xbf16>
    %c336 = arith.constant 336 : index
    %c0_275 = arith.constant 0 : index
    %209 = vector.load %arg14[%c336, %c0_275] : memref<432x484xbf16, #tpu.memory_space<vmem>>, vector<48x462xbf16>
    tpu.vector_store %arg14[%c336, %c0_275], %208 {strides = array<i32>} : memref<432x484xbf16, #tpu.memory_space<vmem>>, vector<48x462xbf16>,
    %c0_276 = arith.constant 0 : index
    %c23_277 = arith.constant 23 : index
    %210 = vector.load %arg13[%c0_276, %c23_277] : memref<48x484xbf16, #tpu.memory_space<vmem>>, vector<48x461xbf16>
    %c384 = arith.constant 384 : index
    %c0_278 = arith.constant 0 : index
    %211 = vector.load %arg14[%c384, %c0_278] : memref<432x484xbf16, #tpu.memory_space<vmem>>, vector<48x461xbf16>
    tpu.vector_store %arg14[%c384, %c0_278], %210 {strides = array<i32>} : memref<432x484xbf16, #tpu.memory_space<vmem>>, vector<48x461xbf16>,
    %c0_279 = arith.constant 0 : index
    %c0_280 = arith.constant 0 : index
    %212 = vector.load %arg14[%c0_279, %c0_280] : memref<432x484xbf16, #tpu.memory_space<vmem>>, vector<432x484xbf16>
    %cst_281 = arith.constant dense<0.000000e+00> : vector<8x484xf32>
    %213 = tpu.matmul %191, %212, %cst_281 {dimension_numbers = #tpu.dot_dimension_numbers<[1], [0], [0], [1], [0, 0, 1, 1], [], []>} : vector<8x432xbf16>, vector<432x484xbf16>, vector<8x484xf32> -> vector<8x484xf32>
    %214 = vector.broadcast %192 : vector<8x1xf32> to vector<8x484xf32>
    %215 = arith.mulf %213, %214 : vector<8x484xf32>
    %216 = vector.broadcast %193 : vector<8x1xf32> to vector<8x484xf32>
    %217 = arith.addf %215, %216 : vector<8x484xf32>
    %cst_282 = arith.constant 0.000000e+00 : f32
    %218 = vector.shape_cast %2 : vector<1x484xi1> to vector<1x484xi1>
    %219 = vector.broadcast %218 : vector<1x484xi1> to vector<8x484xi1>
    %220 = vector.broadcast %cst_282 : f32 to vector<8x484xf32>
    %221 = arith.select %219, %217, %220 : vector<8x484xi1>, vector<8x484xf32>
    %c0_283 = arith.constant 0 : index
    %c0_284 = arith.constant 0 : index
    %c0_285 = arith.constant 0 : index
    %222 = vector.load %arg10[%c0_283, %c0_284, %c0_285] : memref<1x8x484xf32, #tpu.memory_space<vmem>>, vector<1x8x484xf32>
    %223 = vector.shape_cast %222 : vector<1x8x484xf32> to vector<8x484xf32>
    %224 = vector.shape_cast %221 : vector<8x484xf32> to vector<1x8x484xf32>
    tpu.vector_store %arg10[%c0_283, %c0_284, %c0_285], %224 {strides = array<i32>} : memref<1x8x484xf32, #tpu.memory_space<vmem>>, vector<1x8x484xf32>,
    return
  }
  func.func @transform_0(%arg0: i32) -> (i32, i32, i32) {
    %c0_i32 = arith.constant 0 : i32
    %c0_i32_0 = arith.constant 0 : i32
    %c0_i32_1 = arith.constant 0 : i32
    return %arg0, %c0_i32, %c0_i32_0 : i32, i32, i32
  }
  func.func @transform_1(%arg0: i32) -> (i32, i32) {
    %c0_i32 = arith.constant 0 : i32
    %c0_i32_0 = arith.constant 0 : i32
    %c0_i32_1 = arith.constant 0 : i32
    return %c0_i32, %c0_i32_0 : i32, i32
  }
  func.func @transform_2(%arg0: i32) -> (i32, i32, i32) {
    %c0_i32 = arith.constant 0 : i32
    %c0_i32_0 = arith.constant 0 : i32
    %c0_i32_1 = arith.constant 0 : i32
    %c0_i32_2 = arith.constant 0 : i32
    return %c0_i32, %c0_i32_0, %c0_i32_1 : i32, i32, i32
  }
  func.func @transform_3(%arg0: i32) -> (i32, i32) {
    %c0_i32 = arith.constant 0 : i32
    %c0_i32_0 = arith.constant 0 : i32
    %c0_i32_1 = arith.constant 0 : i32
    return %c0_i32, %c0_i32_0 : i32, i32
  }
  func.func @transform_4(%arg0: i32) -> (i32, i32, i32) {
    %c0_i32 = arith.constant 0 : i32
    %c0_i32_0 = arith.constant 0 : i32
    %c0_i32_1 = arith.constant 0 : i32
    %c0_i32_2 = arith.constant 0 : i32
    return %c0_i32, %c0_i32_0, %c0_i32_1 : i32, i32, i32
  }
  func.func @transform_5(%arg0: i32) -> (i32, i32, i32) {
    %c0_i32 = arith.constant 0 : i32
    %c0_i32_0 = arith.constant 0 : i32
    %c0_i32_1 = arith.constant 0 : i32
    %c0_i32_2 = arith.constant 0 : i32
    return %c0_i32, %c0_i32_0, %c0_i32_1 : i32, i32, i32
  }
  func.func @transform_6(%arg0: i32) -> (i32, i32) {
    %c0_i32 = arith.constant 0 : i32
    %c0_i32_0 = arith.constant 0 : i32
    %c0_i32_1 = arith.constant 0 : i32
    return %c0_i32, %c0_i32_0 : i32, i32
  }
  func.func @transform_7(%arg0: i32) -> (i32, i32) {
    %c0_i32 = arith.constant 0 : i32
    %c0_i32_0 = arith.constant 0 : i32
    %c0_i32_1 = arith.constant 0 : i32
    return %c0_i32, %c0_i32_0 : i32, i32
  }
  func.func @transform_8(%arg0: i32) -> (i32, i32) {
    %c0_i32 = arith.constant 0 : i32
    %c0_i32_0 = arith.constant 0 : i32
    %c0_i32_1 = arith.constant 0 : i32
    return %c0_i32, %c0_i32_0 : i32, i32
  }
  func.func @transform_9(%arg0: i32) -> (i32, i32, i32) {
    %c0_i32 = arith.constant 0 : i32
    %c0_i32_0 = arith.constant 0 : i32
    %c0_i32_1 = arith.constant 0 : i32
    return %arg0, %c0_i32, %c0_i32_0 : i32, i32, i32
  }
}

</mosaic_0001>

<llo_original>
// kernel: bab_decoder_forward.1
$region0: #{bab_decoder_forward.1}
  #allocation0 [shape = 'u32[]', space=smem, size = 0x4, offset = 0x4, fixed_abs, tag = 'smem constant byte address 0x4 - core index']
  #allocation1 [shape = 'u32[144,128]{1,0:T(1,128)}', space=vmem, size = 0x12000, scoped, tag = 'internal scratch']
  #allocation2 [shape = 'bf16[16,484]{1,0:T(8,128)(2,1)}', space=vmem, size = 0x4000, scoped, tag = 'scratch operand']
  #allocation3 [shape = 'bf16[16,484]{1,0:T(8,128)(2,1)}', space=vmem, size = 0x4000, scoped, tag = 'scratch operand']
  #allocation4 [shape = 'bf16[48,484]{1,0:T(8,128)(2,1)}', space=vmem, size = 0xc000, scoped, tag = 'scratch operand']
  #allocation5 [shape = 'bf16[432,484]{1,0:T(8,128)(2,1)}', space=vmem, size = 0x6c000, scoped, tag = 'scratch operand']
  %s0 = inlined_call_operand.vmem [shape: bf16[2,16,484], index: 0, kind: input, shape index: {}]
  %s1 = inlined_call_operand.vmem [shape: bf16[16,144], index: 1, kind: input, shape index: {}]
  %s2 = inlined_call_operand.vmem [shape: bf16[4,16,144], index: 2, kind: input, shape index: {}]
  %s3 = inlined_call_operand.vmem [shape: bf16[8,432], index: 3, kind: input, shape index: {}]
  %s4 = inlined_call_operand.vmem [shape: f32[5,16,1], index: 4, kind: input, shape index: {}]
  %s5 = inlined_call_operand.vmem [shape: f32[5,16,1], index: 5, kind: input, shape index: {}]
  %s6 = inlined_call_operand.vmem [shape: f32[8,1], index: 6, kind: input, shape index: {}]
  %s7 = inlined_call_operand.vmem [shape: f32[8,1], index: 7, kind: input, shape index: {}]
  %s8 = inlined_call_operand.vmem [shape: f32[1,484], index: 8, kind: input, shape index: {}]
  %s9 = inlined_call_operand.vmem [shape: f32[2,8,484], index: 9, kind: output, shape index: {}]
  %s10 = sld [smem:[#allocation0]]
  $region69: #{bab_decoder_forward.1} parent=0
    _
  %s12 = ssub.s32 1, %s10
  %s13 = scalar_select 0, %s12, %s10
  loop: start=0, step=1, limit=4
  $region2: #{bab_decoder_forward.1} parent=0 // loop_pre_header
    _
  $region3: #{bab_decoder_forward.1} parent=0 // loop_header
    %s15 = sphi 0, %s19
    %p16 = scmp.ge.s32.totalorder %s15, 4
    %s25 = sphi 0, %s27
    %s28 = sphi 0, %s25
    %s29 = sphi 0, %s28
    %s45 = sphi 0, %s29
    %s49 = sphi 0, %s49
    %s51 = sphi 0, %s49
    %s52 = sphi 0, %s51
    %s66 = sphi 0, %s52
    %s70 = sphi 0, %s70
    %s72 = sphi 0, %s70
    %s73 = sphi 0, %s72
    %s87 = sphi 0, %s73
    %s91 = sphi 0, %s91
    %s93 = sphi 0, %s91
    %s94 = sphi 0, %s93
    %s108 = sphi 0, %s94
    %s112 = sphi 0, %s112
    %s114 = sphi 0, %s112
    %s115 = sphi 0, %s114
    %s129 = sphi 0, %s115
    %s133 = sphi 0, %s133
    %s135 = sphi 0, %s133
    %s136 = sphi 0, %s135
    %s150 = sphi 0, %s136
    %s154 = sphi 0, %s154
    %s156 = sphi 0, %s154
    %s157 = sphi 0, %s156
    %s171 = sphi 0, %s157
    %s175 = sphi 0, %s175
    %s177 = sphi 0, %s175
    %s178 = sphi 0, %s177
    %s192 = sphi 0, %s178
    %s196 = sphi 0, %s196
    %s198 = sphi 0, %s196
    %s199 = sphi 0, %s198
    %s213 = sphi 0, %s199
    %s219 = sphi 0, %s221
    %s222 = sphi 0, %s219
    %s223 = sphi 0, %s222
    %s239 = sphi 0, %s223
  $region4: #{bab_decoder_forward.1} parent=0 // loop_header_branch
    %18 = sbr.rel (%p16) target = $region8
  $region5: #{bab_decoder_forward.1} parent=0 // loop_body
    %s20 = ssub.s32 %s15, 1
    %s21 = ssub.s32 %s15, 2
    %s22 = sadd.s32 %s15, 1
    %s23 = ssub.s32 %s15, %s22
    %p24 = scmp.eq.s32.totalorder %s23, 0
    %s26 = sadd.s32 %s25, 1
    %s27 = scalar_select %p24, %s25, %s26
    %p30 = pneg %p24
    %p31 = scmp.eq.s32.totalorder %s15, 1
    %p32 = por %p30, %p31
    %p33 = scmp.ne.s32.totalorder %s25, %s28
    %p34 = scmp.eq.s32.totalorder %s15, 0
    %p35 = por %p33, %p34
    %p36 = scmp.ne.s32.totalorder %s25, %s28
    %p37 = scmp.eq.s32.totalorder %s20, 1
    %p38 = por %p36, %p37
    %p39 = scmp.ne.s32.totalorder %s28, %s29
    %p40 = scmp.eq.s32.totalorder %s20, 0
    %p41 = por %p39, %p40
    %p42 = scmp.ne.s32.totalorder %s28, %s29
    %p43 = scmp.eq.s32.totalorder %s21, 1
    %p44 = por %p42, %p43
    %p46 = scmp.ne.s32.totalorder %s29, %s45
    %p47 = scmp.eq.s32.totalorder %s21, 0
    %p48 = por %p46, %p47
    %s50 = sadd.s32 %s49, 1
    %p53 = scmp.eq.s32.totalorder %s15, 1
    %p54 = scmp.ne.s32.totalorder %s49, %s51
    %p55 = scmp.eq.s32.totalorder %s15, 0
    %p56 = por %p54, %p55
    %p57 = scmp.ne.s32.totalorder %s49, %s51
    %p58 = scmp.eq.s32.totalorder %s20, 1
    %p59 = por %p57, %p58
    %p60 = scmp.ne.s32.totalorder %s51, %s52
    %p61 = scmp.eq.s32.totalorder %s20, 0
    %p62 = por %p60, %p61
    %p63 = scmp.ne.s32.totalorder %s51, %s52
    %p64 = scmp.eq.s32.totalorder %s21, 1
    %p65 = por %p63, %p64
    %p67 = scmp.ne.s32.totalorder %s52, %s66
    %p68 = scmp.eq.s32.totalorder %s21, 0
    %p69 = por %p67, %p68
    %s71 = sadd.s32 %s70, 1
    %p74 = scmp.eq.s32.totalorder %s15, 1
    %p75 = scmp.ne.s32.totalorder %s70, %s72
    %p76 = scmp.eq.s32.totalorder %s15, 0
    %p77 = por %p75, %p76
    %p78 = scmp.ne.s32.totalorder %s70, %s72
    %p79 = scmp.eq.s32.totalorder %s20, 1
    %p80 = por %p78, %p79
    %p81 = scmp.ne.s32.totalorder %s72, %s73
    %p82 = scmp.eq.s32.totalorder %s20, 0
    %p83 = por %p81, %p82
    %p84 = scmp.ne.s32.totalorder %s72, %s73
    %p85 = scmp.eq.s32.totalorder %s21, 1
    %p86 = por %p84, %p85
    %p88 = scmp.ne.s32.totalorder %s73, %s87
    %p89 = scmp.eq.s32.totalorder %s21, 0
    %p90 = por %p88, %p89
    %s92 = sadd.s32 %s91, 1
    %p95 = scmp.eq.s32.totalorder %s15, 1
    %p96 = scmp.ne.s32.totalorder %s91, %s93
    %p97 = scmp.eq.s32.totalorder %s15, 0
    %p98 = por %p96, %p97
    %p99 = scmp.ne.s32.totalorder %s91, %s93
    %p100 = scmp.eq.s32.totalorder %s20, 1
    %p101 = por %p99, %p100
    %p102 = scmp.ne.s32.totalorder %s93, %s94
    %p103 = scmp.eq.s32.totalorder %s20, 0
    %p104 = por %p102, %p103
    %p105 = scmp.ne.s32.totalorder %s93, %s94
    %p106 = scmp.eq.s32.totalorder %s21, 1
    %p107 = por %p105, %p106
    %p109 = scmp.ne.s32.totalorder %s94, %s108
    %p110 = scmp.eq.s32.totalorder %s21, 0
    %p111 = por %p109, %p110
    %s113 = sadd.s32 %s112, 1
    %p116 = scmp.eq.s32.totalorder %s15, 1
    %p117 = scmp.ne.s32.totalorder %s112, %s114
    %p118 = scmp.eq.s32.totalorder %s15, 0
    %p119 = por %p117, %p118
    %p120 = scmp.ne.s32.totalorder %s112, %s114
    %p121 = scmp.eq.s32.totalorder %s20, 1
    %p122 = por %p120, %p121
    %p123 = scmp.ne.s32.totalorder %s114, %s115
    %p124 = scmp.eq.s32.totalorder %s20, 0
    %p125 = por %p123, %p124
    %p126 = scmp.ne.s32.totalorder %s114, %s115
    %p127 = scmp.eq.s32.totalorder %s21, 1
    %p128 = por %p126, %p127
    %p130 = scmp.ne.s32.totalorder %s115, %s129
    %p131 = scmp.eq.s32.totalorder %s21, 0
    %p132 = por %p130, %p131
    %s134 = sadd.s32 %s133, 1
    %p137 = scmp.eq.s32.totalorder %s15, 1
    %p138 = scmp.ne.s32.totalorder %s133, %s135
    %p139 = scmp.eq.s32.totalorder %s15, 0
    %p140 = por %p138, %p139
    %p141 = scmp.ne.s32.totalorder %s133, %s135
    %p142 = scmp.eq.s32.totalorder %s20, 1
    %p143 = por %p141, %p142
    %p144 = scmp.ne.s32.totalorder %s135, %s136
    %p145 = scmp.eq.s32.totalorder %s20, 0
    %p146 = por %p144, %p145
    %p147 = scmp.ne.s32.totalorder %s135, %s136
    %p148 = scmp.eq.s32.totalorder %s21, 1
    %p149 = por %p147, %p148
    %p151 = scmp.ne.s32.totalorder %s136, %s150
    %p152 = scmp.eq.s32.totalorder %s21, 0
    %p153 = por %p151, %p152
    %s155 = sadd.s32 %s154, 1
    %p158 = scmp.eq.s32.totalorder %s15, 1
    %p159 = scmp.ne.s32.totalorder %s154, %s156
    %p160 = scmp.eq.s32.totalorder %s15, 0
    %p161 = por %p159, %p160
    %p162 = scmp.ne.s32.totalorder %s154, %s156
    %p163 = scmp.eq.s32.totalorder %s20, 1
    %p164 = por %p162, %p163
    %p165 = scmp.ne.s32.totalorder %s156, %s157
    %p166 = scmp.eq.s32.totalorder %s20, 0
    %p167 = por %p165, %p166
    %p168 = scmp.ne.s32.totalorder %s156, %s157
    %p169 = scmp.eq.s32.totalorder %s21, 1
    %p170 = por %p168, %p169
    %p172 = scmp.ne.s32.totalorder %s157, %s171
    %p173 = scmp.eq.s32.totalorder %s21, 0
    %p174 = por %p172, %p173
    %s176 = sadd.s32 %s175, 1
    %p179 = scmp.eq.s32.totalorder %s15, 1
    %p180 = scmp.ne.s32.totalorder %s175, %s177
    %p181 = scmp.eq.s32.totalorder %s15, 0
    %p182 = por %p180, %p181
    %p183 = scmp.ne.s32.totalorder %s175, %s177
    %p184 = scmp.eq.s32.totalorder %s20, 1
    %p185 = por %p183, %p184
    %p186 = scmp.ne.s32.totalorder %s177, %s178
    %p187 = scmp.eq.s32.totalorder %s20, 0
    %p188 = por %p186, %p187
    %p189 = scmp.ne.s32.totalorder %s177, %s178
    %p190 = scmp.eq.s32.totalorder %s21, 1
    %p191 = por %p189, %p190
    %p193 = scmp.ne.s32.totalorder %s178, %s192
    %p194 = scmp.eq.s32.totalorder %s21, 0
    %p195 = por %p193, %p194
    %s197 = sadd.s32 %s196, 1
    %p200 = scmp.eq.s32.totalorder %s15, 1
    %p201 = scmp.ne.s32.totalorder %s196, %s198
    %p202 = scmp.eq.s32.totalorder %s15, 0
    %p203 = por %p201, %p202
    %p204 = scmp.ne.s32.totalorder %s196, %s198
    %p205 = scmp.eq.s32.totalorder %s20, 1
    %p206 = por %p204, %p205
    %p207 = scmp.ne.s32.totalorder %s198, %s199
    %p208 = scmp.eq.s32.totalorder %s20, 0
    %p209 = por %p207, %p208
    %p210 = scmp.ne.s32.totalorder %s198, %s199
    %p211 = scmp.eq.s32.totalorder %s21, 1
    %p212 = por %p210, %p211
    %p214 = scmp.ne.s32.totalorder %s199, %s213
    %p215 = scmp.eq.s32.totalorder %s21, 0
    %p216 = por %p214, %p215
    %s217 = ssub.s32 %s15, %s22
    %p218 = scmp.eq.s32.totalorder %s217, 0
    %s220 = sadd.s32 %s219, 1
    %s221 = scalar_select %p218, %s219, %s220
    %p224 = pneg %p218
    %p225 = scmp.eq.s32.totalorder %s15, 1
    %p226 = por %p224, %p225
    %p227 = scmp.ne.s32.totalorder %s219, %s222
    %p228 = scmp.eq.s32.totalorder %s15, 0
    %p229 = por %p227, %p228
    %p230 = scmp.ne.s32.totalorder %s219, %s222
    %p231 = scmp.eq.s32.totalorder %s20, 1
    %p232 = por %p230, %p231
    %p233 = scmp.ne.s32.totalorder %s222, %s223
    %p234 = scmp.eq.s32.totalorder %s20, 0
    %p235 = por %p233, %p234
    %p236 = scmp.ne.s32.totalorder %s222, %s223
    %p237 = scmp.eq.s32.totalorder %s21, 1
    %p238 = por %p236, %p237
    %p240 = scmp.ne.s32.totalorder %s223, %s239
    %p241 = scmp.eq.s32.totalorder %s21, 0
    %p242 = por %p240, %p241
    %p243 = scmp.le.s32.totalorder 1, %s15
    %p244 = scmp.lt.s32.totalorder %s15, 3
    %p245 = pnand %p243, %p244
    %p246 = pneg %p245
    // Predicated region
    $region9: #{bab_decoder_forward.1} parent=5 // pred_check
      _
    $region10: #{bab_decoder_forward.1} parent=5 // pred_check_branch
      %248 = sbr.rel (%p245) target = $region12
    $region11: #{bab_decoder_forward.1} parent=5 // pred_region
      %s249 = ssub.s32 %s15, 1
      // Predicated region
      $region13: #{bab_decoder_forward.1} parent=11 // pred_check
        %p250 = pneg %p62
      $region14: #{bab_decoder_forward.1} parent=11 // pred_check_branch
        %252 = sbr.rel (%p250) target = $region16
      $region15: #{bab_decoder_forward.1} parent=11 // pred_region
        _
      $region16: #{bab_decoder_forward.1} parent=11 // pred_fallthru
        _
      // Predicated region
      $region17: #{bab_decoder_forward.1} parent=11 // pred_check
        %p253 = pneg %p83
      $region18: #{bab_decoder_forward.1} parent=11 // pred_check_branch
        %255 = sbr.rel (%p253) target = $region20
      $region19: #{bab_decoder_forward.1} parent=11 // pred_region
        _
      $region20: #{bab_decoder_forward.1} parent=11 // pred_fallthru
        _
      // Predicated region
      $region21: #{bab_decoder_forward.1} parent=11 // pred_check
        %p256 = pneg %p104
      $region22: #{bab_decoder_forward.1} parent=11 // pred_check_branch
        %258 = sbr.rel (%p256) target = $region24
      $region23: #{bab_decoder_forward.1} parent=11 // pred_region
        _
      $region24: #{bab_decoder_forward.1} parent=11 // pred_fallthru
        _
      // Predicated region
      $region25: #{bab_decoder_forward.1} parent=11 // pred_check
        %p259 = pneg %p125
      $region26: #{bab_decoder_forward.1} parent=11 // pred_check_branch
        %261 = sbr.rel (%p259) target = $region28
      $region27: #{bab_decoder_forward.1} parent=11 // pred_region
        _
      $region28: #{bab_decoder_forward.1} parent=11 // pred_fallthru
        _
      // Predicated region
      $region29: #{bab_decoder_forward.1} parent=11 // pred_check
        %p262 = pneg %p146
      $region30: #{bab_decoder_forward.1} parent=11 // pred_check_branch
        %264 = sbr.rel (%p262) target = $region32
      $region31: #{bab_decoder_forward.1} parent=11 // pred_region
        _
      $region32: #{bab_decoder_forward.1} parent=11 // pred_fallthru
        _
      // Predicated region
      $region33: #{bab_decoder_forward.1} parent=11 // pred_check
        %p265 = pneg %p167
      $region34: #{bab_decoder_forward.1} parent=11 // pred_check_branch
        %267 = sbr.rel (%p265) target = $region36
      $region35: #{bab_decoder_forward.1} parent=11 // pred_region
        _
      $region36: #{bab_decoder_forward.1} parent=11 // pred_fallthru
        _
      // Predicated region
      $region37: #{bab_decoder_forward.1} parent=11 // pred_check
        %p268 = pneg %p188
      $region38: #{bab_decoder_forward.1} parent=11 // pred_check_branch
        %270 = sbr.rel (%p268) target = $region40
      $region39: #{bab_decoder_forward.1} parent=11 // pred_region
        _
      $region40: #{bab_decoder_forward.1} parent=11 // pred_fallthru
        _
      // Predicated region
      $region41: #{bab_decoder_forward.1} parent=11 // pred_check
        %p271 = pneg %p209
      $region42: #{bab_decoder_forward.1} parent=11 // pred_check_branch
        %273 = sbr.rel (%p271) target = $region44
      $region43: #{bab_decoder_forward.1} parent=11 // pred_region
        _
      $region44: #{bab_decoder_forward.1} parent=11 // pred_fallthru
        _
    $region12: #{bab_decoder_forward.1} parent=5 // pred_fallthru
      _
    %p274 = scmp.lt.s32.totalorder %s15, 2
    // Predicated region
    $region45: #{bab_decoder_forward.1} parent=5 // pred_check
      %p275 = pneg %p274
    $region46: #{bab_decoder_forward.1} parent=5 // pred_check_branch
      %277 = sbr.rel (%p275) target = $region48
    $region47: #{bab_decoder_forward.1} parent=5 // pred_region
      // Predicated region
      $region49: #{bab_decoder_forward.1} parent=47 // pred_check
        %p278 = pneg %p35
      $region50: #{bab_decoder_forward.1} parent=47 // pred_check_branch
        %280 = sbr.rel (%p278) target = $region52
      $region51: #{bab_decoder_forward.1} parent=47 // pred_region
        %p281 = scmp.lt.s32.totalorder %s15, 1
        %s282 = scalar_select %p281, %s15, 1
        %s283 = smul.addr %s282, 8
        %s284 = smul.addr %s283, 4
        %s285 = scalar_lea.vmem %s0, %s284
      $region52: #{bab_decoder_forward.1} parent=47 // pred_fallthru
        _
    $region48: #{bab_decoder_forward.1} parent=5 // pred_fallthru
      _
    %p286 = scmp.le.s32.totalorder 1, %s15
    %p287 = scmp.lt.s32.totalorder %s15, 3
    %p288 = pnand %p286, %p287
    %p289 = pneg %p288
    // Predicated region
    $region53: #{bab_decoder_forward.1} parent=5 // pred_check
      _
    $region54: #{bab_decoder_forward.1} parent=5 // pred_check_branch
      %291 = sbr.rel (%p288) target = $region56
    $region55: #{bab_decoder_forward.1} parent=5 // pred_region
      %s292 = ssub.s32 %s15, 1
      %p293 = scmp.lt.s32.totalorder %s20, 1
      %s294 = scalar_select %p293, %s20, 1
      %s295 = smul.addr %s294, 8
      %s296 = smul.addr %s295, 4
      %s297 = scalar_lea.vmem %s0, %s296
      %p298 = pneg %p41
      %p299 = pneg %p38
      %p300 = pneg %p62
      %p301 = pneg %p59
      %p302 = pneg %p83
      %p303 = pneg %p80
      %p304 = pneg %p104
      %p305 = pneg %p101
      %p306 = pneg %p125
      %p307 = pneg %p122
      %p308 = pneg %p146
      %p309 = pneg %p143
      %p310 = pneg %p167
      %p311 = pneg %p164
      %p312 = pneg %p188
      %p313 = pneg %p185
      %p314 = pneg %p209
      %p315 = pneg %p206
      %p316 = pneg %p235
      %p317 = pneg %p232
      %p318 = scmp.lt.s32.totalorder %s20, 1
      %s319 = scalar_select %p318, %s20, 1
      %s320 = smul.addr %s319, 4
      %s321 = smul.addr %s320, 8
      %s322 = scalar_lea.vmem %s9, %s321
      %p323 = scmp.lt.s32.totalorder %s20, 1
      %s324 = scalar_select %p323, %s20, 1
      %s325 = smul.addr %s324, 8
      %s326 = smul.addr %s325, 4
      %s327 = scalar_lea.vmem %s0, %s326
      %p328 = scmp.lt.s32.totalorder %s20, 1
      %s329 = scalar_select %p328, %s20, 1
      %s330 = smul.addr %s329, 4
      %s331 = smul.addr %s330, 8
      %s332 = scalar_lea.vmem %s9, %s331
      %v334 = vld [vmem:[%s8] sm:$0xf]
      %vm335 = vcmp.gt.f32.partialorder %v334, 0.5
      %v336 = vld [vmem:[%s1] sm:$0xff]
      %v337 = vld [vmem:[%s1 + $0x8] sm:$0xff]
      %v338 = vld [vmem:[%s4] sm:$0xff]
      %v339 = vld [vmem:[%s4 + $0x8] sm:$0xff]
      %v340 = vld [vmem:[%s5] sm:$0xff]
      %v341 = vld [vmem:[%s5 + $0x8] sm:$0xff]
      %v342 = vld [vmem:[%s327] sm:$0xff]
      %v343 = vld [vmem:[%s327 + $0x8] sm:$0xff]
      %v344 = vld [vmem:[%s327 + $0x10] sm:$0xff]
      %v345 = vld [vmem:[%s327 + $0x18] sm:$0xff]
      %350 = vrot.lane.b32.xlu0 %v342, 23
      %v351 = vpop.permute.xlu0 %350
      %352 = vrot.lane.b32.xlu0 %v343, 23
      %v353 = vpop.permute.xlu0 %352
      %354 = vrot.lane.b32.xlu0 %v344, 23
      %v355 = vpop.permute.xlu0 %354
      %356 = vrot.lane.b32.xlu0 %v345, 23
      %v357 = vpop.permute.xlu0 %356
      %v358 = vrot.slane %v351, 4
      %v359 = vrot.slane %v353, 4
      %v360 = vrot.slane %v355, 4
      %v361 = vrot.slane %v357, 4
      %vm362 = vcmask 187392
      %v363 = vsel %vm362, %v358, %v351
      %vm364 = vcmask 1043456
      %v365 = vsel %vm364, %v358, %v359
      %v366 = vsel %vm362, %v365, %v353
      %v367 = vsel %vm362, %v360, %v355
      %v368 = vsel %vm364, %v360, %v361
      %v369 = vsel %vm362, %v368, %v357
      %vm374 = vcmask 1043640
      %vm375 = vcmask 1047556
      %vm376 = vmor %vm375, %vm374
      %377 = vst.msk [vmem:[#allocation5] sm:$0xff] %vm376, %v363
      %vm378 = vcmask 1043456
      %vm379 = vcmask 818180
      %vm380 = vmor %vm379, %vm378
      %381 = vst.msk [vmem:[#allocation5 + $0x8] sm:$0xff] %vm380, %v366
      %382 = vst.msk [vmem:[#allocation5 + $0x10] sm:$0xff] %vm376, %v367
      %383 = vst.msk [vmem:[#allocation5 + $0x18] sm:$0xff] %vm380, %v369
      %v384 = vld [vmem:[%s327] sm:$0xff]
      %v385 = vld [vmem:[%s327 + $0x8] sm:$0xff]
      %v386 = vld [vmem:[%s327 + $0x10] sm:$0xff]
      %v387 = vld [vmem:[%s327 + $0x18] sm:$0xff]
      %392 = vrot.lane.b32.xlu0 %v384, 22
      %v393 = vpop.permute.xlu0 %392
      %394 = vrot.lane.b32.xlu0 %v385, 22
      %v395 = vpop.permute.xlu0 %394
      %396 = vrot.lane.b32.xlu0 %v386, 22
      %v397 = vpop.permute.xlu0 %396
      %398 = vrot.lane.b32.xlu0 %v387, 22
      %v399 = vpop.permute.xlu0 %398
      %v400 = vrot.slane %v393, 4
      %v401 = vrot.slane %v395, 4
      %v402 = vrot.slane %v397, 4
      %v403 = vrot.slane %v399, 4
      %vm404 = vcmask 179200
      %v405 = vsel %vm404, %v400, %v393
      %v406 = vsel %vm364, %v400, %v401
      %v407 = vsel %vm404, %v406, %v395
      %v408 = vsel %vm404, %v402, %v397
      %v409 = vsel %vm364, %v402, %v403
      %v410 = vsel %vm404, %v409, %v399
      %vm415 = vcmask 1043632
      %vm416 = vmor %vm375, %vm415
      %417 = vst.msk [vmem:[#allocation5 + $0x20] sm:$0xff] %vm416, %v405
      %418 = vst.msk [vmem:[#allocation5 + $0x28] sm:$0xff] %vm380, %v407
      %419 = vst.msk [vmem:[#allocation5 + $0x30] sm:$0xff] %vm416, %v408
      %420 = vst.msk [vmem:[#allocation5 + $0x38] sm:$0xff] %vm380, %v410
      %v421 = vld [vmem:[%s327] sm:$0xff]
      %v422 = vld [vmem:[%s327 + $0x8] sm:$0xff]
      %v423 = vld [vmem:[%s327 + $0x10] sm:$0xff]
      %v424 = vld [vmem:[%s327 + $0x18] sm:$0xff]
      %429 = vrot.lane.b32.xlu0 %v421, 21
      %v430 = vpop.permute.xlu0 %429
      %431 = vrot.lane.b32.xlu0 %v422, 21
      %v432 = vpop.permute.xlu0 %431
      %433 = vrot.lane.b32.xlu0 %v423, 21
      %v434 = vpop.permute.xlu0 %433
      %435 = vrot.lane.b32.xlu0 %v424, 21
      %v436 = vpop.permute.xlu0 %435
      %v437 = vrot.slane %v430, 4
      %v438 = vrot.slane %v432, 4
      %v439 = vrot.slane %v434, 4
      %v440 = vrot.slane %v436, 4
      %vm441 = vcmask 171008
      %v442 = vsel %vm441, %v437, %v430
      %v443 = vsel %vm364, %v437, %v438
      %v444 = vsel %vm441, %v443, %v432
      %v445 = vsel %vm441, %v439, %v434
      %v446 = vsel %vm364, %v439, %v440
      %v447 = vsel %vm441, %v446, %v436
      %vm452 = vcmask 1043624
      %vm453 = vmor %vm375, %vm452
      %454 = vst.msk [vmem:[#allocation5 + $0x40] sm:$0xff] %vm453, %v442
      %455 = vst.msk [vmem:[#allocation5 + $0x48] sm:$0xff] %vm380, %v444
      %456 = vst.msk [vmem:[#allocation5 + $0x50] sm:$0xff] %vm453, %v445
      %457 = vst.msk [vmem:[#allocation5 + $0x58] sm:$0xff] %vm380, %v447
      %v458 = vld [vmem:[%s327] sm:$0xff]
      %v459 = vld [vmem:[%s327 + $0x8] sm:$0xff]
      %v460 = vld [vmem:[%s327 + $0x10] sm:$0xff]
      %v461 = vld [vmem:[%s327 + $0x18] sm:$0xff]
      %466 = vrot.lane.b32.xlu0 %v458, 1
      %v467 = vpop.permute.xlu0 %466
      %468 = vrot.lane.b32.xlu0 %v459, 1
      %v469 = vpop.permute.xlu0 %468
      %470 = vrot.lane.b32.xlu0 %v460, 1
      %v471 = vpop.permute.xlu0 %470
      %472 = vrot.lane.b32.xlu0 %v461, 1
      %v473 = vpop.permute.xlu0 %472
      %v474 = vrot.slane %v467, 4
      %v475 = vrot.slane %v469, 4
      %v476 = vrot.slane %v471, 4
      %v477 = vrot.slane %v473, 4
      %vm478 = vcmask 7168
      %v479 = vsel %vm478, %v474, %v467
      %v480 = vsel %vm364, %v474, %v475
      %v481 = vsel %vm478, %v480, %v469
      %v482 = vsel %vm478, %v476, %v471
      %v483 = vsel %vm364, %v476, %v477
      %v484 = vsel %vm478, %v483, %v473
      %vm489 = vcmask 1043464
      %vm490 = vmor %vm375, %vm489
      %491 = vst.msk [vmem:[#allocation5 + $0x60] sm:$0xff] %vm490, %v479
      %492 = vst.msk [vmem:[#allocation5 + $0x68] sm:$0xff] %vm380, %v481
      %493 = vst.msk [vmem:[#allocation5 + $0x70] sm:$0xff] %vm490, %v482
      %494 = vst.msk [vmem:[#allocation5 + $0x78] sm:$0xff] %vm380, %v484
      %v495 = vld [vmem:[%s327] sm:$0xff]
      %v496 = vld [vmem:[%s327 + $0x8] sm:$0xff]
      %v497 = vld [vmem:[%s327 + $0x10] sm:$0xff]
      %v498 = vld [vmem:[%s327 + $0x18] sm:$0xff]
      %499 = vst [vmem:[#allocation5 + $0x80] sm:$0xff] %v495
      %500 = vst.msk [vmem:[#allocation5 + $0x88] sm:$0xff] %vm380, %v496
      %501 = vst [vmem:[#allocation5 + $0x90] sm:$0xff] %v497
      %502 = vst.msk [vmem:[#allocation5 + $0x98] sm:$0xff] %vm380, %v498
      %v503 = vld [vmem:[%s327] sm:$0xff]
      %v504 = vld [vmem:[%s327 + $0x8] sm:$0xff]
      %v505 = vld [vmem:[%s327 + $0x10] sm:$0xff]
      %v506 = vld [vmem:[%s327 + $0x18] sm:$0xff]
      %511 = vrot.lane.b32.xlu0 %v503, 127
      %v512 = vpop.permute.xlu0 %511
      %513 = vrot.lane.b32.xlu0 %v504, 127
      %v514 = vpop.permute.xlu0 %513
      %515 = vrot.lane.b32.xlu0 %v505, 127
      %v516 = vpop.permute.xlu0 %515
      %517 = vrot.lane.b32.xlu0 %v506, 127
      %v518 = vpop.permute.xlu0 %517
      %v519 = vrot.slane %v512, 4
      %v520 = vrot.slane %v514, 4
      %v521 = vrot.slane %v516, 4
      %v522 = vrot.slane %v518, 4
      %v523 = vsel %vm364, %v519, %v520
      %vm524 = vcmask 1039360
      %v525 = vsel %vm524, %v512, %v523
      %v526 = vsel %vm524, %v514, %v520
      %v527 = vsel %vm364, %v521, %v522
      %v528 = vsel %vm524, %v516, %v527
      %v529 = vsel %vm524, %v518, %v522
      %534 = vst [vmem:[#allocation5 + $0xa0] sm:$0xff] %v525
      %vm535 = vcmask 809988
      %vm536 = vmor %vm535, %vm378
      %537 = vst.msk [vmem:[#allocation5 + $0xa8] sm:$0xff] %vm536, %v526
      %538 = vst [vmem:[#allocation5 + $0xb0] sm:$0xff] %v528
      %539 = vst.msk [vmem:[#allocation5 + $0xb8] sm:$0xff] %vm536, %v529
      %v540 = vld [vmem:[%s327] sm:$0xff]
      %v541 = vld [vmem:[%s327 + $0x8] sm:$0xff]
      %v542 = vld [vmem:[%s327 + $0x10] sm:$0xff]
      %v543 = vld [vmem:[%s327 + $0x18] sm:$0xff]
      %548 = vrot.lane.b32.xlu0 %v540, 107
      %v549 = vpop.permute.xlu0 %548
      %550 = vrot.lane.b32.xlu0 %v541, 107
      %v551 = vpop.permute.xlu0 %550
      %552 = vrot.lane.b32.xlu0 %v542, 107
      %v553 = vpop.permute.xlu0 %552
      %554 = vrot.lane.b32.xlu0 %v543, 107
      %v555 = vpop.permute.xlu0 %554
      %v556 = vrot.slane %v549, 4
      %v557 = vrot.slane %v551, 4
      %v558 = vrot.slane %v553, 4
      %v559 = vrot.slane %v555, 4
      %v560 = vsel %vm364, %v556, %v557
      %vm561 = vcmask 875520
      %v562 = vsel %vm561, %v549, %v560
      %v563 = vsel %vm561, %v551, %v557
      %v564 = vsel %vm364, %v558, %v559
      %v565 = vsel %vm561, %v553, %v564
      %v566 = vsel %vm561, %v555, %v559
      %571 = vst [vmem:[#allocation5 + $0xc0] sm:$0xff] %v562
      %vm572 = vcmask 646148
      %vm573 = vmor %vm572, %vm378
      %574 = vst.msk [vmem:[#allocation5 + $0xc8] sm:$0xff] %vm573, %v563
      %575 = vst [vmem:[#allocation5 + $0xd0] sm:$0xff] %v565
      %576 = vst.msk [vmem:[#allocation5 + $0xd8] sm:$0xff] %vm573, %v566
      %v577 = vld [vmem:[%s327] sm:$0xff]
      %v578 = vld [vmem:[%s327 + $0x8] sm:$0xff]
      %v579 = vld [vmem:[%s327 + $0x10] sm:$0xff]
      %v580 = vld [vmem:[%s327 + $0x18] sm:$0xff]
      %585 = vrot.lane.b32.xlu0 %v577, 106
      %v586 = vpop.permute.xlu0 %585
      %587 = vrot.lane.b32.xlu0 %v578, 106
      %v588 = vpop.permute.xlu0 %587
      %589 = vrot.lane.b32.xlu0 %v579, 106
      %v590 = vpop.permute.xlu0 %589
      %591 = vrot.lane.b32.xlu0 %v580, 106
      %v592 = vpop.permute.xlu0 %591
      %v593 = vrot.slane %v586, 4
      %v594 = vrot.slane %v588, 4
      %v595 = vrot.slane %v590, 4
      %v596 = vrot.slane %v592, 4
      %v597 = vsel %vm364, %v593, %v594
      %vm598 = vcmask 867328
      %v599 = vsel %vm598, %v586, %v597
      %v600 = vsel %vm598, %v588, %v594
      %v601 = vsel %vm364, %v595, %v596
      %v602 = vsel %vm598, %v590, %v601
      %v603 = vsel %vm598, %v592, %v596
      %608 = vst [vmem:[#allocation5 + $0xe0] sm:$0xff] %v599
      %vm609 = vcmask 637956
      %vm610 = vmor %vm609, %vm378
      %611 = vst.msk [vmem:[#allocation5 + $0xe8] sm:$0xff] %vm610, %v600
      %612 = vst [vmem:[#allocation5 + $0xf0] sm:$0xff] %v602
      %613 = vst.msk [vmem:[#allocation5 + $0xf8] sm:$0xff] %vm610, %v603
      %v614 = vld [vmem:[%s327] sm:$0xff]
      %v615 = vld [vmem:[%s327 + $0x8] sm:$0xff]
      %v616 = vld [vmem:[%s327 + $0x10] sm:$0xff]
      %v617 = vld [vmem:[%s327 + $0x18] sm:$0xff]
      %622 = vrot.lane.b32.xlu0 %v614, 105
      %v623 = vpop.permute.xlu0 %622
      %624 = vrot.lane.b32.xlu0 %v615, 105
      %v625 = vpop.permute.xlu0 %624
      %626 = vrot.lane.b32.xlu0 %v616, 105
      %v627 = vpop.permute.xlu0 %626
      %628 = vrot.lane.b32.xlu0 %v617, 105
      %v629 = vpop.permute.xlu0 %628
      %v630 = vrot.slane %v623, 4
      %v631 = vrot.slane %v625, 4
      %v632 = vrot.slane %v627, 4
      %v633 = vrot.slane %v629, 4
      %v634 = vsel %vm364, %v630, %v631
      %vm635 = vcmask 859136
      %v636 = vsel %vm635, %v623, %v634
      %v637 = vsel %vm635, %v625, %v631
      %v638 = vsel %vm364, %v632, %v633
      %v639 = vsel %vm635, %v627, %v638
      %v640 = vsel %vm635, %v629, %v633
      %645 = vst [vmem:[#allocation5 + $0x100] sm:$0xff] %v636
      %vm646 = vcmask 629764
      %vm647 = vmor %vm646, %vm378
      %648 = vst.msk [vmem:[#allocation5 + $0x108] sm:$0xff] %vm647, %v637
      %649 = vst [vmem:[#allocation5 + $0x110] sm:$0xff] %v639
      %650 = vst.msk [vmem:[#allocation5 + $0x118] sm:$0xff] %vm647, %v640
      %v651 = vld [vmem:[#allocation5] sm:$0xff]
      %v652 = vld [vmem:[#allocation5 + $0x8] sm:$0xff]
      %v653 = vld [vmem:[#allocation5 + $0x10] sm:$0xff]
      %v654 = vld [vmem:[#allocation5 + $0x18] sm:$0xff]
      %v655 = vld [vmem:[#allocation5 + $0x20] sm:$0xff]
      %v656 = vld [vmem:[#allocation5 + $0x28] sm:$0xff]
      %v657 = vld [vmem:[#allocation5 + $0x30] sm:$0xff]
      %v658 = vld [vmem:[#allocation5 + $0x38] sm:$0xff]
      %v659 = vld [vmem:[#allocation5 + $0x40] sm:$0xff]
      %v660 = vld [vmem:[#allocation5 + $0x48] sm:$0xff]
      %v661 = vld [vmem:[#allocation5 + $0x50] sm:$0xff]
      %v662 = vld [vmem:[#allocation5 + $0x58] sm:$0xff]
      %v663 = vld [vmem:[#allocation5 + $0x60] sm:$0xff]
      %v664 = vld [vmem:[#allocation5 + $0x68] sm:$0xff]
      %v665 = vld [vmem:[#allocation5 + $0x70] sm:$0xff]
      %v666 = vld [vmem:[#allocation5 + $0x78] sm:$0xff]
      %v667 = vld [vmem:[#allocation5 + $0x80] sm:$0xff]
      %v668 = vld [vmem:[#allocation5 + $0x88] sm:$0xff]
      %v669 = vld [vmem:[#allocation5 + $0x90] sm:$0xff]
      %v670 = vld [vmem:[#allocation5 + $0x98] sm:$0xff]
      %v671 = vld [vmem:[#allocation5 + $0xa0] sm:$0xff]
      %v672 = vld [vmem:[#allocation5 + $0xa8] sm:$0xff]
      %v673 = vld [vmem:[#allocation5 + $0xb0] sm:$0xff]
      %v674 = vld [vmem:[#allocation5 + $0xb8] sm:$0xff]
      %v675 = vld [vmem:[#allocation5 + $0xc0] sm:$0xff]
      %v676 = vld [vmem:[#allocation5 + $0xc8] sm:$0xff]
      %v677 = vld [vmem:[#allocation5 + $0xd0] sm:$0xff]
      %v678 = vld [vmem:[#allocation5 + $0xd8] sm:$0xff]
      %v679 = vld [vmem:[#allocation5 + $0xe0] sm:$0xff]
      %v680 = vld [vmem:[#allocation5 + $0xe8] sm:$0xff]
      %v681 = vld [vmem:[#allocation5 + $0xf0] sm:$0xff]
      %v682 = vld [vmem:[#allocation5 + $0xf8] sm:$0xff]
      %v683 = vld [vmem:[#allocation5 + $0x100] sm:$0xff]
      %v684 = vld [vmem:[#allocation5 + $0x108] sm:$0xff]
      %v685 = vld [vmem:[#allocation5 + $0x110] sm:$0xff]
      %v686 = vld [vmem:[#allocation5 + $0x118] sm:$0xff]
      %v689 = vunpack.c.l.b16 %v336
      %v690 = vunpack.c.h.b16 %v336
      %v691 = vunpack.c.l.b16 %v337
      %v692 = vunpack.c.h.b16 %v337
      %v693 = vpack.c.b16 %v691, %v689
      %v694 = vpack.c.b16 %v692, %v690
      %v732 = vunpack.c.l.b16 %v651
      %v733 = vunpack.c.h.b16 %v651
      %v734 = vunpack.c.l.b16 %v652
      %v735 = vunpack.c.h.b16 %v652
      %v736 = vunpack.c.l.b16 %v653
      %v737 = vunpack.c.h.b16 %v653
      %v738 = vunpack.c.l.b16 %v654
      %v739 = vunpack.c.h.b16 %v654
      %v740 = vunpack.c.l.b16 %v655
      %v741 = vunpack.c.h.b16 %v655
      %v742 = vunpack.c.l.b16 %v656
      %v743 = vunpack.c.h.b16 %v656
      %v744 = vunpack.c.l.b16 %v657
      %v745 = vunpack.c.h.b16 %v657
      %v746 = vunpack.c.l.b16 %v658
      %v747 = vunpack.c.h.b16 %v658
      %v748 = vunpack.c.l.b16 %v659
      %v749 = vunpack.c.h.b16 %v659
      %v750 = vunpack.c.l.b16 %v660
      %v751 = vunpack.c.h.b16 %v660
      %v752 = vunpack.c.l.b16 %v661
      %v753 = vunpack.c.h.b16 %v661
      %v754 = vunpack.c.l.b16 %v662
      %v755 = vunpack.c.h.b16 %v662
      %v756 = vunpack.c.l.b16 %v663
      %v757 = vunpack.c.h.b16 %v663
      %v758 = vunpack.c.l.b16 %v664
      %v759 = vunpack.c.h.b16 %v664
      %v760 = vunpack.c.l.b16 %v665
      %v761 = vunpack.c.h.b16 %v665
      %v762 = vunpack.c.l.b16 %v666
      %v763 = vunpack.c.h.b16 %v666
      %v764 = vunpack.c.l.b16 %v667
      %v765 = vunpack.c.h.b16 %v667
      %v766 = vunpack.c.l.b16 %v668
      %v767 = vunpack.c.h.b16 %v668
      %v768 = vunpack.c.l.b16 %v669
      %v769 = vunpack.c.h.b16 %v669
      %v770 = vunpack.c.l.b16 %v670
      %v771 = vunpack.c.h.b16 %v670
      %v772 = vunpack.c.l.b16 %v671
      %v773 = vunpack.c.h.b16 %v671
      %v774 = vunpack.c.l.b16 %v672
      %v775 = vunpack.c.h.b16 %v672
      %v776 = vunpack.c.l.b16 %v673
      %v777 = vunpack.c.h.b16 %v673
      %v778 = vunpack.c.l.b16 %v674
      %v779 = vunpack.c.h.b16 %v674
      %v780 = vunpack.c.l.b16 %v675
      %v781 = vunpack.c.h.b16 %v675
      %v782 = vunpack.c.l.b16 %v676
      %v783 = vunpack.c.h.b16 %v676
      %v784 = vunpack.c.l.b16 %v677
      %v785 = vunpack.c.h.b16 %v677
      %v786 = vunpack.c.l.b16 %v678
      %v787 = vunpack.c.h.b16 %v678
      %v788 = vunpack.c.l.b16 %v679
      %v789 = vunpack.c.h.b16 %v679
      %v790 = vunpack.c.l.b16 %v680
      %v791 = vunpack.c.h.b16 %v680
      %v792 = vunpack.c.l.b16 %v681
      %v793 = vunpack.c.h.b16 %v681
      %v794 = vunpack.c.l.b16 %v682
      %v795 = vunpack.c.h.b16 %v682
      %v796 = vunpack.c.l.b16 %v683
      %v797 = vunpack.c.h.b16 %v683
      %v798 = vunpack.c.l.b16 %v684
      %v799 = vunpack.c.h.b16 %v684
      %v800 = vunpack.c.l.b16 %v685
      %v801 = vunpack.c.h.b16 %v685
      %v802 = vunpack.c.l.b16 %v686
      %v803 = vunpack.c.h.b16 %v686
      %v804 = vpack.c.b16 %v736, %v732
      %v805 = vpack.c.b16 %v737, %v733
      %v806 = vpack.c.b16 %v738, %v734
      %v807 = vpack.c.b16 %v739, %v735
      %v808 = vpack.c.b16 %v744, %v740
      %v809 = vpack.c.b16 %v745, %v741
      %v810 = vpack.c.b16 %v746, %v742
      %v811 = vpack.c.b16 %v747, %v743
      %v812 = vpack.c.b16 %v752, %v748
      %v813 = vpack.c.b16 %v753, %v749
      %v814 = vpack.c.b16 %v754, %v750
      %v815 = vpack.c.b16 %v755, %v751
      %v816 = vpack.c.b16 %v760, %v756
      %v817 = vpack.c.b16 %v761, %v757
      %v818 = vpack.c.b16 %v762, %v758
      %v819 = vpack.c.b16 %v763, %v759
      %v820 = vpack.c.b16 %v768, %v764
      %v821 = vpack.c.b16 %v769, %v765
      %v822 = vpack.c.b16 %v770, %v766
      %v823 = vpack.c.b16 %v771, %v767
      %v824 = vpack.c.b16 %v776, %v772
      %v825 = vpack.c.b16 %v777, %v773
      %v826 = vpack.c.b16 %v778, %v774
      %v827 = vpack.c.b16 %v779, %v775
      %v828 = vpack.c.b16 %v784, %v780
      %v829 = vpack.c.b16 %v785, %v781
      %v830 = vpack.c.b16 %v786, %v782
      %v831 = vpack.c.b16 %v787, %v783
      %v832 = vpack.c.b16 %v792, %v788
      %v833 = vpack.c.b16 %v793, %v789
      %v834 = vpack.c.b16 %v794, %v790
      %v835 = vpack.c.b16 %v795, %v791
      %v836 = vpack.c.b16 %v800, %v796
      %v837 = vpack.c.b16 %v801, %v797
      %v838 = vpack.c.b16 %v802, %v798
      %v839 = vpack.c.b16 %v803, %v799
      %vm876 = vcmask 130048
      %v878 = vsel %vm876, %v694, 0
      %880 = vmatprep.subr.bf16.mxu0 %v833
      %881 = vmatpush1.bf16.msra.mxu0 %v832
      %882 = vmatprep.subr.bf16.mxu0 %v829
      %883 = vmatpush1.bf16.msra.mxu0 %v828
      %884 = vmatprep.subr.bf16.mxu0 %v825
      %885 = vmatpush1.bf16.msra.mxu0 %v824
      %886 = vmatprep.subr.bf16.mxu0 %v821
      %887 = vmatpush1.bf16.msra.mxu0 %v820
      %888 = vmatprep.subr.bf16.mxu0 %v817
      %889 = vmatpush1.bf16.msra.mxu0 %v816
      %890 = vmatprep.subr.bf16.mxu0 %v813
      %891 = vmatpush1.bf16.msra.mxu0 %v812
      %892 = vmatprep.subr.bf16.mxu0 %v809
      %893 = vmatpush1.bf16.msra.mxu0 %v808
      %894 = vmatprep.subr.bf16.mxu0 %v805
      %895 = vmatpush1.bf16.msra.mxu0 %v804
      %896 = vmatprep.subr.bf16.mxu0 0
      %897 = vmatpush2.bf16.msra.mxu0 0
      %898 = vmatprep.subr.bf16.mxu0 0
      %899 = vmatpush2.bf16.msra.mxu0 0
      %900 = vmatprep.subr.bf16.mxu0 0
      %901 = vmatpush2.bf16.msra.mxu0 0
      %902 = vmatprep.subr.bf16.mxu0 0
      %903 = vmatpush2.bf16.msra.mxu0 0
      %904 = vmatprep.subr.bf16.mxu0 0
      %905 = vmatpush2.bf16.msra.mxu0 0
      %906 = vmatprep.subr.bf16.mxu0 0
      %907 = vmatpush2.bf16.msra.mxu0 0
      %908 = vmatprep.subr.bf16.mxu0 0
      %909 = vmatpush2.bf16.msra.mxu0 0
      %910 = vmatprep.subr.bf16.mxu0 %v837
      %911 = vmatpush2.bf16.msra.mxu0 %v836
      %912 = vmatprep.mubr.bf16.mxu0 %v878
      %913 = vmatmul.mubr.bf16.gmra.mxu0 %v693
      %v914 = vpop.f32.mrf.mxu0
      %v915 = vadd.f32 0.0, %v914
      %v916 = vpop.f32.mrf.mxu0
      %v917 = vadd.f32 0.0, %v916
      %v918 = vpop.f32.mrf.mxu0
      %v919 = vadd.f32 0.0, %v918
      %v920 = vpop.f32.mrf.mxu0
      %v921 = vadd.f32 0.0, %v920
      %922 = vdwg.mxu0
      %923 = vmatprep.subr.bf16.mxu0 %v835
      %924 = vmatpush1.bf16.msra.mxu0 %v834
      %925 = vmatprep.subr.bf16.mxu0 %v831
      %926 = vmatpush1.bf16.msra.mxu0 %v830
      %927 = vmatprep.subr.bf16.mxu0 %v827
      %928 = vmatpush1.bf16.msra.mxu0 %v826
      %929 = vmatprep.subr.bf16.mxu0 %v823
      %930 = vmatpush1.bf16.msra.mxu0 %v822
      %931 = vmatprep.subr.bf16.mxu0 %v819
      %932 = vmatpush1.bf16.msra.mxu0 %v818
      %933 = vmatprep.subr.bf16.mxu0 %v815
      %934 = vmatpush1.bf16.msra.mxu0 %v814
      %935 = vmatprep.subr.bf16.mxu0 %v811
      %936 = vmatpush1.bf16.msra.mxu0 %v810
      %937 = vmatprep.subr.bf16.mxu0 %v807
      %938 = vmatpush1.bf16.msra.mxu0 %v806
      %939 = vmatprep.subr.bf16.mxu0 0
      %940 = vmatpush2.bf16.msra.mxu0 0
      %941 = vmatprep.subr.bf16.mxu0 0
      %942 = vmatpush2.bf16.msra.mxu0 0
      %943 = vmatprep.subr.bf16.mxu0 0
      %944 = vmatpush2.bf16.msra.mxu0 0
      %945 = vmatprep.subr.bf16.mxu0 0
      %946 = vmatpush2.bf16.msra.mxu0 0
      %947 = vmatprep.subr.bf16.mxu0 0
      %948 = vmatpush2.bf16.msra.mxu0 0
      %949 = vmatprep.subr.bf16.mxu0 0
      %950 = vmatpush2.bf16.msra.mxu0 0
      %951 = vmatprep.subr.bf16.mxu0 0
      %952 = vmatpush2.bf16.msra.mxu0 0
      %953 = vmatprep.subr.bf16.mxu0 %v839
      %954 = vmatpush2.bf16.msra.mxu0 %v838
      %955 = vmatprep.mubr.bf16.mxu0 %v878
      %956 = vmatmul.mubr.bf16.gmra.mxu0 %v693
      %v957 = vpop.f32.mrf.mxu0
      %v958 = vadd.f32 0.0, %v957
      %v959 = vpop.f32.mrf.mxu0
      %v960 = vadd.f32 0.0, %v959
      %v961 = vpop.f32.mrf.mxu0
      %v962 = vadd.f32 0.0, %v961
      %v963 = vpop.f32.mrf.mxu0
      %v964 = vadd.f32 0.0, %v963
      %965 = vdwg.mxu0
      %967 = vset.pattern.permute.xlu0 0
      %968 = vperm.xlu0 %967, %v338
      %v969 = vpop.permute.xlu0 %968
      %972 = vset.pattern.permute.xlu0 0
      %973 = vperm.xlu0 %972, %v339
      %v974 = vpop.permute.xlu0 %973
      %v976 = vmul.f32 %v915, %v969
      %v977 = vmul.f32 %v917, %v969
      %v978 = vmul.f32 %v958, %v969
      %v979 = vmul.f32 %v960, %v969
      %v980 = vmul.f32 %v919, %v974
      %v981 = vmul.f32 %v921, %v974
      %v982 = vmul.f32 %v962, %v974
      %v983 = vmul.f32 %v964, %v974
      %985 = vset.pattern.permute.xlu0 0
      %986 = vperm.xlu0 %985, %v340
      %v987 = vpop.permute.xlu0 %986
      %990 = vset.pattern.permute.xlu0 0
      %991 = vperm.xlu0 %990, %v341
      %v992 = vpop.permute.xlu0 %991
      %v994 = vadd.f32 %v976, %v987
      %v995 = vadd.f32 %v977, %v987
      %v996 = vadd.f32 %v978, %v987
      %v997 = vadd.f32 %v979, %v987
      %v998 = vadd.f32 %v980, %v992
      %v999 = vadd.f32 %v981, %v992
      %v1000 = vadd.f32 %v982, %v992
      %v1001 = vadd.f32 %v983, %v992
      %v1002 = vsel %vm335, 1, 0
      %v1003 = vlaneseq
      %v1004 = vshrl.u32 %v1003, 7
      %v1005 = vsub.s32 0, %v1004
      %v1006 = vrot.slane %v1002, %v1005
      %v1007 = vlaneseq
      %v1008 = vshrl.u32 %v1007, 7
      %v1009 = vsub.s32 1, %v1008
      %v1010 = vrot.slane %v1002, %v1009
      %v1011 = vlaneseq
      %v1012 = vshrl.u32 %v1011, 7
      %v1013 = vsub.s32 2, %v1012
      %v1014 = vrot.slane %v1002, %v1013
      %v1015 = vlaneseq
      %v1016 = vshrl.u32 %v1015, 7
      %v1017 = vsub.s32 3, %v1016
      %v1018 = vrot.slane %v1002, %v1017
      %vm1019 = vcmp.eq.s32.totalorder %v1006, 1
      %vm1020 = vcmp.eq.s32.totalorder %v1010, 1
      %vm1021 = vcmp.eq.s32.totalorder %v1014, 1
      %vm1022 = vcmp.eq.s32.totalorder %v1018, 1
      %v1023 = vsel %vm1019, %v994, 0.0
      %v1024 = vsel %vm1020, %v995, 0.0
      %v1025 = vsel %vm1021, %v996, 0.0
      %v1026 = vsel %vm1022, %v997, 0.0
      %v1027 = vsel %vm1019, %v998, 0.0
      %v1028 = vsel %vm1020, %v999, 0.0
      %v1029 = vsel %vm1021, %v1000, 0.0
      %v1030 = vsel %vm1022, %v1001, 0.0
      %v1031 = vpack.c.bf16 %v1027, %v1023
      %v1032 = vpack.c.bf16 %v1028, %v1024
      %v1033 = vpack.c.bf16 %v1029, %v1025
      %v1034 = vpack.c.bf16 %v1030, %v1026
      %v1039 = vunpack.c.l.b16 %v1031
      %v1040 = vunpack.c.l.b16 %v1032
      %v1041 = vunpack.c.l.b16 %v1033
      %v1042 = vunpack.c.l.b16 %v1034
      %v1043 = vunpack.c.h.b16 %v1031
      %v1044 = vunpack.c.h.b16 %v1032
      %v1045 = vunpack.c.h.b16 %v1033
      %v1046 = vunpack.c.h.b16 %v1034
      %v1047 = vpack.c.b16 %v1040, %v1039
      %v1048 = vpack.c.b16 %v1042, %v1041
      %v1049 = vpack.c.b16 %v1044, %v1043
      %v1050 = vpack.c.b16 %v1046, %v1045
      %1055 = vst [vmem:[#allocation2] sm:$0xff] %v1047
      %1056 = vst.msk [vmem:[#allocation2 + $0x8] sm:$0xff] %vm380, %v1048
      %1057 = vst [vmem:[#allocation2 + $0x10] sm:$0xff] %v1049
      %1058 = vst.msk [vmem:[#allocation2 + $0x18] sm:$0xff] %vm380, %v1050
      %v1059 = vld [vmem:[%s2] sm:$0xff]
      %v1060 = vld [vmem:[%s2 + $0x8] sm:$0xff]
      %s1061 = scalar_lea.vmem %s4, 16
      %v1062 = vld [vmem:[%s1061] sm:$0xff]
      %v1063 = vld [vmem:[%s1061 + $0x8] sm:$0xff]
      %s1064 = scalar_lea.vmem %s5, 16
      %v1065 = vld [vmem:[%s1064] sm:$0xff]
      %v1066 = vld [vmem:[%s1064 + $0x8] sm:$0xff]
      %v1067 = vld [vmem:[#allocation2] sm:$0xff]
      %v1068 = vld [vmem:[#allocation2 + $0x8] sm:$0xff]
      %v1069 = vld [vmem:[#allocation2 + $0x10] sm:$0xff]
      %v1070 = vld [vmem:[#allocation2 + $0x18] sm:$0xff]
      %1075 = vrot.lane.b32.xlu0 %v1067, 69
      %v1076 = vpop.permute.xlu0 %1075
      %1077 = vrot.lane.b32.xlu0 %v1068, 69
      %v1078 = vpop.permute.xlu0 %1077
      %1079 = vrot.lane.b32.xlu0 %v1069, 69
      %v1080 = vpop.permute.xlu0 %1079
      %1081 = vrot.lane.b32.xlu0 %v1070, 69
      %v1082 = vpop.permute.xlu0 %1081
      %v1083 = vrot.slane %v1076, 4
      %v1084 = vrot.slane %v1078, 4
      %v1085 = vrot.slane %v1080, 4
      %v1086 = vrot.slane %v1082, 4
      %vm1087 = vcmask 564224
      %v1088 = vsel %vm1087, %v1083, %v1076
      %v1089 = vsel %vm364, %v1083, %v1084
      %v1090 = vsel %vm1087, %v1089, %v1078
      %v1091 = vsel %vm1087, %v1085, %v1080
      %v1092 = vsel %vm364, %v1085, %v1086
      %v1093 = vsel %vm1087, %v1092, %v1082
      %vm1098 = vcmask 1044008
      %vm1099 = vmor %vm375, %vm1098
      %1100 = vst.msk [vmem:[#allocation5] sm:$0xff] %vm1099, %v1088
      %1101 = vst.msk [vmem:[#allocation5 + $0x8] sm:$0xff] %vm380, %v1090
      %1102 = vst.msk [vmem:[#allocation5 + $0x10] sm:$0xff] %vm1099, %v1091
      %1103 = vst.msk [vmem:[#allocation5 + $0x18] sm:$0xff] %vm380, %v1093
      %v1104 = vld [vmem:[#allocation2] sm:$0xff]
      %v1105 = vld [vmem:[#allocation2 + $0x8] sm:$0xff]
      %v1106 = vld [vmem:[#allocation2 + $0x10] sm:$0xff]
      %v1107 = vld [vmem:[#allocation2 + $0x18] sm:$0xff]
      %1112 = vrot.lane.b32.xlu0 %v1104, 66
      %v1113 = vpop.permute.xlu0 %1112
      %1114 = vrot.lane.b32.xlu0 %v1105, 66
      %v1115 = vpop.permute.xlu0 %1114
      %1116 = vrot.lane.b32.xlu0 %v1106, 66
      %v1117 = vpop.permute.xlu0 %1116
      %1118 = vrot.lane.b32.xlu0 %v1107, 66
      %v1119 = vpop.permute.xlu0 %1118
      %v1120 = vrot.slane %v1113, 4
      %v1121 = vrot.slane %v1115, 4
      %v1122 = vrot.slane %v1117, 4
      %v1123 = vrot.slane %v1119, 4
      %vm1124 = vcmask 539648
      %v1125 = vsel %vm1124, %v1120, %v1113
      %v1126 = vsel %vm364, %v1120, %v1121
      %v1127 = vsel %vm1124, %v1126, %v1115
      %v1128 = vsel %vm1124, %v1122, %v1117
      %v1129 = vsel %vm364, %v1122, %v1123
      %v1130 = vsel %vm1124, %v1129, %v1119
      %vm1135 = vcmask 1043984
      %vm1136 = vmor %vm375, %vm1135
      %1137 = vst.msk [vmem:[#allocation5 + $0x20] sm:$0xff] %vm1136, %v1125
      %1138 = vst.msk [vmem:[#allocation5 + $0x28] sm:$0xff] %vm380, %v1127
      %1139 = vst.msk [vmem:[#allocation5 + $0x30] sm:$0xff] %vm1136, %v1128
      %1140 = vst.msk [vmem:[#allocation5 + $0x38] sm:$0xff] %vm380, %v1130
      %v1141 = vld [vmem:[#allocation2] sm:$0xff]
      %v1142 = vld [vmem:[#allocation2 + $0x8] sm:$0xff]
      %v1143 = vld [vmem:[#allocation2 + $0x10] sm:$0xff]
      %v1144 = vld [vmem:[#allocation2 + $0x18] sm:$0xff]
      %1149 = vrot.lane.b32.xlu0 %v1141, 63
      %v1150 = vpop.permute.xlu0 %1149
      %1151 = vrot.lane.b32.xlu0 %v1142, 63
      %v1152 = vpop.permute.xlu0 %1151
      %1153 = vrot.lane.b32.xlu0 %v1143, 63
      %v1154 = vpop.permute.xlu0 %1153
      %1155 = vrot.lane.b32.xlu0 %v1144, 63
      %v1156 = vpop.permute.xlu0 %1155
      %v1157 = vrot.slane %v1150, 4
      %v1158 = vrot.slane %v1152, 4
      %v1159 = vrot.slane %v1154, 4
      %v1160 = vrot.slane %v1156, 4
      %vm1161 = vcmask 515072
      %v1162 = vsel %vm1161, %v1157, %v1150
      %v1163 = vsel %vm364, %v1157, %v1158
      %v1164 = vsel %vm1161, %v1163, %v1152
      %v1165 = vsel %vm1161, %v1159, %v1154
      %v1166 = vsel %vm364, %v1159, %v1160
      %v1167 = vsel %vm1161, %v1166, %v1156
      %vm1172 = vcmask 1043960
      %vm1173 = vmor %vm375, %vm1172
      %1174 = vst.msk [vmem:[#allocation5 + $0x40] sm:$0xff] %vm1173, %v1162
      %1175 = vst.msk [vmem:[#allocation5 + $0x48] sm:$0xff] %vm380, %v1164
      %1176 = vst.msk [vmem:[#allocation5 + $0x50] sm:$0xff] %vm1173, %v1165
      %1177 = vst.msk [vmem:[#allocation5 + $0x58] sm:$0xff] %vm380, %v1167
      %v1178 = vld [vmem:[#allocation2] sm:$0xff]
      %v1179 = vld [vmem:[#allocation2 + $0x8] sm:$0xff]
      %v1180 = vld [vmem:[#allocation2 + $0x10] sm:$0xff]
      %v1181 = vld [vmem:[#allocation2 + $0x18] sm:$0xff]
      %1186 = vrot.lane.b32.xlu0 %v1178, 3
      %v1187 = vpop.permute.xlu0 %1186
      %1188 = vrot.lane.b32.xlu0 %v1179, 3
      %v1189 = vpop.permute.xlu0 %1188
      %1190 = vrot.lane.b32.xlu0 %v1180, 3
      %v1191 = vpop.permute.xlu0 %1190
      %1192 = vrot.lane.b32.xlu0 %v1181, 3
      %v1193 = vpop.permute.xlu0 %1192
      %v1194 = vrot.slane %v1187, 4
      %v1195 = vrot.slane %v1189, 4
      %v1196 = vrot.slane %v1191, 4
      %v1197 = vrot.slane %v1193, 4
      %vm1198 = vcmask 23552
      %v1199 = vsel %vm1198, %v1194, %v1187
      %v1200 = vsel %vm364, %v1194, %v1195
      %v1201 = vsel %vm1198, %v1200, %v1189
      %v1202 = vsel %vm1198, %v1196, %v1191
      %v1203 = vsel %vm364, %v1196, %v1197
      %v1204 = vsel %vm1198, %v1203, %v1193
      %vm1209 = vcmask 1043480
      %vm1210 = vmor %vm375, %vm1209
      %1211 = vst.msk [vmem:[#allocation5 + $0x60] sm:$0xff] %vm1210, %v1199
      %1212 = vst.msk [vmem:[#allocation5 + $0x68] sm:$0xff] %vm380, %v1201
      %1213 = vst.msk [vmem:[#allocation5 + $0x70] sm:$0xff] %vm1210, %v1202
      %1214 = vst.msk [vmem:[#allocation5 + $0x78] sm:$0xff] %vm380, %v1204
      %v1215 = vld [vmem:[#allocation2] sm:$0xff]
      %v1216 = vld [vmem:[#allocation2 + $0x8] sm:$0xff]
      %v1217 = vld [vmem:[#allocation2 + $0x10] sm:$0xff]
      %v1218 = vld [vmem:[#allocation2 + $0x18] sm:$0xff]
      %1219 = vst [vmem:[#allocation5 + $0x80] sm:$0xff] %v1215
      %1220 = vst.msk [vmem:[#allocation5 + $0x88] sm:$0xff] %vm380, %v1216
      %1221 = vst [vmem:[#allocation5 + $0x90] sm:$0xff] %v1217
      %1222 = vst.msk [vmem:[#allocation5 + $0x98] sm:$0xff] %vm380, %v1218
      %v1223 = vld [vmem:[#allocation2] sm:$0xff]
      %v1224 = vld [vmem:[#allocation2 + $0x8] sm:$0xff]
      %v1225 = vld [vmem:[#allocation2 + $0x10] sm:$0xff]
      %v1226 = vld [vmem:[#allocation2 + $0x18] sm:$0xff]
      %1231 = vrot.lane.b32.xlu0 %v1223, 125
      %v1232 = vpop.permute.xlu0 %1231
      %1233 = vrot.lane.b32.xlu0 %v1224, 125
      %v1234 = vpop.permute.xlu0 %1233
      %1235 = vrot.lane.b32.xlu0 %v1225, 125
      %v1236 = vpop.permute.xlu0 %1235
      %1237 = vrot.lane.b32.xlu0 %v1226, 125
      %v1238 = vpop.permute.xlu0 %1237
      %v1239 = vrot.slane %v1232, 4
      %v1240 = vrot.slane %v1234, 4
      %v1241 = vrot.slane %v1236, 4
      %v1242 = vrot.slane %v1238, 4
      %v1243 = vsel %vm364, %v1239, %v1240
      %vm1244 = vcmask 1022976
      %v1245 = vsel %vm1244, %v1232, %v1243
      %v1246 = vsel %vm1244, %v1234, %v1240
      %v1247 = vsel %vm364, %v1241, %v1242
      %v1248 = vsel %vm1244, %v1236, %v1247
      %v1249 = vsel %vm1244, %v1238, %v1242
      %1254 = vst [vmem:[#allocation5 + $0xa0] sm:$0xff] %v1245
      %vm1255 = vcmask 793604
      %vm1256 = vmor %vm1255, %vm378
      %1257 = vst.msk [vmem:[#allocation5 + $0xa8] sm:$0xff] %vm1256, %v1246
      %1258 = vst [vmem:[#allocation5 + $0xb0] sm:$0xff] %v1248
      %1259 = vst.msk [vmem:[#allocation5 + $0xb8] sm:$0xff] %vm1256, %v1249
      %v1260 = vld [vmem:[#allocation2] sm:$0xff]
      %v1261 = vld [vmem:[#allocation2 + $0x8] sm:$0xff]
      %v1262 = vld [vmem:[#allocation2 + $0x10] sm:$0xff]
      %v1263 = vld [vmem:[#allocation2 + $0x18] sm:$0xff]
      %1268 = vrot.lane.b32.xlu0 %v1260, 65
      %v1269 = vpop.permute.xlu0 %1268
      %1270 = vrot.lane.b32.xlu0 %v1261, 65
      %v1271 = vpop.permute.xlu0 %1270
      %1272 = vrot.lane.b32.xlu0 %v1262, 65
      %v1273 = vpop.permute.xlu0 %1272
      %1274 = vrot.lane.b32.xlu0 %v1263, 65
      %v1275 = vpop.permute.xlu0 %1274
      %v1276 = vrot.slane %v1269, 4
      %v1277 = vrot.slane %v1271, 4
      %v1278 = vrot.slane %v1273, 4
      %v1279 = vrot.slane %v1275, 4
      %v1280 = vsel %vm364, %v1276, %v1277
      %vm1281 = vcmask 531456
      %v1282 = vsel %vm1281, %v1269, %v1280
      %v1283 = vsel %vm1281, %v1271, %v1277
      %v1284 = vsel %vm364, %v1278, %v1279
      %v1285 = vsel %vm1281, %v1273, %v1284
      %v1286 = vsel %vm1281, %v1275, %v1279
      %1291 = vst [vmem:[#allocation5 + $0xc0] sm:$0xff] %v1282
      %vm1292 = vcmask 302084
      %vm1293 = vmor %vm1292, %vm378
      %1294 = vst.msk [vmem:[#allocation5 + $0xc8] sm:$0xff] %vm1293, %v1283
      %1295 = vst [vmem:[#allocation5 + $0xd0] sm:$0xff] %v1285
      %1296 = vst.msk [vmem:[#allocation5 + $0xd8] sm:$0xff] %vm1293, %v1286
      %v1297 = vld [vmem:[#allocation2] sm:$0xff]
      %v1298 = vld [vmem:[#allocation2 + $0x8] sm:$0xff]
      %v1299 = vld [vmem:[#allocation2 + $0x10] sm:$0xff]
      %v1300 = vld [vmem:[#allocation2 + $0x18] sm:$0xff]
      %1305 = vrot.lane.b32.xlu0 %v1297, 62
      %v1306 = vpop.permute.xlu0 %1305
      %1307 = vrot.lane.b32.xlu0 %v1298, 62
      %v1308 = vpop.permute.xlu0 %1307
      %1309 = vrot.lane.b32.xlu0 %v1299, 62
      %v1310 = vpop.permute.xlu0 %1309
      %1311 = vrot.lane.b32.xlu0 %v1300, 62
      %v1312 = vpop.permute.xlu0 %1311
      %v1313 = vrot.slane %v1306, 4
      %v1314 = vrot.slane %v1308, 4
      %v1315 = vrot.slane %v1310, 4
      %v1316 = vrot.slane %v1312, 4
      %v1317 = vsel %vm364, %v1313, %v1314
      %vm1318 = vcmask 506880
      %v1319 = vsel %vm1318, %v1306, %v1317
      %v1320 = vsel %vm1318, %v1308, %v1314
      %v1321 = vsel %vm364, %v1315, %v1316
      %v1322 = vsel %vm1318, %v1310, %v1321
      %v1323 = vsel %vm1318, %v1312, %v1316
      %1328 = vst [vmem:[#allocation5 + $0xe0] sm:$0xff] %v1319
      %vm1329 = vcmask 277508
      %vm1330 = vmor %vm1329, %vm378
      %1331 = vst.msk [vmem:[#allocation5 + $0xe8] sm:$0xff] %vm1330, %v1320
      %1332 = vst [vmem:[#allocation5 + $0xf0] sm:$0xff] %v1322
      %1333 = vst.msk [vmem:[#allocation5 + $0xf8] sm:$0xff] %vm1330, %v1323
      %v1334 = vld [vmem:[#allocation2] sm:$0xff]
      %v1335 = vld [vmem:[#allocation2 + $0x8] sm:$0xff]
      %v1336 = vld [vmem:[#allocation2 + $0x10] sm:$0xff]
      %v1337 = vld [vmem:[#allocation2 + $0x18] sm:$0xff]
      %1342 = vrot.lane.b32.xlu0 %v1334, 59
      %v1343 = vpop.permute.xlu0 %1342
      %1344 = vrot.lane.b32.xlu0 %v1335, 59
      %v1345 = vpop.permute.xlu0 %1344
      %1346 = vrot.lane.b32.xlu0 %v1336, 59
      %v1347 = vpop.permute.xlu0 %1346
      %1348 = vrot.lane.b32.xlu0 %v1337, 59
      %v1349 = vpop.permute.xlu0 %1348
      %v1350 = vrot.slane %v1343, 4
      %v1351 = vrot.slane %v1345, 4
      %v1352 = vrot.slane %v1347, 4
      %v1353 = vrot.slane %v1349, 4
      %v1354 = vsel %vm364, %v1350, %v1351
      %vm1355 = vcmask 482304
      %v1356 = vsel %vm1355, %v1343, %v1354
      %v1357 = vsel %vm1355, %v1345, %v1351
      %v1358 = vsel %vm364, %v1352, %v1353
      %v1359 = vsel %vm1355, %v1347, %v1358
      %v1360 = vsel %vm1355, %v1349, %v1353
      %1365 = vst [vmem:[#allocation5 + $0x100] sm:$0xff] %v1356
      %vm1366 = vcmask 252932
      %vm1367 = vmor %vm1366, %vm378
      %1368 = vst.msk [vmem:[#allocation5 + $0x108] sm:$0xff] %vm1367, %v1357
      %1369 = vst [vmem:[#allocation5 + $0x110] sm:$0xff] %v1359
      %1370 = vst.msk [vmem:[#allocation5 + $0x118] sm:$0xff] %vm1367, %v1360
      %v1371 = vld [vmem:[#allocation5] sm:$0xff]
      %v1372 = vld [vmem:[#allocation5 + $0x8] sm:$0xff]
      %v1373 = vld [vmem:[#allocation5 + $0x10] sm:$0xff]
      %v1374 = vld [vmem:[#allocation5 + $0x18] sm:$0xff]
      %v1375 = vld [vmem:[#allocation5 + $0x20] sm:$0xff]
      %v1376 = vld [vmem:[#allocation5 + $0x28] sm:$0xff]
      %v1377 = vld [vmem:[#allocation5 + $0x30] sm:$0xff]
      %v1378 = vld [vmem:[#allocation5 + $0x38] sm:$0xff]
      %v1379 = vld [vmem:[#allocation5 + $0x40] sm:$0xff]
      %v1380 = vld [vmem:[#allocation5 + $0x48] sm:$0xff]
      %v1381 = vld [vmem:[#allocation5 + $0x50] sm:$0xff]
      %v1382 = vld [vmem:[#allocation5 + $0x58] sm:$0xff]
      %v1383 = vld [vmem:[#allocation5 + $0x60] sm:$0xff]
      %v1384 = vld [vmem:[#allocation5 + $0x68] sm:$0xff]
      %v1385 = vld [vmem:[#allocation5 + $0x70] sm:$0xff]
      %v1386 = vld [vmem:[#allocation5 + $0x78] sm:$0xff]
      %v1387 = vld [vmem:[#allocation5 + $0x80] sm:$0xff]
      %v1388 = vld [vmem:[#allocation5 + $0x88] sm:$0xff]
      %v1389 = vld [vmem:[#allocation5 + $0x90] sm:$0xff]
      %v1390 = vld [vmem:[#allocation5 + $0x98] sm:$0xff]
      %v1391 = vld [vmem:[#allocation5 + $0xa0] sm:$0xff]
      %v1392 = vld [vmem:[#allocation5 + $0xa8] sm:$0xff]
      %v1393 = vld [vmem:[#allocation5 + $0xb0] sm:$0xff]
      %v1394 = vld [vmem:[#allocation5 + $0xb8] sm:$0xff]
      %v1395 = vld [vmem:[#allocation5 + $0xc0] sm:$0xff]
      %v1396 = vld [vmem:[#allocation5 + $0xc8] sm:$0xff]
      %v1397 = vld [vmem:[#allocation5 + $0xd0] sm:$0xff]
      %v1398 = vld [vmem:[#allocation5 + $0xd8] sm:$0xff]
      %v1399 = vld [vmem:[#allocation5 + $0xe0] sm:$0xff]
      %v1400 = vld [vmem:[#allocation5 + $0xe8] sm:$0xff]
      %v1401 = vld [vmem:[#allocation5 + $0xf0] sm:$0xff]
      %v1402 = vld [vmem:[#allocation5 + $0xf8] sm:$0xff]
      %v1403 = vld [vmem:[#allocation5 + $0x100] sm:$0xff]
      %v1404 = vld [vmem:[#allocation5 + $0x108] sm:$0xff]
      %v1405 = vld [vmem:[#allocation5 + $0x110] sm:$0xff]
      %v1406 = vld [vmem:[#allocation5 + $0x118] sm:$0xff]
      %v1409 = vunpack.c.l.b16 %v1059
      %v1410 = vunpack.c.h.b16 %v1059
      %v1411 = vunpack.c.l.b16 %v1060
      %v1412 = vunpack.c.h.b16 %v1060
      %v1413 = vpack.c.b16 %v1411, %v1409
      %v1414 = vpack.c.b16 %v1412, %v1410
      %v1452 = vunpack.c.l.b16 %v1371
      %v1453 = vunpack.c.h.b16 %v1371
      %v1454 = vunpack.c.l.b16 %v1372
      %v1455 = vunpack.c.h.b16 %v1372
      %v1456 = vunpack.c.l.b16 %v1373
      %v1457 = vunpack.c.h.b16 %v1373
      %v1458 = vunpack.c.l.b16 %v1374
      %v1459 = vunpack.c.h.b16 %v1374
      %v1460 = vunpack.c.l.b16 %v1375
      %v1461 = vunpack.c.h.b16 %v1375
      %v1462 = vunpack.c.l.b16 %v1376
      %v1463 = vunpack.c.h.b16 %v1376
      %v1464 = vunpack.c.l.b16 %v1377
      %v1465 = vunpack.c.h.b16 %v1377
      %v1466 = vunpack.c.l.b16 %v1378
      %v1467 = vunpack.c.h.b16 %v1378
      %v1468 = vunpack.c.l.b16 %v1379
      %v1469 = vunpack.c.h.b16 %v1379
      %v1470 = vunpack.c.l.b16 %v1380
      %v1471 = vunpack.c.h.b16 %v1380
      %v1472 = vunpack.c.l.b16 %v1381
      %v1473 = vunpack.c.h.b16 %v1381
      %v1474 = vunpack.c.l.b16 %v1382
      %v1475 = vunpack.c.h.b16 %v1382
      %v1476 = vunpack.c.l.b16 %v1383
      %v1477 = vunpack.c.h.b16 %v1383
      %v1478 = vunpack.c.l.b16 %v1384
      %v1479 = vunpack.c.h.b16 %v1384
      %v1480 = vunpack.c.l.b16 %v1385
      %v1481 = vunpack.c.h.b16 %v1385
      %v1482 = vunpack.c.l.b16 %v1386
      %v1483 = vunpack.c.h.b16 %v1386
      %v1484 = vunpack.c.l.b16 %v1387
      %v1485 = vunpack.c.h.b16 %v1387
      %v1486 = vunpack.c.l.b16 %v1388
      %v1487 = vunpack.c.h.b16 %v1388
      %v1488 = vunpack.c.l.b16 %v1389
      %v1489 = vunpack.c.h.b16 %v1389
      %v1490 = vunpack.c.l.b16 %v1390
      %v1491 = vunpack.c.h.b16 %v1390
      %v1492 = vunpack.c.l.b16 %v1391
      %v1493 = vunpack.c.h.b16 %v1391
      %v1494 = vunpack.c.l.b16 %v1392
      %v1495 = vunpack.c.h.b16 %v1392
      %v1496 = vunpack.c.l.b16 %v1393
      %v1497 = vunpack.c.h.b16 %v1393
      %v1498 = vunpack.c.l.b16 %v1394
      %v1499 = vunpack.c.h.b16 %v1394
      %v1500 = vunpack.c.l.b16 %v1395
      %v1501 = vunpack.c.h.b16 %v1395
      %v1502 = vunpack.c.l.b16 %v1396
      %v1503 = vunpack.c.h.b16 %v1396
      %v1504 = vunpack.c.l.b16 %v1397
      %v1505 = vunpack.c.h.b16 %v1397
      %v1506 = vunpack.c.l.b16 %v1398
      %v1507 = vunpack.c.h.b16 %v1398
      %v1508 = vunpack.c.l.b16 %v1399
      %v1509 = vunpack.c.h.b16 %v1399
      %v1510 = vunpack.c.l.b16 %v1400
      %v1511 = vunpack.c.h.b16 %v1400
      %v1512 = vunpack.c.l.b16 %v1401
      %v1513 = vunpack.c.h.b16 %v1401
      %v1514 = vunpack.c.l.b16 %v1402
      %v1515 = vunpack.c.h.b16 %v1402
      %v1516 = vunpack.c.l.b16 %v1403
      %v1517 = vunpack.c.h.b16 %v1403
      %v1518 = vunpack.c.l.b16 %v1404
      %v1519 = vunpack.c.h.b16 %v1404
      %v1520 = vunpack.c.l.b16 %v1405
      %v1521 = vunpack.c.h.b16 %v1405
      %v1522 = vunpack.c.l.b16 %v1406
      %v1523 = vunpack.c.h.b16 %v1406
      %v1524 = vpack.c.b16 %v1456, %v1452
      %v1525 = vpack.c.b16 %v1457, %v1453
      %v1526 = vpack.c.b16 %v1458, %v1454
      %v1527 = vpack.c.b16 %v1459, %v1455
      %v1528 = vpack.c.b16 %v1464, %v1460
      %v1529 = vpack.c.b16 %v1465, %v1461
      %v1530 = vpack.c.b16 %v1466, %v1462
      %v1531 = vpack.c.b16 %v1467, %v1463
      %v1532 = vpack.c.b16 %v1472, %v1468
      %v1533 = vpack.c.b16 %v1473, %v1469
      %v1534 = vpack.c.b16 %v1474, %v1470
      %v1535 = vpack.c.b16 %v1475, %v1471
      %v1536 = vpack.c.b16 %v1480, %v1476
      %v1537 = vpack.c.b16 %v1481, %v1477
      %v1538 = vpack.c.b16 %v1482, %v1478
      %v1539 = vpack.c.b16 %v1483, %v1479
      %v1540 = vpack.c.b16 %v1488, %v1484
      %v1541 = vpack.c.b16 %v1489, %v1485
      %v1542 = vpack.c.b16 %v1490, %v1486
      %v1543 = vpack.c.b16 %v1491, %v1487
      %v1544 = vpack.c.b16 %v1496, %v1492
      %v1545 = vpack.c.b16 %v1497, %v1493
      %v1546 = vpack.c.b16 %v1498, %v1494
      %v1547 = vpack.c.b16 %v1499, %v1495
      %v1548 = vpack.c.b16 %v1504, %v1500
      %v1549 = vpack.c.b16 %v1505, %v1501
      %v1550 = vpack.c.b16 %v1506, %v1502
      %v1551 = vpack.c.b16 %v1507, %v1503
      %v1552 = vpack.c.b16 %v1512, %v1508
      %v1553 = vpack.c.b16 %v1513, %v1509
      %v1554 = vpack.c.b16 %v1514, %v1510
      %v1555 = vpack.c.b16 %v1515, %v1511
      %v1556 = vpack.c.b16 %v1520, %v1516
      %v1557 = vpack.c.b16 %v1521, %v1517
      %v1558 = vpack.c.b16 %v1522, %v1518
      %v1559 = vpack.c.b16 %v1523, %v1519
      %v1597 = vsel %vm876, %v1414, 0
      %1599 = vmatprep.subr.bf16.mxu0 %v1553
      %1600 = vmatpush1.bf16.msra.mxu0 %v1552
      %1601 = vmatprep.subr.bf16.mxu0 %v1549
      %1602 = vmatpush1.bf16.msra.mxu0 %v1548
      %1603 = vmatprep.subr.bf16.mxu0 %v1545
      %1604 = vmatpush1.bf16.msra.mxu0 %v1544
      %1605 = vmatprep.subr.bf16.mxu0 %v1541
      %1606 = vmatpush1.bf16.msra.mxu0 %v1540
      %1607 = vmatprep.subr.bf16.mxu0 %v1537
      %1608 = vmatpush1.bf16.msra.mxu0 %v1536
      %1609 = vmatprep.subr.bf16.mxu0 %v1533
      %1610 = vmatpush1.bf16.msra.mxu0 %v1532
      %1611 = vmatprep.subr.bf16.mxu0 %v1529
      %1612 = vmatpush1.bf16.msra.mxu0 %v1528
      %1613 = vmatprep.subr.bf16.mxu0 %v1525
      %1614 = vmatpush1.bf16.msra.mxu0 %v1524
      %1615 = vmatprep.subr.bf16.mxu0 0
      %1616 = vmatpush2.bf16.msra.mxu0 0
      %1617 = vmatprep.subr.bf16.mxu0 0
      %1618 = vmatpush2.bf16.msra.mxu0 0
      %1619 = vmatprep.subr.bf16.mxu0 0
      %1620 = vmatpush2.bf16.msra.mxu0 0
      %1621 = vmatprep.subr.bf16.mxu0 0
      %1622 = vmatpush2.bf16.msra.mxu0 0
      %1623 = vmatprep.subr.bf16.mxu0 0
      %1624 = vmatpush2.bf16.msra.mxu0 0
      %1625 = vmatprep.subr.bf16.mxu0 0
      %1626 = vmatpush2.bf16.msra.mxu0 0
      %1627 = vmatprep.subr.bf16.mxu0 0
      %1628 = vmatpush2.bf16.msra.mxu0 0
      %1629 = vmatprep.subr.bf16.mxu0 %v1557
      %1630 = vmatpush2.bf16.msra.mxu0 %v1556
      %1631 = vmatprep.mubr.bf16.mxu0 %v1597
      %1632 = vmatmul.mubr.bf16.gmra.mxu0 %v1413
      %v1633 = vpop.f32.mrf.mxu0
      %v1634 = vadd.f32 0.0, %v1633
      %v1635 = vpop.f32.mrf.mxu0
      %v1636 = vadd.f32 0.0, %v1635
      %v1637 = vpop.f32.mrf.mxu0
      %v1638 = vadd.f32 0.0, %v1637
      %v1639 = vpop.f32.mrf.mxu0
      %v1640 = vadd.f32 0.0, %v1639
      %1641 = vdwg.mxu0
      %1642 = vmatprep.subr.bf16.mxu0 %v1555
      %1643 = vmatpush1.bf16.msra.mxu0 %v1554
      %1644 = vmatprep.subr.bf16.mxu0 %v1551
      %1645 = vmatpush1.bf16.msra.mxu0 %v1550
      %1646 = vmatprep.subr.bf16.mxu0 %v1547
      %1647 = vmatpush1.bf16.msra.mxu0 %v1546
      %1648 = vmatprep.subr.bf16.mxu0 %v1543
      %1649 = vmatpush1.bf16.msra.mxu0 %v1542
      %1650 = vmatprep.subr.bf16.mxu0 %v1539
      %1651 = vmatpush1.bf16.msra.mxu0 %v1538
      %1652 = vmatprep.subr.bf16.mxu0 %v1535
      %1653 = vmatpush1.bf16.msra.mxu0 %v1534
      %1654 = vmatprep.subr.bf16.mxu0 %v1531
      %1655 = vmatpush1.bf16.msra.mxu0 %v1530
      %1656 = vmatprep.subr.bf16.mxu0 %v1527
      %1657 = vmatpush1.bf16.msra.mxu0 %v1526
      %1658 = vmatprep.subr.bf16.mxu0 0
      %1659 = vmatpush2.bf16.msra.mxu0 0
      %1660 = vmatprep.subr.bf16.mxu0 0
      %1661 = vmatpush2.bf16.msra.mxu0 0
      %1662 = vmatprep.subr.bf16.mxu0 0
      %1663 = vmatpush2.bf16.msra.mxu0 0
      %1664 = vmatprep.subr.bf16.mxu0 0
      %1665 = vmatpush2.bf16.msra.mxu0 0
      %1666 = vmatprep.subr.bf16.mxu0 0
      %1667 = vmatpush2.bf16.msra.mxu0 0
      %1668 = vmatprep.subr.bf16.mxu0 0
      %1669 = vmatpush2.bf16.msra.mxu0 0
      %1670 = vmatprep.subr.bf16.mxu0 0
      %1671 = vmatpush2.bf16.msra.mxu0 0
      %1672 = vmatprep.subr.bf16.mxu0 %v1559
      %1673 = vmatpush2.bf16.msra.mxu0 %v1558
      %1674 = vmatprep.mubr.bf16.mxu0 %v1597
      %1675 = vmatmul.mubr.bf16.gmra.mxu0 %v1413
      %v1676 = vpop.f32.mrf.mxu0
      %v1677 = vadd.f32 0.0, %v1676
      %v1678 = vpop.f32.mrf.mxu0
      %v1679 = vadd.f32 0.0, %v1678
      %v1680 = vpop.f32.mrf.mxu0
      %v1681 = vadd.f32 0.0, %v1680
      %v1682 = vpop.f32.mrf.mxu0
      %v1683 = vadd.f32 0.0, %v1682
      %1684 = vdwg.mxu0
      %1686 = vset.pattern.permute.xlu0 0
      %1687 = vperm.xlu0 %1686, %v1062
      %v1688 = vpop.permute.xlu0 %1687
      %1691 = vset.pattern.permute.xlu0 0
      %1692 = vperm.xlu0 %1691, %v1063
      %v1693 = vpop.permute.xlu0 %1692
      %v1695 = vmul.f32 %v1634, %v1688
      %v1696 = vmul.f32 %v1636, %v1688
      %v1697 = vmul.f32 %v1677, %v1688
      %v1698 = vmul.f32 %v1679, %v1688
      %v1699 = vmul.f32 %v1638, %v1693
      %v1700 = vmul.f32 %v1640, %v1693
      %v1701 = vmul.f32 %v1681, %v1693
      %v1702 = vmul.f32 %v1683, %v1693
      %1704 = vset.pattern.permute.xlu0 0
      %1705 = vperm.xlu0 %1704, %v1065
      %v1706 = vpop.permute.xlu0 %1705
      %1709 = vset.pattern.permute.xlu0 0
      %1710 = vperm.xlu0 %1709, %v1066
      %v1711 = vpop.permute.xlu0 %1710
      %v1713 = vadd.f32 %v1695, %v1706
      %v1714 = vadd.f32 %v1696, %v1706
      %v1715 = vadd.f32 %v1697, %v1706
      %v1716 = vadd.f32 %v1698, %v1706
      %v1717 = vadd.f32 %v1699, %v1711
      %v1718 = vadd.f32 %v1700, %v1711
      %v1719 = vadd.f32 %v1701, %v1711
      %v1720 = vadd.f32 %v1702, %v1711
      %v1721 = vsel %vm1019, %v1713, 0.0
      %v1722 = vsel %vm1020, %v1714, 0.0
      %v1723 = vsel %vm1021, %v1715, 0.0
      %v1724 = vsel %vm1022, %v1716, 0.0
      %v1725 = vsel %vm1019, %v1717, 0.0
      %v1726 = vsel %vm1020, %v1718, 0.0
      %v1727 = vsel %vm1021, %v1719, 0.0
      %v1728 = vsel %vm1022, %v1720, 0.0
      %v1729 = vpack.c.bf16 %v1725, %v1721
      %v1730 = vpack.c.bf16 %v1726, %v1722
      %v1731 = vpack.c.bf16 %v1727, %v1723
      %v1732 = vpack.c.bf16 %v1728, %v1724
      %v1737 = vunpack.c.l.b16 %v1729
      %v1738 = vunpack.c.l.b16 %v1730
      %v1739 = vunpack.c.l.b16 %v1731
      %v1740 = vunpack.c.l.b16 %v1732
      %v1741 = vunpack.c.h.b16 %v1729
      %v1742 = vunpack.c.h.b16 %v1730
      %v1743 = vunpack.c.h.b16 %v1731
      %v1744 = vunpack.c.h.b16 %v1732
      %v1745 = vpack.c.b16 %v1738, %v1737
      %v1746 = vpack.c.b16 %v1740, %v1739
      %v1747 = vpack.c.b16 %v1742, %v1741
      %v1748 = vpack.c.b16 %v1744, %v1743
      %1753 = vst [vmem:[#allocation4] sm:$0xff] %v1745
      %1754 = vst.msk [vmem:[#allocation4 + $0x8] sm:$0xff] %vm380, %v1746
      %1755 = vst [vmem:[#allocation4 + $0x10] sm:$0xff] %v1747
      %1756 = vst.msk [vmem:[#allocation4 + $0x18] sm:$0xff] %vm380, %v1748
      %s1757 = scalar_lea.vmem %s2, 16
      %v1758 = vld [vmem:[%s1757] sm:$0xff]
      %v1759 = vld [vmem:[%s1757 + $0x8] sm:$0xff]
      %s1760 = scalar_lea.vmem %s4, 32
      %v1761 = vld [vmem:[%s1760] sm:$0xff]
      %v1762 = vld [vmem:[%s1760 + $0x8] sm:$0xff]
      %s1763 = scalar_lea.vmem %s5, 32
      %v1764 = vld [vmem:[%s1763] sm:$0xff]
      %v1765 = vld [vmem:[%s1763 + $0x8] sm:$0xff]
      %v1766 = vld [vmem:[#allocation2] sm:$0xff]
      %v1767 = vld [vmem:[#allocation2 + $0x8] sm:$0xff]
      %v1768 = vld [vmem:[#allocation2 + $0x10] sm:$0xff]
      %v1769 = vld [vmem:[#allocation2 + $0x18] sm:$0xff]
      %1774 = vrot.lane.b32.xlu0 %v1766, 23
      %v1775 = vpop.permute.xlu0 %1774
      %1776 = vrot.lane.b32.xlu0 %v1767, 23
      %v1777 = vpop.permute.xlu0 %1776
      %1778 = vrot.lane.b32.xlu0 %v1768, 23
      %v1779 = vpop.permute.xlu0 %1778
      %1780 = vrot.lane.b32.xlu0 %v1769, 23
      %v1781 = vpop.permute.xlu0 %1780
      %v1782 = vrot.slane %v1775, 4
      %v1783 = vrot.slane %v1777, 4
      %v1784 = vrot.slane %v1779, 4
      %v1785 = vrot.slane %v1781, 4
      %v1786 = vsel %vm362, %v1782, %v1775
      %v1787 = vsel %vm364, %v1782, %v1783
      %v1788 = vsel %vm362, %v1787, %v1777
      %v1789 = vsel %vm362, %v1784, %v1779
      %v1790 = vsel %vm364, %v1784, %v1785
      %v1791 = vsel %vm362, %v1790, %v1781
      %1796 = vst.msk [vmem:[#allocation5] sm:$0xff] %vm376, %v1786
      %1797 = vst.msk [vmem:[#allocation5 + $0x8] sm:$0xff] %vm380, %v1788
      %1798 = vst.msk [vmem:[#allocation5 + $0x10] sm:$0xff] %vm376, %v1789
      %1799 = vst.msk [vmem:[#allocation5 + $0x18] sm:$0xff] %vm380, %v1791
      %v1800 = vld [vmem:[#allocation2] sm:$0xff]
      %v1801 = vld [vmem:[#allocation2 + $0x8] sm:$0xff]
      %v1802 = vld [vmem:[#allocation2 + $0x10] sm:$0xff]
      %v1803 = vld [vmem:[#allocation2 + $0x18] sm:$0xff]
      %1808 = vrot.lane.b32.xlu0 %v1800, 22
      %v1809 = vpop.permute.xlu0 %1808
      %1810 = vrot.lane.b32.xlu0 %v1801, 22
      %v1811 = vpop.permute.xlu0 %1810
      %1812 = vrot.lane.b32.xlu0 %v1802, 22
      %v1813 = vpop.permute.xlu0 %1812
      %1814 = vrot.lane.b32.xlu0 %v1803, 22
      %v1815 = vpop.permute.xlu0 %1814
      %v1816 = vrot.slane %v1809, 4
      %v1817 = vrot.slane %v1811, 4
      %v1818 = vrot.slane %v1813, 4
      %v1819 = vrot.slane %v1815, 4
      %v1820 = vsel %vm404, %v1816, %v1809
      %v1821 = vsel %vm364, %v1816, %v1817
      %v1822 = vsel %vm404, %v1821, %v1811
      %v1823 = vsel %vm404, %v1818, %v1813
      %v1824 = vsel %vm364, %v1818, %v1819
      %v1825 = vsel %vm404, %v1824, %v1815
      %1830 = vst.msk [vmem:[#allocation5 + $0x20] sm:$0xff] %vm416, %v1820
      %1831 = vst.msk [vmem:[#allocation5 + $0x28] sm:$0xff] %vm380, %v1822
      %1832 = vst.msk [vmem:[#allocation5 + $0x30] sm:$0xff] %vm416, %v1823
      %1833 = vst.msk [vmem:[#allocation5 + $0x38] sm:$0xff] %vm380, %v1825
      %v1834 = vld [vmem:[#allocation2] sm:$0xff]
      %v1835 = vld [vmem:[#allocation2 + $0x8] sm:$0xff]
      %v1836 = vld [vmem:[#allocation2 + $0x10] sm:$0xff]
      %v1837 = vld [vmem:[#allocation2 + $0x18] sm:$0xff]
      %1842 = vrot.lane.b32.xlu0 %v1834, 21
      %v1843 = vpop.permute.xlu0 %1842
      %1844 = vrot.lane.b32.xlu0 %v1835, 21
      %v1845 = vpop.permute.xlu0 %1844
      %1846 = vrot.lane.b32.xlu0 %v1836, 21
      %v1847 = vpop.permute.xlu0 %1846
      %1848 = vrot.lane.b32.xlu0 %v1837, 21
      %v1849 = vpop.permute.xlu0 %1848
      %v1850 = vrot.slane %v1843, 4
      %v1851 = vrot.slane %v1845, 4
      %v1852 = vrot.slane %v1847, 4
      %v1853 = vrot.slane %v1849, 4
      %v1854 = vsel %vm441, %v1850, %v1843
      %v1855 = vsel %vm364, %v1850, %v1851
      %v1856 = vsel %vm441, %v1855, %v1845
      %v1857 = vsel %vm441, %v1852, %v1847
      %v1858 = vsel %vm364, %v1852, %v1853
      %v1859 = vsel %vm441, %v1858, %v1849
      %1864 = vst.msk [vmem:[#allocation5 + $0x40] sm:$0xff] %vm453, %v1854
      %1865 = vst.msk [vmem:[#allocation5 + $0x48] sm:$0xff] %vm380, %v1856
      %1866 = vst.msk [vmem:[#allocation5 + $0x50] sm:$0xff] %vm453, %v1857
      %1867 = vst.msk [vmem:[#allocation5 + $0x58] sm:$0xff] %vm380, %v1859
      %v1868 = vld [vmem:[#allocation2] sm:$0xff]
      %v1869 = vld [vmem:[#allocation2 + $0x8] sm:$0xff]
      %v1870 = vld [vmem:[#allocation2 + $0x10] sm:$0xff]
      %v1871 = vld [vmem:[#allocation2 + $0x18] sm:$0xff]
      %1876 = vrot.lane.b32.xlu0 %v1868, 1
      %v1877 = vpop.permute.xlu0 %1876
      %1878 = vrot.lane.b32.xlu0 %v1869, 1
      %v1879 = vpop.permute.xlu0 %1878
      %1880 = vrot.lane.b32.xlu0 %v1870, 1
      %v1881 = vpop.permute.xlu0 %1880
      %1882 = vrot.lane.b32.xlu0 %v1871, 1
      %v1883 = vpop.permute.xlu0 %1882
      %v1884 = vrot.slane %v1877, 4
      %v1885 = vrot.slane %v1879, 4
      %v1886 = vrot.slane %v1881, 4
      %v1887 = vrot.slane %v1883, 4
      %v1888 = vsel %vm478, %v1884, %v1877
      %v1889 = vsel %vm364, %v1884, %v1885
      %v1890 = vsel %vm478, %v1889, %v1879
      %v1891 = vsel %vm478, %v1886, %v1881
      %v1892 = vsel %vm364, %v1886, %v1887
      %v1893 = vsel %vm478, %v1892, %v1883
      %1898 = vst.msk [vmem:[#allocation5 + $0x60] sm:$0xff] %vm490, %v1888
      %1899 = vst.msk [vmem:[#allocation5 + $0x68] sm:$0xff] %vm380, %v1890
      %1900 = vst.msk [vmem:[#allocation5 + $0x70] sm:$0xff] %vm490, %v1891
      %1901 = vst.msk [vmem:[#allocation5 + $0x78] sm:$0xff] %vm380, %v1893
      %v1902 = vld [vmem:[#allocation2] sm:$0xff]
      %v1903 = vld [vmem:[#allocation2 + $0x8] sm:$0xff]
      %v1904 = vld [vmem:[#allocation2 + $0x10] sm:$0xff]
      %v1905 = vld [vmem:[#allocation2 + $0x18] sm:$0xff]
      %1906 = vst [vmem:[#allocation5 + $0x80] sm:$0xff] %v1902
      %1907 = vst.msk [vmem:[#allocation5 + $0x88] sm:$0xff] %vm380, %v1903
      %1908 = vst [vmem:[#allocation5 + $0x90] sm:$0xff] %v1904
      %1909 = vst.msk [vmem:[#allocation5 + $0x98] sm:$0xff] %vm380, %v1905
      %v1910 = vld [vmem:[#allocation2] sm:$0xff]
      %v1911 = vld [vmem:[#allocation2 + $0x8] sm:$0xff]
      %v1912 = vld [vmem:[#allocation2 + $0x10] sm:$0xff]
      %v1913 = vld [vmem:[#allocation2 + $0x18] sm:$0xff]
      %1918 = vrot.lane.b32.xlu0 %v1910, 127
      %v1919 = vpop.permute.xlu0 %1918
      %1920 = vrot.lane.b32.xlu0 %v1911, 127
      %v1921 = vpop.permute.xlu0 %1920
      %1922 = vrot.lane.b32.xlu0 %v1912, 127
      %v1923 = vpop.permute.xlu0 %1922
      %1924 = vrot.lane.b32.xlu0 %v1913, 127
      %v1925 = vpop.permute.xlu0 %1924
      %v1926 = vrot.slane %v1919, 4
      %v1927 = vrot.slane %v1921, 4
      %v1928 = vrot.slane %v1923, 4
      %v1929 = vrot.slane %v1925, 4
      %v1930 = vsel %vm364, %v1926, %v1927
      %v1931 = vsel %vm524, %v1919, %v1930
      %v1932 = vsel %vm524, %v1921, %v1927
      %v1933 = vsel %vm364, %v1928, %v1929
      %v1934 = vsel %vm524, %v1923, %v1933
      %v1935 = vsel %vm524, %v1925, %v1929
      %1940 = vst [vmem:[#allocation5 + $0xa0] sm:$0xff] %v1931
      %1941 = vst.msk [vmem:[#allocation5 + $0xa8] sm:$0xff] %vm536, %v1932
      %1942 = vst [vmem:[#allocation5 + $0xb0] sm:$0xff] %v1934
      %1943 = vst.msk [vmem:[#allocation5 + $0xb8] sm:$0xff] %vm536, %v1935
      %v1944 = vld [vmem:[#allocation2] sm:$0xff]
      %v1945 = vld [vmem:[#allocation2 + $0x8] sm:$0xff]
      %v1946 = vld [vmem:[#allocation2 + $0x10] sm:$0xff]
      %v1947 = vld [vmem:[#allocation2 + $0x18] sm:$0xff]
      %1952 = vrot.lane.b32.xlu0 %v1944, 107
      %v1953 = vpop.permute.xlu0 %1952
      %1954 = vrot.lane.b32.xlu0 %v1945, 107
      %v1955 = vpop.permute.xlu0 %1954
      %1956 = vrot.lane.b32.xlu0 %v1946, 107
      %v1957 = vpop.permute.xlu0 %1956
      %1958 = vrot.lane.b32.xlu0 %v1947, 107
      %v1959 = vpop.permute.xlu0 %1958
      %v1960 = vrot.slane %v1953, 4
      %v1961 = vrot.slane %v1955, 4
      %v1962 = vrot.slane %v1957, 4
      %v1963 = vrot.slane %v1959, 4
      %v1964 = vsel %vm364, %v1960, %v1961
      %v1965 = vsel %vm561, %v1953, %v1964
      %v1966 = vsel %vm561, %v1955, %v1961
      %v1967 = vsel %vm364, %v1962, %v1963
      %v1968 = vsel %vm561, %v1957, %v1967
      %v1969 = vsel %vm561, %v1959, %v1963
      %1974 = vst [vmem:[#allocation5 + $0xc0] sm:$0xff] %v1965
      %1975 = vst.msk [vmem:[#allocation5 + $0xc8] sm:$0xff] %vm573, %v1966
      %1976 = vst [vmem:[#allocation5 + $0xd0] sm:$0xff] %v1968
      %1977 = vst.msk [vmem:[#allocation5 + $0xd8] sm:$0xff] %vm573, %v1969
      %v1978 = vld [vmem:[#allocation2] sm:$0xff]
      %v1979 = vld [vmem:[#allocation2 + $0x8] sm:$0xff]
      %v1980 = vld [vmem:[#allocation2 + $0x10] sm:$0xff]
      %v1981 = vld [vmem:[#allocation2 + $0x18] sm:$0xff]
      %1986 = vrot.lane.b32.xlu0 %v1978, 106
      %v1987 = vpop.permute.xlu0 %1986
      %1988 = vrot.lane.b32.xlu0 %v1979, 106
      %v1989 = vpop.permute.xlu0 %1988
      %1990 = vrot.lane.b32.xlu0 %v1980, 106
      %v1991 = vpop.permute.xlu0 %1990
      %1992 = vrot.lane.b32.xlu0 %v1981, 106
      %v1993 = vpop.permute.xlu0 %1992
      %v1994 = vrot.slane %v1987, 4
      %v1995 = vrot.slane %v1989, 4
      %v1996 = vrot.slane %v1991, 4
      %v1997 = vrot.slane %v1993, 4
      %v1998 = vsel %vm364, %v1994, %v1995
      %v1999 = vsel %vm598, %v1987, %v1998
      %v2000 = vsel %vm598, %v1989, %v1995
      %v2001 = vsel %vm364, %v1996, %v1997
      %v2002 = vsel %vm598, %v1991, %v2001
      %v2003 = vsel %vm598, %v1993, %v1997
      %2008 = vst [vmem:[#allocation5 + $0xe0] sm:$0xff] %v1999
      %2009 = vst.msk [vmem:[#allocation5 + $0xe8] sm:$0xff] %vm610, %v2000
      %2010 = vst [vmem:[#allocation5 + $0xf0] sm:$0xff] %v2002
      %2011 = vst.msk [vmem:[#allocation5 + $0xf8] sm:$0xff] %vm610, %v2003
      %v2012 = vld [vmem:[#allocation2] sm:$0xff]
      %v2013 = vld [vmem:[#allocation2 + $0x8] sm:$0xff]
      %v2014 = vld [vmem:[#allocation2 + $0x10] sm:$0xff]
      %v2015 = vld [vmem:[#allocation2 + $0x18] sm:$0xff]
      %2020 = vrot.lane.b32.xlu0 %v2012, 105
      %v2021 = vpop.permute.xlu0 %2020
      %2022 = vrot.lane.b32.xlu0 %v2013, 105
      %v2023 = vpop.permute.xlu0 %2022
      %2024 = vrot.lane.b32.xlu0 %v2014, 105
      %v2025 = vpop.permute.xlu0 %2024
      %2026 = vrot.lane.b32.xlu0 %v2015, 105
      %v2027 = vpop.permute.xlu0 %2026
      %v2028 = vrot.slane %v2021, 4
      %v2029 = vrot.slane %v2023, 4
      %v2030 = vrot.slane %v2025, 4
      %v2031 = vrot.slane %v2027, 4
      %v2032 = vsel %vm364, %v2028, %v2029
      %v2033 = vsel %vm635, %v2021, %v2032
      %v2034 = vsel %vm635, %v2023, %v2029
      %v2035 = vsel %vm364, %v2030, %v2031
      %v2036 = vsel %vm635, %v2025, %v2035
      %v2037 = vsel %vm635, %v2027, %v2031
      %2042 = vst [vmem:[#allocation5 + $0x100] sm:$0xff] %v2033
      %2043 = vst.msk [vmem:[#allocation5 + $0x108] sm:$0xff] %vm647, %v2034
      %2044 = vst [vmem:[#allocation5 + $0x110] sm:$0xff] %v2036
      %2045 = vst.msk [vmem:[#allocation5 + $0x118] sm:$0xff] %vm647, %v2037
      %v2046 = vld [vmem:[#allocation5] sm:$0xff]
      %v2047 = vld [vmem:[#allocation5 + $0x8] sm:$0xff]
      %v2048 = vld [vmem:[#allocation5 + $0x10] sm:$0xff]
      %v2049 = vld [vmem:[#allocation5 + $0x18] sm:$0xff]
      %v2050 = vld [vmem:[#allocation5 + $0x20] sm:$0xff]
      %v2051 = vld [vmem:[#allocation5 + $0x28] sm:$0xff]
      %v2052 = vld [vmem:[#allocation5 + $0x30] sm:$0xff]
      %v2053 = vld [vmem:[#allocation5 + $0x38] sm:$0xff]
      %v2054 = vld [vmem:[#allocation5 + $0x40] sm:$0xff]
      %v2055 = vld [vmem:[#allocation5 + $0x48] sm:$0xff]
      %v2056 = vld [vmem:[#allocation5 + $0x50] sm:$0xff]
      %v2057 = vld [vmem:[#allocation5 + $0x58] sm:$0xff]
      %v2058 = vld [vmem:[#allocation5 + $0x60] sm:$0xff]
      %v2059 = vld [vmem:[#allocation5 + $0x68] sm:$0xff]
      %v2060 = vld [vmem:[#allocation5 + $0x70] sm:$0xff]
      %v2061 = vld [vmem:[#allocation5 + $0x78] sm:$0xff]
      %v2062 = vld [vmem:[#allocation5 + $0x80] sm:$0xff]
      %v2063 = vld [vmem:[#allocation5 + $0x88] sm:$0xff]
      %v2064 = vld [vmem:[#allocation5 + $0x90] sm:$0xff]
      %v2065 = vld [vmem:[#allocation5 + $0x98] sm:$0xff]
      %v2066 = vld [vmem:[#allocation5 + $0xa0] sm:$0xff]
      %v2067 = vld [vmem:[#allocation5 + $0xa8] sm:$0xff]
      %v2068 = vld [vmem:[#allocation5 + $0xb0] sm:$0xff]
      %v2069 = vld [vmem:[#allocation5 + $0xb8] sm:$0xff]
      %v2070 = vld [vmem:[#allocation5 + $0xc0] sm:$0xff]
      %v2071 = vld [vmem:[#allocation5 + $0xc8] sm:$0xff]
      %v2072 = vld [vmem:[#allocation5 + $0xd0] sm:$0xff]
      %v2073 = vld [vmem:[#allocation5 + $0xd8] sm:$0xff]
      %v2074 = vld [vmem:[#allocation5 + $0xe0] sm:$0xff]
      %v2075 = vld [vmem:[#allocation5 + $0xe8] sm:$0xff]
      %v2076 = vld [vmem:[#allocation5 + $0xf0] sm:$0xff]
      %v2077 = vld [vmem:[#allocation5 + $0xf8] sm:$0xff]
      %v2078 = vld [vmem:[#allocation5 + $0x100] sm:$0xff]
      %v2079 = vld [vmem:[#allocation5 + $0x108] sm:$0xff]
      %v2080 = vld [vmem:[#allocation5 + $0x110] sm:$0xff]
      %v2081 = vld [vmem:[#allocation5 + $0x118] sm:$0xff]
      %v2084 = vunpack.c.l.b16 %v1758
      %v2085 = vunpack.c.h.b16 %v1758
      %v2086 = vunpack.c.l.b16 %v1759
      %v2087 = vunpack.c.h.b16 %v1759
      %v2088 = vpack.c.b16 %v2086, %v2084
      %v2089 = vpack.c.b16 %v2087, %v2085
      %v2127 = vunpack.c.l.b16 %v2046
      %v2128 = vunpack.c.h.b16 %v2046
      %v2129 = vunpack.c.l.b16 %v2047
      %v2130 = vunpack.c.h.b16 %v2047
      %v2131 = vunpack.c.l.b16 %v2048
      %v2132 = vunpack.c.h.b16 %v2048
      %v2133 = vunpack.c.l.b16 %v2049
      %v2134 = vunpack.c.h.b16 %v2049
      %v2135 = vunpack.c.l.b16 %v2050
      %v2136 = vunpack.c.h.b16 %v2050
      %v2137 = vunpack.c.l.b16 %v2051
      %v2138 = vunpack.c.h.b16 %v2051
      %v2139 = vunpack.c.l.b16 %v2052
      %v2140 = vunpack.c.h.b16 %v2052
      %v2141 = vunpack.c.l.b16 %v2053
      %v2142 = vunpack.c.h.b16 %v2053
      %v2143 = vunpack.c.l.b16 %v2054
      %v2144 = vunpack.c.h.b16 %v2054
      %v2145 = vunpack.c.l.b16 %v2055
      %v2146 = vunpack.c.h.b16 %v2055
      %v2147 = vunpack.c.l.b16 %v2056
      %v2148 = vunpack.c.h.b16 %v2056
      %v2149 = vunpack.c.l.b16 %v2057
      %v2150 = vunpack.c.h.b16 %v2057
      %v2151 = vunpack.c.l.b16 %v2058
      %v2152 = vunpack.c.h.b16 %v2058
      %v2153 = vunpack.c.l.b16 %v2059
      %v2154 = vunpack.c.h.b16 %v2059
      %v2155 = vunpack.c.l.b16 %v2060
      %v2156 = vunpack.c.h.b16 %v2060
      %v2157 = vunpack.c.l.b16 %v2061
      %v2158 = vunpack.c.h.b16 %v2061
      %v2159 = vunpack.c.l.b16 %v2062
      %v2160 = vunpack.c.h.b16 %v2062
      %v2161 = vunpack.c.l.b16 %v2063
      %v2162 = vunpack.c.h.b16 %v2063
      %v2163 = vunpack.c.l.b16 %v2064
      %v2164 = vunpack.c.h.b16 %v2064
      %v2165 = vunpack.c.l.b16 %v2065
      %v2166 = vunpack.c.h.b16 %v2065
      %v2167 = vunpack.c.l.b16 %v2066
      %v2168 = vunpack.c.h.b16 %v2066
      %v2169 = vunpack.c.l.b16 %v2067
      %v2170 = vunpack.c.h.b16 %v2067
      %v2171 = vunpack.c.l.b16 %v2068
      %v2172 = vunpack.c.h.b16 %v2068
      %v2173 = vunpack.c.l.b16 %v2069
      %v2174 = vunpack.c.h.b16 %v2069
      %v2175 = vunpack.c.l.b16 %v2070
      %v2176 = vunpack.c.h.b16 %v2070
      %v2177 = vunpack.c.l.b16 %v2071
      %v2178 = vunpack.c.h.b16 %v2071
      %v2179 = vunpack.c.l.b16 %v2072
      %v2180 = vunpack.c.h.b16 %v2072
      %v2181 = vunpack.c.l.b16 %v2073
      %v2182 = vunpack.c.h.b16 %v2073
      %v2183 = vunpack.c.l.b16 %v2074
      %v2184 = vunpack.c.h.b16 %v2074
      %v2185 = vunpack.c.l.b16 %v2075
      %v2186 = vunpack.c.h.b16 %v2075
      %v2187 = vunpack.c.l.b16 %v2076
      %v2188 = vunpack.c.h.b16 %v2076
      %v2189 = vunpack.c.l.b16 %v2077
      %v2190 = vunpack.c.h.b16 %v2077
      %v2191 = vunpack.c.l.b16 %v2078
      %v2192 = vunpack.c.h.b16 %v2078
      %v2193 = vunpack.c.l.b16 %v2079
      %v2194 = vunpack.c.h.b16 %v2079
      %v2195 = vunpack.c.l.b16 %v2080
      %v2196 = vunpack.c.h.b16 %v2080
      %v2197 = vunpack.c.l.b16 %v2081
      %v2198 = vunpack.c.h.b16 %v2081
      %v2199 = vpack.c.b16 %v2131, %v2127
      %v2200 = vpack.c.b16 %v2132, %v2128
      %v2201 = vpack.c.b16 %v2133, %v2129
      %v2202 = vpack.c.b16 %v2134, %v2130
      %v2203 = vpack.c.b16 %v2139, %v2135
      %v2204 = vpack.c.b16 %v2140, %v2136
      %v2205 = vpack.c.b16 %v2141, %v2137
      %v2206 = vpack.c.b16 %v2142, %v2138
      %v2207 = vpack.c.b16 %v2147, %v2143
      %v2208 = vpack.c.b16 %v2148, %v2144
      %v2209 = vpack.c.b16 %v2149, %v2145
      %v2210 = vpack.c.b16 %v2150, %v2146
      %v2211 = vpack.c.b16 %v2155, %v2151
      %v2212 = vpack.c.b16 %v2156, %v2152
      %v2213 = vpack.c.b16 %v2157, %v2153
      %v2214 = vpack.c.b16 %v2158, %v2154
      %v2215 = vpack.c.b16 %v2163, %v2159
      %v2216 = vpack.c.b16 %v2164, %v2160
      %v2217 = vpack.c.b16 %v2165, %v2161
      %v2218 = vpack.c.b16 %v2166, %v2162
      %v2219 = vpack.c.b16 %v2171, %v2167
      %v2220 = vpack.c.b16 %v2172, %v2168
      %v2221 = vpack.c.b16 %v2173, %v2169
      %v2222 = vpack.c.b16 %v2174, %v2170
      %v2223 = vpack.c.b16 %v2179, %v2175
      %v2224 = vpack.c.b16 %v2180, %v2176
      %v2225 = vpack.c.b16 %v2181, %v2177
      %v2226 = vpack.c.b16 %v2182, %v2178
      %v2227 = vpack.c.b16 %v2187, %v2183
      %v2228 = vpack.c.b16 %v2188, %v2184
      %v2229 = vpack.c.b16 %v2189, %v2185
      %v2230 = vpack.c.b16 %v2190, %v2186
      %v2231 = vpack.c.b16 %v2195, %v2191
      %v2232 = vpack.c.b16 %v2196, %v2192
      %v2233 = vpack.c.b16 %v2197, %v2193
      %v2234 = vpack.c.b16 %v2198, %v2194
      %v2272 = vsel %vm876, %v2089, 0
      %2274 = vmatprep.subr.bf16.mxu0 %v2228
      %2275 = vmatpush1.bf16.msra.mxu0 %v2227
      %2276 = vmatprep.subr.bf16.mxu0 %v2224
      %2277 = vmatpush1.bf16.msra.mxu0 %v2223
      %2278 = vmatprep.subr.bf16.mxu0 %v2220
      %2279 = vmatpush1.bf16.msra.mxu0 %v2219
      %2280 = vmatprep.subr.bf16.mxu0 %v2216
      %2281 = vmatpush1.bf16.msra.mxu0 %v2215
      %2282 = vmatprep.subr.bf16.mxu0 %v2212
      %2283 = vmatpush1.bf16.msra.mxu0 %v2211
      %2284 = vmatprep.subr.bf16.mxu0 %v2208
      %2285 = vmatpush1.bf16.msra.mxu0 %v2207
      %2286 = vmatprep.subr.bf16.mxu0 %v2204
      %2287 = vmatpush1.bf16.msra.mxu0 %v2203
      %2288 = vmatprep.subr.bf16.mxu0 %v2200
      %2289 = vmatpush1.bf16.msra.mxu0 %v2199
      %2290 = vmatprep.subr.bf16.mxu0 0
      %2291 = vmatpush2.bf16.msra.mxu0 0
      %2292 = vmatprep.subr.bf16.mxu0 0
      %2293 = vmatpush2.bf16.msra.mxu0 0
      %2294 = vmatprep.subr.bf16.mxu0 0
      %2295 = vmatpush2.bf16.msra.mxu0 0
      %2296 = vmatprep.subr.bf16.mxu0 0
      %2297 = vmatpush2.bf16.msra.mxu0 0
      %2298 = vmatprep.subr.bf16.mxu0 0
      %2299 = vmatpush2.bf16.msra.mxu0 0
      %2300 = vmatprep.subr.bf16.mxu0 0
      %2301 = vmatpush2.bf16.msra.mxu0 0
      %2302 = vmatprep.subr.bf16.mxu0 0
      %2303 = vmatpush2.bf16.msra.mxu0 0
      %2304 = vmatprep.subr.bf16.mxu0 %v2232
      %2305 = vmatpush2.bf16.msra.mxu0 %v2231
      %2306 = vmatprep.mubr.bf16.mxu0 %v2272
      %2307 = vmatmul.mubr.bf16.gmra.mxu0 %v2088
      %v2308 = vpop.f32.mrf.mxu0
      %v2309 = vadd.f32 0.0, %v2308
      %v2310 = vpop.f32.mrf.mxu0
      %v2311 = vadd.f32 0.0, %v2310
      %v2312 = vpop.f32.mrf.mxu0
      %v2313 = vadd.f32 0.0, %v2312
      %v2314 = vpop.f32.mrf.mxu0
      %v2315 = vadd.f32 0.0, %v2314
      %2316 = vdwg.mxu0
      %2317 = vmatprep.subr.bf16.mxu0 %v2230
      %2318 = vmatpush1.bf16.msra.mxu0 %v2229
      %2319 = vmatprep.subr.bf16.mxu0 %v2226
      %2320 = vmatpush1.bf16.msra.mxu0 %v2225
      %2321 = vmatprep.subr.bf16.mxu0 %v2222
      %2322 = vmatpush1.bf16.msra.mxu0 %v2221
      %2323 = vmatprep.subr.bf16.mxu0 %v2218
      %2324 = vmatpush1.bf16.msra.mxu0 %v2217
      %2325 = vmatprep.subr.bf16.mxu0 %v2214
      %2326 = vmatpush1.bf16.msra.mxu0 %v2213
      %2327 = vmatprep.subr.bf16.mxu0 %v2210
      %2328 = vmatpush1.bf16.msra.mxu0 %v2209
      %2329 = vmatprep.subr.bf16.mxu0 %v2206
      %2330 = vmatpush1.bf16.msra.mxu0 %v2205
      %2331 = vmatprep.subr.bf16.mxu0 %v2202
      %2332 = vmatpush1.bf16.msra.mxu0 %v2201
      %2333 = vmatprep.subr.bf16.mxu0 0
      %2334 = vmatpush2.bf16.msra.mxu0 0
      %2335 = vmatprep.subr.bf16.mxu0 0
      %2336 = vmatpush2.bf16.msra.mxu0 0
      %2337 = vmatprep.subr.bf16.mxu0 0
      %2338 = vmatpush2.bf16.msra.mxu0 0
      %2339 = vmatprep.subr.bf16.mxu0 0
      %2340 = vmatpush2.bf16.msra.mxu0 0
      %2341 = vmatprep.subr.bf16.mxu0 0
      %2342 = vmatpush2.bf16.msra.mxu0 0
      %2343 = vmatprep.subr.bf16.mxu0 0
      %2344 = vmatpush2.bf16.msra.mxu0 0
      %2345 = vmatprep.subr.bf16.mxu0 0
      %2346 = vmatpush2.bf16.msra.mxu0 0
      %2347 = vmatprep.subr.bf16.mxu0 %v2234
      %2348 = vmatpush2.bf16.msra.mxu0 %v2233
      %2349 = vmatprep.mubr.bf16.mxu0 %v2272
      %2350 = vmatmul.mubr.bf16.gmra.mxu0 %v2088
      %v2351 = vpop.f32.mrf.mxu0
      %v2352 = vadd.f32 0.0, %v2351
      %v2353 = vpop.f32.mrf.mxu0
      %v2354 = vadd.f32 0.0, %v2353
      %v2355 = vpop.f32.mrf.mxu0
      %v2356 = vadd.f32 0.0, %v2355
      %v2357 = vpop.f32.mrf.mxu0
      %v2358 = vadd.f32 0.0, %v2357
      %2359 = vdwg.mxu0
      %2361 = vset.pattern.permute.xlu0 0
      %2362 = vperm.xlu0 %2361, %v1761
      %v2363 = vpop.permute.xlu0 %2362
      %2366 = vset.pattern.permute.xlu0 0
      %2367 = vperm.xlu0 %2366, %v1762
      %v2368 = vpop.permute.xlu0 %2367
      %v2370 = vmul.f32 %v2309, %v2363
      %v2371 = vmul.f32 %v2311, %v2363
      %v2372 = vmul.f32 %v2352, %v2363
      %v2373 = vmul.f32 %v2354, %v2363
      %v2374 = vmul.f32 %v2313, %v2368
      %v2375 = vmul.f32 %v2315, %v2368
      %v2376 = vmul.f32 %v2356, %v2368
      %v2377 = vmul.f32 %v2358, %v2368
      %2379 = vset.pattern.permute.xlu0 0
      %2380 = vperm.xlu0 %2379, %v1764
      %v2381 = vpop.permute.xlu0 %2380
      %2384 = vset.pattern.permute.xlu0 0
      %2385 = vperm.xlu0 %2384, %v1765
      %v2386 = vpop.permute.xlu0 %2385
      %v2388 = vadd.f32 %v2370, %v2381
      %v2389 = vadd.f32 %v2371, %v2381
      %v2390 = vadd.f32 %v2372, %v2381
      %v2391 = vadd.f32 %v2373, %v2381
      %v2392 = vadd.f32 %v2374, %v2386
      %v2393 = vadd.f32 %v2375, %v2386
      %v2394 = vadd.f32 %v2376, %v2386
      %v2395 = vadd.f32 %v2377, %v2386
      %v2396 = vsel %vm1019, %v2388, 0.0
      %v2397 = vsel %vm1020, %v2389, 0.0
      %v2398 = vsel %vm1021, %v2390, 0.0
      %v2399 = vsel %vm1022, %v2391, 0.0
      %v2400 = vsel %vm1019, %v2392, 0.0
      %v2401 = vsel %vm1020, %v2393, 0.0
      %v2402 = vsel %vm1021, %v2394, 0.0
      %v2403 = vsel %vm1022, %v2395, 0.0
      %v2404 = vpack.c.bf16 %v2400, %v2396
      %v2405 = vpack.c.bf16 %v2401, %v2397
      %v2406 = vpack.c.bf16 %v2402, %v2398
      %v2407 = vpack.c.bf16 %v2403, %v2399
      %v2412 = vunpack.c.l.b16 %v2404
      %v2413 = vunpack.c.l.b16 %v2405
      %v2414 = vunpack.c.l.b16 %v2406
      %v2415 = vunpack.c.l.b16 %v2407
      %v2416 = vunpack.c.h.b16 %v2404
      %v2417 = vunpack.c.h.b16 %v2405
      %v2418 = vunpack.c.h.b16 %v2406
      %v2419 = vunpack.c.h.b16 %v2407
      %v2420 = vpack.c.b16 %v2413, %v2412
      %v2421 = vpack.c.b16 %v2415, %v2414
      %v2422 = vpack.c.b16 %v2417, %v2416
      %v2423 = vpack.c.b16 %v2419, %v2418
      %2428 = vst [vmem:[#allocation3] sm:$0xff] %v2420
      %2429 = vst.msk [vmem:[#allocation3 + $0x8] sm:$0xff] %vm380, %v2421
      %2430 = vst [vmem:[#allocation3 + $0x10] sm:$0xff] %v2422
      %2431 = vst.msk [vmem:[#allocation3 + $0x18] sm:$0xff] %vm380, %v2423
      %s2432 = scalar_lea.vmem %s2, 32
      %v2433 = vld [vmem:[%s2432] sm:$0xff]
      %v2434 = vld [vmem:[%s2432 + $0x8] sm:$0xff]
      %s2435 = scalar_lea.vmem %s4, 48
      %v2436 = vld [vmem:[%s2435] sm:$0xff]
      %v2437 = vld [vmem:[%s2435 + $0x8] sm:$0xff]
      %s2438 = scalar_lea.vmem %s5, 48
      %v2439 = vld [vmem:[%s2438] sm:$0xff]
      %v2440 = vld [vmem:[%s2438 + $0x8] sm:$0xff]
      %v2441 = vld [vmem:[#allocation3] sm:$0xff]
      %v2442 = vld [vmem:[#allocation3 + $0x8] sm:$0xff]
      %v2443 = vld [vmem:[#allocation3 + $0x10] sm:$0xff]
      %v2444 = vld [vmem:[#allocation3 + $0x18] sm:$0xff]
      %2449 = vrot.lane.b32.xlu0 %v2441, 46
      %v2450 = vpop.permute.xlu0 %2449
      %2451 = vrot.lane.b32.xlu0 %v2442, 46
      %v2452 = vpop.permute.xlu0 %2451
      %2453 = vrot.lane.b32.xlu0 %v2443, 46
      %v2454 = vpop.permute.xlu0 %2453
      %2455 = vrot.lane.b32.xlu0 %v2444, 46
      %v2456 = vpop.permute.xlu0 %2455
      %v2457 = vrot.slane %v2450, 4
      %v2458 = vrot.slane %v2452, 4
      %v2459 = vrot.slane %v2454, 4
      %v2460 = vrot.slane %v2456, 4
      %vm2461 = vcmask 375808
      %v2462 = vsel %vm2461, %v2457, %v2450
      %v2463 = vsel %vm364, %v2457, %v2458
      %v2464 = vsel %vm2461, %v2463, %v2452
      %v2465 = vsel %vm2461, %v2459, %v2454
      %v2466 = vsel %vm364, %v2459, %v2460
      %v2467 = vsel %vm2461, %v2466, %v2456
      %vm2472 = vcmask 1043824
      %vm2473 = vmor %vm375, %vm2472
      %2474 = vst.msk [vmem:[#allocation5] sm:$0xff] %vm2473, %v2462
      %2475 = vst.msk [vmem:[#allocation5 + $0x8] sm:$0xff] %vm380, %v2464
      %2476 = vst.msk [vmem:[#allocation5 + $0x10] sm:$0xff] %vm2473, %v2465
      %2477 = vst.msk [vmem:[#allocation5 + $0x18] sm:$0xff] %vm380, %v2467
      %v2478 = vld [vmem:[#allocation3] sm:$0xff]
      %v2479 = vld [vmem:[#allocation3 + $0x8] sm:$0xff]
      %v2480 = vld [vmem:[#allocation3 + $0x10] sm:$0xff]
      %v2481 = vld [vmem:[#allocation3 + $0x18] sm:$0xff]
      %2486 = vrot.lane.b32.xlu0 %v2478, 44
      %v2487 = vpop.permute.xlu0 %2486
      %2488 = vrot.lane.b32.xlu0 %v2479, 44
      %v2489 = vpop.permute.xlu0 %2488
      %2490 = vrot.lane.b32.xlu0 %v2480, 44
      %v2491 = vpop.permute.xlu0 %2490
      %2492 = vrot.lane.b32.xlu0 %v2481, 44
      %v2493 = vpop.permute.xlu0 %2492
      %v2494 = vrot.slane %v2487, 4
      %v2495 = vrot.slane %v2489, 4
      %v2496 = vrot.slane %v2491, 4
      %v2497 = vrot.slane %v2493, 4
      %vm2498 = vcmask 359424
      %v2499 = vsel %vm2498, %v2494, %v2487
      %v2500 = vsel %vm364, %v2494, %v2495
      %v2501 = vsel %vm2498, %v2500, %v2489
      %v2502 = vsel %vm2498, %v2496, %v2491
      %v2503 = vsel %vm364, %v2496, %v2497
      %v2504 = vsel %vm2498, %v2503, %v2493
      %vm2509 = vcmask 1043808
      %vm2510 = vmor %vm375, %vm2509
      %2511 = vst.msk [vmem:[#allocation5 + $0x20] sm:$0xff] %vm2510, %v2499
      %2512 = vst.msk [vmem:[#allocation5 + $0x28] sm:$0xff] %vm380, %v2501
      %2513 = vst.msk [vmem:[#allocation5 + $0x30] sm:$0xff] %vm2510, %v2502
      %2514 = vst.msk [vmem:[#allocation5 + $0x38] sm:$0xff] %vm380, %v2504
      %v2515 = vld [vmem:[#allocation3] sm:$0xff]
      %v2516 = vld [vmem:[#allocation3 + $0x8] sm:$0xff]
      %v2517 = vld [vmem:[#allocation3 + $0x10] sm:$0xff]
      %v2518 = vld [vmem:[#allocation3 + $0x18] sm:$0xff]
      %2523 = vrot.lane.b32.xlu0 %v2515, 42
      %v2524 = vpop.permute.xlu0 %2523
      %2525 = vrot.lane.b32.xlu0 %v2516, 42
      %v2526 = vpop.permute.xlu0 %2525
      %2527 = vrot.lane.b32.xlu0 %v2517, 42
      %v2528 = vpop.permute.xlu0 %2527
      %2529 = vrot.lane.b32.xlu0 %v2518, 42
      %v2530 = vpop.permute.xlu0 %2529
      %v2531 = vrot.slane %v2524, 4
      %v2532 = vrot.slane %v2526, 4
      %v2533 = vrot.slane %v2528, 4
      %v2534 = vrot.slane %v2530, 4
      %vm2535 = vcmask 343040
      %v2536 = vsel %vm2535, %v2531, %v2524
      %v2537 = vsel %vm364, %v2531, %v2532
      %v2538 = vsel %vm2535, %v2537, %v2526
      %v2539 = vsel %vm2535, %v2533, %v2528
      %v2540 = vsel %vm364, %v2533, %v2534
      %v2541 = vsel %vm2535, %v2540, %v2530
      %vm2546 = vcmask 1043792
      %vm2547 = vmor %vm375, %vm2546
      %2548 = vst.msk [vmem:[#allocation5 + $0x40] sm:$0xff] %vm2547, %v2536
      %2549 = vst.msk [vmem:[#allocation5 + $0x48] sm:$0xff] %vm380, %v2538
      %2550 = vst.msk [vmem:[#allocation5 + $0x50] sm:$0xff] %vm2547, %v2539
      %2551 = vst.msk [vmem:[#allocation5 + $0x58] sm:$0xff] %vm380, %v2541
      %v2552 = vld [vmem:[#allocation3] sm:$0xff]
      %v2553 = vld [vmem:[#allocation3 + $0x8] sm:$0xff]
      %v2554 = vld [vmem:[#allocation3 + $0x10] sm:$0xff]
      %v2555 = vld [vmem:[#allocation3 + $0x18] sm:$0xff]
      %2560 = vrot.lane.b32.xlu0 %v2552, 2
      %v2561 = vpop.permute.xlu0 %2560
      %2562 = vrot.lane.b32.xlu0 %v2553, 2
      %v2563 = vpop.permute.xlu0 %2562
      %2564 = vrot.lane.b32.xlu0 %v2554, 2
      %v2565 = vpop.permute.xlu0 %2564
      %2566 = vrot.lane.b32.xlu0 %v2555, 2
      %v2567 = vpop.permute.xlu0 %2566
      %v2568 = vrot.slane %v2561, 4
      %v2569 = vrot.slane %v2563, 4
      %v2570 = vrot.slane %v2565, 4
      %v2571 = vrot.slane %v2567, 4
      %vm2572 = vcmask 15360
      %v2573 = vsel %vm2572, %v2568, %v2561
      %v2574 = vsel %vm364, %v2568, %v2569
      %v2575 = vsel %vm2572, %v2574, %v2563
      %v2576 = vsel %vm2572, %v2570, %v2565
      %v2577 = vsel %vm364, %v2570, %v2571
      %v2578 = vsel %vm2572, %v2577, %v2567
      %vm2583 = vcmask 1043472
      %vm2584 = vmor %vm375, %vm2583
      %2585 = vst.msk [vmem:[#allocation5 + $0x60] sm:$0xff] %vm2584, %v2573
      %2586 = vst.msk [vmem:[#allocation5 + $0x68] sm:$0xff] %vm380, %v2575
      %2587 = vst.msk [vmem:[#allocation5 + $0x70] sm:$0xff] %vm2584, %v2576
      %2588 = vst.msk [vmem:[#allocation5 + $0x78] sm:$0xff] %vm380, %v2578
      %v2589 = vld [vmem:[#allocation3] sm:$0xff]
      %v2590 = vld [vmem:[#allocation3 + $0x8] sm:$0xff]
      %v2591 = vld [vmem:[#allocation3 + $0x10] sm:$0xff]
      %v2592 = vld [vmem:[#allocation3 + $0x18] sm:$0xff]
      %2593 = vst [vmem:[#allocation5 + $0x80] sm:$0xff] %v2589
      %2594 = vst.msk [vmem:[#allocation5 + $0x88] sm:$0xff] %vm380, %v2590
      %2595 = vst [vmem:[#allocation5 + $0x90] sm:$0xff] %v2591
      %2596 = vst.msk [vmem:[#allocation5 + $0x98] sm:$0xff] %vm380, %v2592
      %v2597 = vld [vmem:[#allocation3] sm:$0xff]
      %v2598 = vld [vmem:[#allocation3 + $0x8] sm:$0xff]
      %v2599 = vld [vmem:[#allocation3 + $0x10] sm:$0xff]
      %v2600 = vld [vmem:[#allocation3 + $0x18] sm:$0xff]
      %2605 = vrot.lane.b32.xlu0 %v2597, 126
      %v2606 = vpop.permute.xlu0 %2605
      %2607 = vrot.lane.b32.xlu0 %v2598, 126
      %v2608 = vpop.permute.xlu0 %2607
      %2609 = vrot.lane.b32.xlu0 %v2599, 126
      %v2610 = vpop.permute.xlu0 %2609
      %2611 = vrot.lane.b32.xlu0 %v2600, 126
      %v2612 = vpop.permute.xlu0 %2611
      %v2613 = vrot.slane %v2606, 4
      %v2614 = vrot.slane %v2608, 4
      %v2615 = vrot.slane %v2610, 4
      %v2616 = vrot.slane %v2612, 4
      %v2617 = vsel %vm364, %v2613, %v2614
      %vm2618 = vcmask 1031168
      %v2619 = vsel %vm2618, %v2606, %v2617
      %v2620 = vsel %vm2618, %v2608, %v2614
      %v2621 = vsel %vm364, %v2615, %v2616
      %v2622 = vsel %vm2618, %v2610, %v2621
      %v2623 = vsel %vm2618, %v2612, %v2616
      %2628 = vst [vmem:[#allocation5 + $0xa0] sm:$0xff] %v2619
      %vm2629 = vcmask 801796
      %vm2630 = vmor %vm2629, %vm378
      %2631 = vst.msk [vmem:[#allocation5 + $0xa8] sm:$0xff] %vm2630, %v2620
      %2632 = vst [vmem:[#allocation5 + $0xb0] sm:$0xff] %v2622
      %2633 = vst.msk [vmem:[#allocation5 + $0xb8] sm:$0xff] %vm2630, %v2623
      %v2634 = vld [vmem:[#allocation3] sm:$0xff]
      %v2635 = vld [vmem:[#allocation3 + $0x8] sm:$0xff]
      %v2636 = vld [vmem:[#allocation3 + $0x10] sm:$0xff]
      %v2637 = vld [vmem:[#allocation3 + $0x18] sm:$0xff]
      %2642 = vrot.lane.b32.xlu0 %v2634, 86
      %v2643 = vpop.permute.xlu0 %2642
      %2644 = vrot.lane.b32.xlu0 %v2635, 86
      %v2645 = vpop.permute.xlu0 %2644
      %2646 = vrot.lane.b32.xlu0 %v2636, 86
      %v2647 = vpop.permute.xlu0 %2646
      %2648 = vrot.lane.b32.xlu0 %v2637, 86
      %v2649 = vpop.permute.xlu0 %2648
      %v2650 = vrot.slane %v2643, 4
      %v2651 = vrot.slane %v2645, 4
      %v2652 = vrot.slane %v2647, 4
      %v2653 = vrot.slane %v2649, 4
      %v2654 = vsel %vm364, %v2650, %v2651
      %vm2655 = vcmask 703488
      %v2656 = vsel %vm2655, %v2643, %v2654
      %v2657 = vsel %vm2655, %v2645, %v2651
      %v2658 = vsel %vm364, %v2652, %v2653
      %v2659 = vsel %vm2655, %v2647, %v2658
      %v2660 = vsel %vm2655, %v2649, %v2653
      %2665 = vst [vmem:[#allocation5 + $0xc0] sm:$0xff] %v2656
      %vm2666 = vcmask 474116
      %vm2667 = vmor %vm2666, %vm378
      %2668 = vst.msk [vmem:[#allocation5 + $0xc8] sm:$0xff] %vm2667, %v2657
      %2669 = vst [vmem:[#allocation5 + $0xd0] sm:$0xff] %v2659
      %2670 = vst.msk [vmem:[#allocation5 + $0xd8] sm:$0xff] %vm2667, %v2660
      %v2671 = vld [vmem:[#allocation3] sm:$0xff]
      %v2672 = vld [vmem:[#allocation3 + $0x8] sm:$0xff]
      %v2673 = vld [vmem:[#allocation3 + $0x10] sm:$0xff]
      %v2674 = vld [vmem:[#allocation3 + $0x18] sm:$0xff]
      %2679 = vrot.lane.b32.xlu0 %v2671, 84
      %v2680 = vpop.permute.xlu0 %2679
      %2681 = vrot.lane.b32.xlu0 %v2672, 84
      %v2682 = vpop.permute.xlu0 %2681
      %2683 = vrot.lane.b32.xlu0 %v2673, 84
      %v2684 = vpop.permute.xlu0 %2683
      %2685 = vrot.lane.b32.xlu0 %v2674, 84
      %v2686 = vpop.permute.xlu0 %2685
      %v2687 = vrot.slane %v2680, 4
      %v2688 = vrot.slane %v2682, 4
      %v2689 = vrot.slane %v2684, 4
      %v2690 = vrot.slane %v2686, 4
      %v2691 = vsel %vm364, %v2687, %v2688
      %vm2692 = vcmask 687104
      %v2693 = vsel %vm2692, %v2680, %v2691
      %v2694 = vsel %vm2692, %v2682, %v2688
      %v2695 = vsel %vm364, %v2689, %v2690
      %v2696 = vsel %vm2692, %v2684, %v2695
      %v2697 = vsel %vm2692, %v2686, %v2690
      %2702 = vst [vmem:[#allocation5 + $0xe0] sm:$0xff] %v2693
      %vm2703 = vcmask 457732
      %vm2704 = vmor %vm2703, %vm378
      %2705 = vst.msk [vmem:[#allocation5 + $0xe8] sm:$0xff] %vm2704, %v2694
      %2706 = vst [vmem:[#allocation5 + $0xf0] sm:$0xff] %v2696
      %2707 = vst.msk [vmem:[#allocation5 + $0xf8] sm:$0xff] %vm2704, %v2697
      %v2708 = vld [vmem:[#allocation3] sm:$0xff]
      %v2709 = vld [vmem:[#allocation3 + $0x8] sm:$0xff]
      %v2710 = vld [vmem:[#allocation3 + $0x10] sm:$0xff]
      %v2711 = vld [vmem:[#allocation3 + $0x18] sm:$0xff]
      %2716 = vrot.lane.b32.xlu0 %v2708, 82
      %v2717 = vpop.permute.xlu0 %2716
      %2718 = vrot.lane.b32.xlu0 %v2709, 82
      %v2719 = vpop.permute.xlu0 %2718
      %2720 = vrot.lane.b32.xlu0 %v2710, 82
      %v2721 = vpop.permute.xlu0 %2720
      %2722 = vrot.lane.b32.xlu0 %v2711, 82
      %v2723 = vpop.permute.xlu0 %2722
      %v2724 = vrot.slane %v2717, 4
      %v2725 = vrot.slane %v2719, 4
      %v2726 = vrot.slane %v2721, 4
      %v2727 = vrot.slane %v2723, 4
      %v2728 = vsel %vm364, %v2724, %v2725
      %vm2729 = vcmask 670720
      %v2730 = vsel %vm2729, %v2717, %v2728
      %v2731 = vsel %vm2729, %v2719, %v2725
      %v2732 = vsel %vm364, %v2726, %v2727
      %v2733 = vsel %vm2729, %v2721, %v2732
      %v2734 = vsel %vm2729, %v2723, %v2727
      %2739 = vst [vmem:[#allocation5 + $0x100] sm:$0xff] %v2730
      %vm2740 = vcmask 441348
      %vm2741 = vmor %vm2740, %vm378
      %2742 = vst.msk [vmem:[#allocation5 + $0x108] sm:$0xff] %vm2741, %v2731
      %2743 = vst [vmem:[#allocation5 + $0x110] sm:$0xff] %v2733
      %2744 = vst.msk [vmem:[#allocation5 + $0x118] sm:$0xff] %vm2741, %v2734
      %v2745 = vld [vmem:[#allocation5] sm:$0xff]
      %v2746 = vld [vmem:[#allocation5 + $0x8] sm:$0xff]
      %v2747 = vld [vmem:[#allocation5 + $0x10] sm:$0xff]
      %v2748 = vld [vmem:[#allocation5 + $0x18] sm:$0xff]
      %v2749 = vld [vmem:[#allocation5 + $0x20] sm:$0xff]
      %v2750 = vld [vmem:[#allocation5 + $0x28] sm:$0xff]
      %v2751 = vld [vmem:[#allocation5 + $0x30] sm:$0xff]
      %v2752 = vld [vmem:[#allocation5 + $0x38] sm:$0xff]
      %v2753 = vld [vmem:[#allocation5 + $0x40] sm:$0xff]
      %v2754 = vld [vmem:[#allocation5 + $0x48] sm:$0xff]
      %v2755 = vld [vmem:[#allocation5 + $0x50] sm:$0xff]
      %v2756 = vld [vmem:[#allocation5 + $0x58] sm:$0xff]
      %v2757 = vld [vmem:[#allocation5 + $0x60] sm:$0xff]
      %v2758 = vld [vmem:[#allocation5 + $0x68] sm:$0xff]
      %v2759 = vld [vmem:[#allocation5 + $0x70] sm:$0xff]
      %v2760 = vld [vmem:[#allocation5 + $0x78] sm:$0xff]
      %v2761 = vld [vmem:[#allocation5 + $0x80] sm:$0xff]
      %v2762 = vld [vmem:[#allocation5 + $0x88] sm:$0xff]
      %v2763 = vld [vmem:[#allocation5 + $0x90] sm:$0xff]
      %v2764 = vld [vmem:[#allocation5 + $0x98] sm:$0xff]
      %v2765 = vld [vmem:[#allocation5 + $0xa0] sm:$0xff]
      %v2766 = vld [vmem:[#allocation5 + $0xa8] sm:$0xff]
      %v2767 = vld [vmem:[#allocation5 + $0xb0] sm:$0xff]
      %v2768 = vld [vmem:[#allocation5 + $0xb8] sm:$0xff]
      %v2769 = vld [vmem:[#allocation5 + $0xc0] sm:$0xff]
      %v2770 = vld [vmem:[#allocation5 + $0xc8] sm:$0xff]
      %v2771 = vld [vmem:[#allocation5 + $0xd0] sm:$0xff]
      %v2772 = vld [vmem:[#allocation5 + $0xd8] sm:$0xff]
      %v2773 = vld [vmem:[#allocation5 + $0xe0] sm:$0xff]
      %v2774 = vld [vmem:[#allocation5 + $0xe8] sm:$0xff]
      %v2775 = vld [vmem:[#allocation5 + $0xf0] sm:$0xff]
      %v2776 = vld [vmem:[#allocation5 + $0xf8] sm:$0xff]
      %v2777 = vld [vmem:[#allocation5 + $0x100] sm:$0xff]
      %v2778 = vld [vmem:[#allocation5 + $0x108] sm:$0xff]
      %v2779 = vld [vmem:[#allocation5 + $0x110] sm:$0xff]
      %v2780 = vld [vmem:[#allocation5 + $0x118] sm:$0xff]
      %v2783 = vunpack.c.l.b16 %v2433
      %v2784 = vunpack.c.h.b16 %v2433
      %v2785 = vunpack.c.l.b16 %v2434
      %v2786 = vunpack.c.h.b16 %v2434
      %v2787 = vpack.c.b16 %v2785, %v2783
      %v2788 = vpack.c.b16 %v2786, %v2784
      %v2826 = vunpack.c.l.b16 %v2745
      %v2827 = vunpack.c.h.b16 %v2745
      %v2828 = vunpack.c.l.b16 %v2746
      %v2829 = vunpack.c.h.b16 %v2746
      %v2830 = vunpack.c.l.b16 %v2747
      %v2831 = vunpack.c.h.b16 %v2747
      %v2832 = vunpack.c.l.b16 %v2748
      %v2833 = vunpack.c.h.b16 %v2748
      %v2834 = vunpack.c.l.b16 %v2749
      %v2835 = vunpack.c.h.b16 %v2749
      %v2836 = vunpack.c.l.b16 %v2750
      %v2837 = vunpack.c.h.b16 %v2750
      %v2838 = vunpack.c.l.b16 %v2751
      %v2839 = vunpack.c.h.b16 %v2751
      %v2840 = vunpack.c.l.b16 %v2752
      %v2841 = vunpack.c.h.b16 %v2752
      %v2842 = vunpack.c.l.b16 %v2753
      %v2843 = vunpack.c.h.b16 %v2753
      %v2844 = vunpack.c.l.b16 %v2754
      %v2845 = vunpack.c.h.b16 %v2754
      %v2846 = vunpack.c.l.b16 %v2755
      %v2847 = vunpack.c.h.b16 %v2755
      %v2848 = vunpack.c.l.b16 %v2756
      %v2849 = vunpack.c.h.b16 %v2756
      %v2850 = vunpack.c.l.b16 %v2757
      %v2851 = vunpack.c.h.b16 %v2757
      %v2852 = vunpack.c.l.b16 %v2758
      %v2853 = vunpack.c.h.b16 %v2758
      %v2854 = vunpack.c.l.b16 %v2759
      %v2855 = vunpack.c.h.b16 %v2759
      %v2856 = vunpack.c.l.b16 %v2760
      %v2857 = vunpack.c.h.b16 %v2760
      %v2858 = vunpack.c.l.b16 %v2761
      %v2859 = vunpack.c.h.b16 %v2761
      %v2860 = vunpack.c.l.b16 %v2762
      %v2861 = vunpack.c.h.b16 %v2762
      %v2862 = vunpack.c.l.b16 %v2763
      %v2863 = vunpack.c.h.b16 %v2763
      %v2864 = vunpack.c.l.b16 %v2764
      %v2865 = vunpack.c.h.b16 %v2764
      %v2866 = vunpack.c.l.b16 %v2765
      %v2867 = vunpack.c.h.b16 %v2765
      %v2868 = vunpack.c.l.b16 %v2766
      %v2869 = vunpack.c.h.b16 %v2766
      %v2870 = vunpack.c.l.b16 %v2767
      %v2871 = vunpack.c.h.b16 %v2767
      %v2872 = vunpack.c.l.b16 %v2768
      %v2873 = vunpack.c.h.b16 %v2768
      %v2874 = vunpack.c.l.b16 %v2769
      %v2875 = vunpack.c.h.b16 %v2769
      %v2876 = vunpack.c.l.b16 %v2770
      %v2877 = vunpack.c.h.b16 %v2770
      %v2878 = vunpack.c.l.b16 %v2771
      %v2879 = vunpack.c.h.b16 %v2771
      %v2880 = vunpack.c.l.b16 %v2772
      %v2881 = vunpack.c.h.b16 %v2772
      %v2882 = vunpack.c.l.b16 %v2773
      %v2883 = vunpack.c.h.b16 %v2773
      %v2884 = vunpack.c.l.b16 %v2774
      %v2885 = vunpack.c.h.b16 %v2774
      %v2886 = vunpack.c.l.b16 %v2775
      %v2887 = vunpack.c.h.b16 %v2775
      %v2888 = vunpack.c.l.b16 %v2776
      %v2889 = vunpack.c.h.b16 %v2776
      %v2890 = vunpack.c.l.b16 %v2777
      %v2891 = vunpack.c.h.b16 %v2777
      %v2892 = vunpack.c.l.b16 %v2778
      %v2893 = vunpack.c.h.b16 %v2778
      %v2894 = vunpack.c.l.b16 %v2779
      %v2895 = vunpack.c.h.b16 %v2779
      %v2896 = vunpack.c.l.b16 %v2780
      %v2897 = vunpack.c.h.b16 %v2780
      %v2898 = vpack.c.b16 %v2830, %v2826
      %v2899 = vpack.c.b16 %v2831, %v2827
      %v2900 = vpack.c.b16 %v2832, %v2828
      %v2901 = vpack.c.b16 %v2833, %v2829
      %v2902 = vpack.c.b16 %v2838, %v2834
      %v2903 = vpack.c.b16 %v2839, %v2835
      %v2904 = vpack.c.b16 %v2840, %v2836
      %v2905 = vpack.c.b16 %v2841, %v2837
      %v2906 = vpack.c.b16 %v2846, %v2842
      %v2907 = vpack.c.b16 %v2847, %v2843
      %v2908 = vpack.c.b16 %v2848, %v2844
      %v2909 = vpack.c.b16 %v2849, %v2845
      %v2910 = vpack.c.b16 %v2854, %v2850
      %v2911 = vpack.c.b16 %v2855, %v2851
      %v2912 = vpack.c.b16 %v2856, %v2852
      %v2913 = vpack.c.b16 %v2857, %v2853
      %v2914 = vpack.c.b16 %v2862, %v2858
      %v2915 = vpack.c.b16 %v2863, %v2859
      %v2916 = vpack.c.b16 %v2864, %v2860
      %v2917 = vpack.c.b16 %v2865, %v2861
      %v2918 = vpack.c.b16 %v2870, %v2866
      %v2919 = vpack.c.b16 %v2871, %v2867
      %v2920 = vpack.c.b16 %v2872, %v2868
      %v2921 = vpack.c.b16 %v2873, %v2869
      %v2922 = vpack.c.b16 %v2878, %v2874
      %v2923 = vpack.c.b16 %v2879, %v2875
      %v2924 = vpack.c.b16 %v2880, %v2876
      %v2925 = vpack.c.b16 %v2881, %v2877
      %v2926 = vpack.c.b16 %v2886, %v2882
      %v2927 = vpack.c.b16 %v2887, %v2883
      %v2928 = vpack.c.b16 %v2888, %v2884
      %v2929 = vpack.c.b16 %v2889, %v2885
      %v2930 = vpack.c.b16 %v2894, %v2890
      %v2931 = vpack.c.b16 %v2895, %v2891
      %v2932 = vpack.c.b16 %v2896, %v2892
      %v2933 = vpack.c.b16 %v2897, %v2893
      %v2971 = vsel %vm876, %v2788, 0
      %2973 = vmatprep.subr.bf16.mxu0 %v2927
      %2974 = vmatpush1.bf16.msra.mxu0 %v2926
      %2975 = vmatprep.subr.bf16.mxu0 %v2923
      %2976 = vmatpush1.bf16.msra.mxu0 %v2922
      %2977 = vmatprep.subr.bf16.mxu0 %v2919
      %2978 = vmatpush1.bf16.msra.mxu0 %v2918
      %2979 = vmatprep.subr.bf16.mxu0 %v2915
      %2980 = vmatpush1.bf16.msra.mxu0 %v2914
      %2981 = vmatprep.subr.bf16.mxu0 %v2911
      %2982 = vmatpush1.bf16.msra.mxu0 %v2910
      %2983 = vmatprep.subr.bf16.mxu0 %v2907
      %2984 = vmatpush1.bf16.msra.mxu0 %v2906
      %2985 = vmatprep.subr.bf16.mxu0 %v2903
      %2986 = vmatpush1.bf16.msra.mxu0 %v2902
      %2987 = vmatprep.subr.bf16.mxu0 %v2899
      %2988 = vmatpush1.bf16.msra.mxu0 %v2898
      %2989 = vmatprep.subr.bf16.mxu0 0
      %2990 = vmatpush2.bf16.msra.mxu0 0
      %2991 = vmatprep.subr.bf16.mxu0 0
      %2992 = vmatpush2.bf16.msra.mxu0 0
      %2993 = vmatprep.subr.bf16.mxu0 0
      %2994 = vmatpush2.bf16.msra.mxu0 0
      %2995 = vmatprep.subr.bf16.mxu0 0
      %2996 = vmatpush2.bf16.msra.mxu0 0
      %2997 = vmatprep.subr.bf16.mxu0 0
      %2998 = vmatpush2.bf16.msra.mxu0 0
      %2999 = vmatprep.subr.bf16.mxu0 0
      %3000 = vmatpush2.bf16.msra.mxu0 0
      %3001 = vmatprep.subr.bf16.mxu0 0
      %3002 = vmatpush2.bf16.msra.mxu0 0
      %3003 = vmatprep.subr.bf16.mxu0 %v2931
      %3004 = vmatpush2.bf16.msra.mxu0 %v2930
      %3005 = vmatprep.mubr.bf16.mxu0 %v2971
      %3006 = vmatmul.mubr.bf16.gmra.mxu0 %v2787
      %v3007 = vpop.f32.mrf.mxu0
      %v3008 = vadd.f32 0.0, %v3007
      %v3009 = vpop.f32.mrf.mxu0
      %v3010 = vadd.f32 0.0, %v3009
      %v3011 = vpop.f32.mrf.mxu0
      %v3012 = vadd.f32 0.0, %v3011
      %v3013 = vpop.f32.mrf.mxu0
      %v3014 = vadd.f32 0.0, %v3013
      %3015 = vdwg.mxu0
      %3016 = vmatprep.subr.bf16.mxu0 %v2929
      %3017 = vmatpush1.bf16.msra.mxu0 %v2928
      %3018 = vmatprep.subr.bf16.mxu0 %v2925
      %3019 = vmatpush1.bf16.msra.mxu0 %v2924
      %3020 = vmatprep.subr.bf16.mxu0 %v2921
      %3021 = vmatpush1.bf16.msra.mxu0 %v2920
      %3022 = vmatprep.subr.bf16.mxu0 %v2917
      %3023 = vmatpush1.bf16.msra.mxu0 %v2916
      %3024 = vmatprep.subr.bf16.mxu0 %v2913
      %3025 = vmatpush1.bf16.msra.mxu0 %v2912
      %3026 = vmatprep.subr.bf16.mxu0 %v2909
      %3027 = vmatpush1.bf16.msra.mxu0 %v2908
      %3028 = vmatprep.subr.bf16.mxu0 %v2905
      %3029 = vmatpush1.bf16.msra.mxu0 %v2904
      %3030 = vmatprep.subr.bf16.mxu0 %v2901
      %3031 = vmatpush1.bf16.msra.mxu0 %v2900
      %3032 = vmatprep.subr.bf16.mxu0 0
      %3033 = vmatpush2.bf16.msra.mxu0 0
      %3034 = vmatprep.subr.bf16.mxu0 0
      %3035 = vmatpush2.bf16.msra.mxu0 0
      %3036 = vmatprep.subr.bf16.mxu0 0
      %3037 = vmatpush2.bf16.msra.mxu0 0
      %3038 = vmatprep.subr.bf16.mxu0 0
      %3039 = vmatpush2.bf16.msra.mxu0 0
      %3040 = vmatprep.subr.bf16.mxu0 0
      %3041 = vmatpush2.bf16.msra.mxu0 0
      %3042 = vmatprep.subr.bf16.mxu0 0
      %3043 = vmatpush2.bf16.msra.mxu0 0
      %3044 = vmatprep.subr.bf16.mxu0 0
      %3045 = vmatpush2.bf16.msra.mxu0 0
      %3046 = vmatprep.subr.bf16.mxu0 %v2933
      %3047 = vmatpush2.bf16.msra.mxu0 %v2932
      %3048 = vmatprep.mubr.bf16.mxu0 %v2971
      %3049 = vmatmul.mubr.bf16.gmra.mxu0 %v2787
      %v3050 = vpop.f32.mrf.mxu0
      %v3051 = vadd.f32 0.0, %v3050
      %v3052 = vpop.f32.mrf.mxu0
      %v3053 = vadd.f32 0.0, %v3052
      %v3054 = vpop.f32.mrf.mxu0
      %v3055 = vadd.f32 0.0, %v3054
      %v3056 = vpop.f32.mrf.mxu0
      %v3057 = vadd.f32 0.0, %v3056
      %3058 = vdwg.mxu0
      %3060 = vset.pattern.permute.xlu0 0
      %3061 = vperm.xlu0 %3060, %v2436
      %v3062 = vpop.permute.xlu0 %3061
      %3065 = vset.pattern.permute.xlu0 0
      %3066 = vperm.xlu0 %3065, %v2437
      %v3067 = vpop.permute.xlu0 %3066
      %v3069 = vmul.f32 %v3008, %v3062
      %v3070 = vmul.f32 %v3010, %v3062
      %v3071 = vmul.f32 %v3051, %v3062
      %v3072 = vmul.f32 %v3053, %v3062
      %v3073 = vmul.f32 %v3012, %v3067
      %v3074 = vmul.f32 %v3014, %v3067
      %v3075 = vmul.f32 %v3055, %v3067
      %v3076 = vmul.f32 %v3057, %v3067
      %3078 = vset.pattern.permute.xlu0 0
      %3079 = vperm.xlu0 %3078, %v2439
      %v3080 = vpop.permute.xlu0 %3079
      %3083 = vset.pattern.permute.xlu0 0
      %3084 = vperm.xlu0 %3083, %v2440
      %v3085 = vpop.permute.xlu0 %3084
      %v3087 = vadd.f32 %v3069, %v3080
      %v3088 = vadd.f32 %v3070, %v3080
      %v3089 = vadd.f32 %v3071, %v3080
      %v3090 = vadd.f32 %v3072, %v3080
      %v3091 = vadd.f32 %v3073, %v3085
      %v3092 = vadd.f32 %v3074, %v3085
      %v3093 = vadd.f32 %v3075, %v3085
      %v3094 = vadd.f32 %v3076, %v3085
      %v3095 = vsel %vm1019, %v3087, 0.0
      %v3096 = vsel %vm1020, %v3088, 0.0
      %v3097 = vsel %vm1021, %v3089, 0.0
      %v3098 = vsel %vm1022, %v3090, 0.0
      %v3099 = vsel %vm1019, %v3091, 0.0
      %v3100 = vsel %vm1020, %v3092, 0.0
      %v3101 = vsel %vm1021, %v3093, 0.0
      %v3102 = vsel %vm1022, %v3094, 0.0
      %v3103 = vpack.c.bf16 %v3099, %v3095
      %v3104 = vpack.c.bf16 %v3100, %v3096
      %v3105 = vpack.c.bf16 %v3101, %v3097
      %v3106 = vpack.c.bf16 %v3102, %v3098
      %v3111 = vunpack.c.l.b16 %v3103
      %v3112 = vunpack.c.l.b16 %v3104
      %v3113 = vunpack.c.l.b16 %v3105
      %v3114 = vunpack.c.l.b16 %v3106
      %v3115 = vunpack.c.h.b16 %v3103
      %v3116 = vunpack.c.h.b16 %v3104
      %v3117 = vunpack.c.h.b16 %v3105
      %v3118 = vunpack.c.h.b16 %v3106
      %v3119 = vpack.c.b16 %v3112, %v3111
      %v3120 = vpack.c.b16 %v3114, %v3113
      %v3121 = vpack.c.b16 %v3116, %v3115
      %v3122 = vpack.c.b16 %v3118, %v3117
      %3127 = vst [vmem:[#allocation4 + $0x20] sm:$0xff] %v3119
      %3128 = vst.msk [vmem:[#allocation4 + $0x28] sm:$0xff] %vm380, %v3120
      %3129 = vst [vmem:[#allocation4 + $0x30] sm:$0xff] %v3121
      %3130 = vst.msk [vmem:[#allocation4 + $0x38] sm:$0xff] %vm380, %v3122
      %s3131 = scalar_lea.vmem %s2, 48
      %v3132 = vld [vmem:[%s3131] sm:$0xff]
      %v3133 = vld [vmem:[%s3131 + $0x8] sm:$0xff]
      %s3134 = scalar_lea.vmem %s4, 64
      %v3135 = vld [vmem:[%s3134] sm:$0xff]
      %v3136 = vld [vmem:[%s3134 + $0x8] sm:$0xff]
      %s3137 = scalar_lea.vmem %s5, 64
      %v3138 = vld [vmem:[%s3137] sm:$0xff]
      %v3139 = vld [vmem:[%s3137 + $0x8] sm:$0xff]
      %v3140 = vld [vmem:[#allocation3] sm:$0xff]
      %v3141 = vld [vmem:[#allocation3 + $0x8] sm:$0xff]
      %v3142 = vld [vmem:[#allocation3 + $0x10] sm:$0xff]
      %v3143 = vld [vmem:[#allocation3 + $0x18] sm:$0xff]
      %3148 = vrot.lane.b32.xlu0 %v3140, 23
      %v3149 = vpop.permute.xlu0 %3148
      %3150 = vrot.lane.b32.xlu0 %v3141, 23
      %v3151 = vpop.permute.xlu0 %3150
      %3152 = vrot.lane.b32.xlu0 %v3142, 23
      %v3153 = vpop.permute.xlu0 %3152
      %3154 = vrot.lane.b32.xlu0 %v3143, 23
      %v3155 = vpop.permute.xlu0 %3154
      %v3156 = vrot.slane %v3149, 4
      %v3157 = vrot.slane %v3151, 4
      %v3158 = vrot.slane %v3153, 4
      %v3159 = vrot.slane %v3155, 4
      %v3160 = vsel %vm362, %v3156, %v3149
      %v3161 = vsel %vm364, %v3156, %v3157
      %v3162 = vsel %vm362, %v3161, %v3151
      %v3163 = vsel %vm362, %v3158, %v3153
      %v3164 = vsel %vm364, %v3158, %v3159
      %v3165 = vsel %vm362, %v3164, %v3155
      %3170 = vst.msk [vmem:[#allocation5] sm:$0xff] %vm376, %v3160
      %3171 = vst.msk [vmem:[#allocation5 + $0x8] sm:$0xff] %vm380, %v3162
      %3172 = vst.msk [vmem:[#allocation5 + $0x10] sm:$0xff] %vm376, %v3163
      %3173 = vst.msk [vmem:[#allocation5 + $0x18] sm:$0xff] %vm380, %v3165
      %v3174 = vld [vmem:[#allocation3] sm:$0xff]
      %v3175 = vld [vmem:[#allocation3 + $0x8] sm:$0xff]
      %v3176 = vld [vmem:[#allocation3 + $0x10] sm:$0xff]
      %v3177 = vld [vmem:[#allocation3 + $0x18] sm:$0xff]
      %3182 = vrot.lane.b32.xlu0 %v3174, 22
      %v3183 = vpop.permute.xlu0 %3182
      %3184 = vrot.lane.b32.xlu0 %v3175, 22
      %v3185 = vpop.permute.xlu0 %3184
      %3186 = vrot.lane.b32.xlu0 %v3176, 22
      %v3187 = vpop.permute.xlu0 %3186
      %3188 = vrot.lane.b32.xlu0 %v3177, 22
      %v3189 = vpop.permute.xlu0 %3188
      %v3190 = vrot.slane %v3183, 4
      %v3191 = vrot.slane %v3185, 4
      %v3192 = vrot.slane %v3187, 4
      %v3193 = vrot.slane %v3189, 4
      %v3194 = vsel %vm404, %v3190, %v3183
      %v3195 = vsel %vm364, %v3190, %v3191
      %v3196 = vsel %vm404, %v3195, %v3185
      %v3197 = vsel %vm404, %v3192, %v3187
      %v3198 = vsel %vm364, %v3192, %v3193
      %v3199 = vsel %vm404, %v3198, %v3189
      %3204 = vst.msk [vmem:[#allocation5 + $0x20] sm:$0xff] %vm416, %v3194
      %3205 = vst.msk [vmem:[#allocation5 + $0x28] sm:$0xff] %vm380, %v3196
      %3206 = vst.msk [vmem:[#allocation5 + $0x30] sm:$0xff] %vm416, %v3197
      %3207 = vst.msk [vmem:[#allocation5 + $0x38] sm:$0xff] %vm380, %v3199
      %v3208 = vld [vmem:[#allocation3] sm:$0xff]
      %v3209 = vld [vmem:[#allocation3 + $0x8] sm:$0xff]
      %v3210 = vld [vmem:[#allocation3 + $0x10] sm:$0xff]
      %v3211 = vld [vmem:[#allocation3 + $0x18] sm:$0xff]
      %3216 = vrot.lane.b32.xlu0 %v3208, 21
      %v3217 = vpop.permute.xlu0 %3216
      %3218 = vrot.lane.b32.xlu0 %v3209, 21
      %v3219 = vpop.permute.xlu0 %3218
      %3220 = vrot.lane.b32.xlu0 %v3210, 21
      %v3221 = vpop.permute.xlu0 %3220
      %3222 = vrot.lane.b32.xlu0 %v3211, 21
      %v3223 = vpop.permute.xlu0 %3222
      %v3224 = vrot.slane %v3217, 4
      %v3225 = vrot.slane %v3219, 4
      %v3226 = vrot.slane %v3221, 4
      %v3227 = vrot.slane %v3223, 4
      %v3228 = vsel %vm441, %v3224, %v3217
      %v3229 = vsel %vm364, %v3224, %v3225
      %v3230 = vsel %vm441, %v3229, %v3219
      %v3231 = vsel %vm441, %v3226, %v3221
      %v3232 = vsel %vm364, %v3226, %v3227
      %v3233 = vsel %vm441, %v3232, %v3223
      %3238 = vst.msk [vmem:[#allocation5 + $0x40] sm:$0xff] %vm453, %v3228
      %3239 = vst.msk [vmem:[#allocation5 + $0x48] sm:$0xff] %vm380, %v3230
      %3240 = vst.msk [vmem:[#allocation5 + $0x50] sm:$0xff] %vm453, %v3231
      %3241 = vst.msk [vmem:[#allocation5 + $0x58] sm:$0xff] %vm380, %v3233
      %v3242 = vld [vmem:[#allocation3] sm:$0xff]
      %v3243 = vld [vmem:[#allocation3 + $0x8] sm:$0xff]
      %v3244 = vld [vmem:[#allocation3 + $0x10] sm:$0xff]
      %v3245 = vld [vmem:[#allocation3 + $0x18] sm:$0xff]
      %3250 = vrot.lane.b32.xlu0 %v3242, 1
      %v3251 = vpop.permute.xlu0 %3250
      %3252 = vrot.lane.b32.xlu0 %v3243, 1
      %v3253 = vpop.permute.xlu0 %3252
      %3254 = vrot.lane.b32.xlu0 %v3244, 1
      %v3255 = vpop.permute.xlu0 %3254
      %3256 = vrot.lane.b32.xlu0 %v3245, 1
      %v3257 = vpop.permute.xlu0 %3256
      %v3258 = vrot.slane %v3251, 4
      %v3259 = vrot.slane %v3253, 4
      %v3260 = vrot.slane %v3255, 4
      %v3261 = vrot.slane %v3257, 4
      %v3262 = vsel %vm478, %v3258, %v3251
      %v3263 = vsel %vm364, %v3258, %v3259
      %v3264 = vsel %vm478, %v3263, %v3253
      %v3265 = vsel %vm478, %v3260, %v3255
      %v3266 = vsel %vm364, %v3260, %v3261
      %v3267 = vsel %vm478, %v3266, %v3257
      %3272 = vst.msk [vmem:[#allocation5 + $0x60] sm:$0xff] %vm490, %v3262
      %3273 = vst.msk [vmem:[#allocation5 + $0x68] sm:$0xff] %vm380, %v3264
      %3274 = vst.msk [vmem:[#allocation5 + $0x70] sm:$0xff] %vm490, %v3265
      %3275 = vst.msk [vmem:[#allocation5 + $0x78] sm:$0xff] %vm380, %v3267
      %v3276 = vld [vmem:[#allocation3] sm:$0xff]
      %v3277 = vld [vmem:[#allocation3 + $0x8] sm:$0xff]
      %v3278 = vld [vmem:[#allocation3 + $0x10] sm:$0xff]
      %v3279 = vld [vmem:[#allocation3 + $0x18] sm:$0xff]
      %3280 = vst [vmem:[#allocation5 + $0x80] sm:$0xff] %v3276
      %3281 = vst.msk [vmem:[#allocation5 + $0x88] sm:$0xff] %vm380, %v3277
      %3282 = vst [vmem:[#allocation5 + $0x90] sm:$0xff] %v3278
      %3283 = vst.msk [vmem:[#allocation5 + $0x98] sm:$0xff] %vm380, %v3279
      %v3284 = vld [vmem:[#allocation3] sm:$0xff]
      %v3285 = vld [vmem:[#allocation3 + $0x8] sm:$0xff]
      %v3286 = vld [vmem:[#allocation3 + $0x10] sm:$0xff]
      %v3287 = vld [vmem:[#allocation3 + $0x18] sm:$0xff]
      %3292 = vrot.lane.b32.xlu0 %v3284, 127
      %v3293 = vpop.permute.xlu0 %3292
      %3294 = vrot.lane.b32.xlu0 %v3285, 127
      %v3295 = vpop.permute.xlu0 %3294
      %3296 = vrot.lane.b32.xlu0 %v3286, 127
      %v3297 = vpop.permute.xlu0 %3296
      %3298 = vrot.lane.b32.xlu0 %v3287, 127
      %v3299 = vpop.permute.xlu0 %3298
      %v3300 = vrot.slane %v3293, 4
      %v3301 = vrot.slane %v3295, 4
      %v3302 = vrot.slane %v3297, 4
      %v3303 = vrot.slane %v3299, 4
      %v3304 = vsel %vm364, %v3300, %v3301
      %v3305 = vsel %vm524, %v3293, %v3304
      %v3306 = vsel %vm524, %v3295, %v3301
      %v3307 = vsel %vm364, %v3302, %v3303
      %v3308 = vsel %vm524, %v3297, %v3307
      %v3309 = vsel %vm524, %v3299, %v3303
      %3314 = vst [vmem:[#allocation5 + $0xa0] sm:$0xff] %v3305
      %3315 = vst.msk [vmem:[#allocation5 + $0xa8] sm:$0xff] %vm536, %v3306
      %3316 = vst [vmem:[#allocation5 + $0xb0] sm:$0xff] %v3308
      %3317 = vst.msk [vmem:[#allocation5 + $0xb8] sm:$0xff] %vm536, %v3309
      %v3318 = vld [vmem:[#allocation3] sm:$0xff]
      %v3319 = vld [vmem:[#allocation3 + $0x8] sm:$0xff]
      %v3320 = vld [vmem:[#allocation3 + $0x10] sm:$0xff]
      %v3321 = vld [vmem:[#allocation3 + $0x18] sm:$0xff]
      %3326 = vrot.lane.b32.xlu0 %v3318, 107
      %v3327 = vpop.permute.xlu0 %3326
      %3328 = vrot.lane.b32.xlu0 %v3319, 107
      %v3329 = vpop.permute.xlu0 %3328
      %3330 = vrot.lane.b32.xlu0 %v3320, 107
      %v3331 = vpop.permute.xlu0 %3330
      %3332 = vrot.lane.b32.xlu0 %v3321, 107
      %v3333 = vpop.permute.xlu0 %3332
      %v3334 = vrot.slane %v3327, 4
      %v3335 = vrot.slane %v3329, 4
      %v3336 = vrot.slane %v3331, 4
      %v3337 = vrot.slane %v3333, 4
      %v3338 = vsel %vm364, %v3334, %v3335
      %v3339 = vsel %vm561, %v3327, %v3338
      %v3340 = vsel %vm561, %v3329, %v3335
      %v3341 = vsel %vm364, %v3336, %v3337
      %v3342 = vsel %vm561, %v3331, %v3341
      %v3343 = vsel %vm561, %v3333, %v3337
      %3348 = vst [vmem:[#allocation5 + $0xc0] sm:$0xff] %v3339
      %3349 = vst.msk [vmem:[#allocation5 + $0xc8] sm:$0xff] %vm573, %v3340
      %3350 = vst [vmem:[#allocation5 + $0xd0] sm:$0xff] %v3342
      %3351 = vst.msk [vmem:[#allocation5 + $0xd8] sm:$0xff] %vm573, %v3343
      %v3352 = vld [vmem:[#allocation3] sm:$0xff]
      %v3353 = vld [vmem:[#allocation3 + $0x8] sm:$0xff]
      %v3354 = vld [vmem:[#allocation3 + $0x10] sm:$0xff]
      %v3355 = vld [vmem:[#allocation3 + $0x18] sm:$0xff]
      %3360 = vrot.lane.b32.xlu0 %v3352, 106
      %v3361 = vpop.permute.xlu0 %3360
      %3362 = vrot.lane.b32.xlu0 %v3353, 106
      %v3363 = vpop.permute.xlu0 %3362
      %3364 = vrot.lane.b32.xlu0 %v3354, 106
      %v3365 = vpop.permute.xlu0 %3364
      %3366 = vrot.lane.b32.xlu0 %v3355, 106
      %v3367 = vpop.permute.xlu0 %3366
      %v3368 = vrot.slane %v3361, 4
      %v3369 = vrot.slane %v3363, 4
      %v3370 = vrot.slane %v3365, 4
      %v3371 = vrot.slane %v3367, 4
      %v3372 = vsel %vm364, %v3368, %v3369
      %v3373 = vsel %vm598, %v3361, %v3372
      %v3374 = vsel %vm598, %v3363, %v3369
      %v3375 = vsel %vm364, %v3370, %v3371
      %v3376 = vsel %vm598, %v3365, %v3375
      %v3377 = vsel %vm598, %v3367, %v3371
      %3382 = vst [vmem:[#allocation5 + $0xe0] sm:$0xff] %v3373
      %3383 = vst.msk [vmem:[#allocation5 + $0xe8] sm:$0xff] %vm610, %v3374
      %3384 = vst [vmem:[#allocation5 + $0xf0] sm:$0xff] %v3376
      %3385 = vst.msk [vmem:[#allocation5 + $0xf8] sm:$0xff] %vm610, %v3377
      %v3386 = vld [vmem:[#allocation3] sm:$0xff]
      %v3387 = vld [vmem:[#allocation3 + $0x8] sm:$0xff]
      %v3388 = vld [vmem:[#allocation3 + $0x10] sm:$0xff]
      %v3389 = vld [vmem:[#allocation3 + $0x18] sm:$0xff]
      %3394 = vrot.lane.b32.xlu0 %v3386, 105
      %v3395 = vpop.permute.xlu0 %3394
      %3396 = vrot.lane.b32.xlu0 %v3387, 105
      %v3397 = vpop.permute.xlu0 %3396
      %3398 = vrot.lane.b32.xlu0 %v3388, 105
      %v3399 = vpop.permute.xlu0 %3398
      %3400 = vrot.lane.b32.xlu0 %v3389, 105
      %v3401 = vpop.permute.xlu0 %3400
      %v3402 = vrot.slane %v3395, 4
      %v3403 = vrot.slane %v3397, 4
      %v3404 = vrot.slane %v3399, 4
      %v3405 = vrot.slane %v3401, 4
      %v3406 = vsel %vm364, %v3402, %v3403
      %v3407 = vsel %vm635, %v3395, %v3406
      %v3408 = vsel %vm635, %v3397, %v3403
      %v3409 = vsel %vm364, %v3404, %v3405
      %v3410 = vsel %vm635, %v3399, %v3409
      %v3411 = vsel %vm635, %v3401, %v3405
      %3416 = vst [vmem:[#allocation5 + $0x100] sm:$0xff] %v3407
      %3417 = vst.msk [vmem:[#allocation5 + $0x108] sm:$0xff] %vm647, %v3408
      %3418 = vst [vmem:[#allocation5 + $0x110] sm:$0xff] %v3410
      %3419 = vst.msk [vmem:[#allocation5 + $0x118] sm:$0xff] %vm647, %v3411
      %v3420 = vld [vmem:[#allocation5] sm:$0xff]
      %v3421 = vld [vmem:[#allocation5 + $0x8] sm:$0xff]
      %v3422 = vld [vmem:[#allocation5 + $0x10] sm:$0xff]
      %v3423 = vld [vmem:[#allocation5 + $0x18] sm:$0xff]
      %v3424 = vld [vmem:[#allocation5 + $0x20] sm:$0xff]
      %v3425 = vld [vmem:[#allocation5 + $0x28] sm:$0xff]
      %v3426 = vld [vmem:[#allocation5 + $0x30] sm:$0xff]
      %v3427 = vld [vmem:[#allocation5 + $0x38] sm:$0xff]
      %v3428 = vld [vmem:[#allocation5 + $0x40] sm:$0xff]
      %v3429 = vld [vmem:[#allocation5 + $0x48] sm:$0xff]
      %v3430 = vld [vmem:[#allocation5 + $0x50] sm:$0xff]
      %v3431 = vld [vmem:[#allocation5 + $0x58] sm:$0xff]
      %v3432 = vld [vmem:[#allocation5 + $0x60] sm:$0xff]
      %v3433 = vld [vmem:[#allocation5 + $0x68] sm:$0xff]
      %v3434 = vld [vmem:[#allocation5 + $0x70] sm:$0xff]
      %v3435 = vld [vmem:[#allocation5 + $0x78] sm:$0xff]
      %v3436 = vld [vmem:[#allocation5 + $0x80] sm:$0xff]
      %v3437 = vld [vmem:[#allocation5 + $0x88] sm:$0xff]
      %v3438 = vld [vmem:[#allocation5 + $0x90] sm:$0xff]
      %v3439 = vld [vmem:[#allocation5 + $0x98] sm:$0xff]
      %v3440 = vld [vmem:[#allocation5 + $0xa0] sm:$0xff]
      %v3441 = vld [vmem:[#allocation5 + $0xa8] sm:$0xff]
      %v3442 = vld [vmem:[#allocation5 + $0xb0] sm:$0xff]
      %v3443 = vld [vmem:[#allocation5 + $0xb8] sm:$0xff]
      %v3444 = vld [vmem:[#allocation5 + $0xc0] sm:$0xff]
      %v3445 = vld [vmem:[#allocation5 + $0xc8] sm:$0xff]
      %v3446 = vld [vmem:[#allocation5 + $0xd0] sm:$0xff]
      %v3447 = vld [vmem:[#allocation5 + $0xd8] sm:$0xff]
      %v3448 = vld [vmem:[#allocation5 + $0xe0] sm:$0xff]
      %v3449 = vld [vmem:[#allocation5 + $0xe8] sm:$0xff]
      %v3450 = vld [vmem:[#allocation5 + $0xf0] sm:$0xff]
      %v3451 = vld [vmem:[#allocation5 + $0xf8] sm:$0xff]
      %v3452 = vld [vmem:[#allocation5 + $0x100] sm:$0xff]
      %v3453 = vld [vmem:[#allocation5 + $0x108] sm:$0xff]
      %v3454 = vld [vmem:[#allocation5 + $0x110] sm:$0xff]
      %v3455 = vld [vmem:[#allocation5 + $0x118] sm:$0xff]
      %v3458 = vunpack.c.l.b16 %v3132
      %v3459 = vunpack.c.h.b16 %v3132
      %v3460 = vunpack.c.l.b16 %v3133
      %v3461 = vunpack.c.h.b16 %v3133
      %v3462 = vpack.c.b16 %v3460, %v3458
      %v3463 = vpack.c.b16 %v3461, %v3459
      %v3501 = vunpack.c.l.b16 %v3420
      %v3502 = vunpack.c.h.b16 %v3420
      %v3503 = vunpack.c.l.b16 %v3421
      %v3504 = vunpack.c.h.b16 %v3421
      %v3505 = vunpack.c.l.b16 %v3422
      %v3506 = vunpack.c.h.b16 %v3422
      %v3507 = vunpack.c.l.b16 %v3423
      %v3508 = vunpack.c.h.b16 %v3423
      %v3509 = vunpack.c.l.b16 %v3424
      %v3510 = vunpack.c.h.b16 %v3424
      %v3511 = vunpack.c.l.b16 %v3425
      %v3512 = vunpack.c.h.b16 %v3425
      %v3513 = vunpack.c.l.b16 %v3426
      %v3514 = vunpack.c.h.b16 %v3426
      %v3515 = vunpack.c.l.b16 %v3427
      %v3516 = vunpack.c.h.b16 %v3427
      %v3517 = vunpack.c.l.b16 %v3428
      %v3518 = vunpack.c.h.b16 %v3428
      %v3519 = vunpack.c.l.b16 %v3429
      %v3520 = vunpack.c.h.b16 %v3429
      %v3521 = vunpack.c.l.b16 %v3430
      %v3522 = vunpack.c.h.b16 %v3430
      %v3523 = vunpack.c.l.b16 %v3431
      %v3524 = vunpack.c.h.b16 %v3431
      %v3525 = vunpack.c.l.b16 %v3432
      %v3526 = vunpack.c.h.b16 %v3432
      %v3527 = vunpack.c.l.b16 %v3433
      %v3528 = vunpack.c.h.b16 %v3433
      %v3529 = vunpack.c.l.b16 %v3434
      %v3530 = vunpack.c.h.b16 %v3434
      %v3531 = vunpack.c.l.b16 %v3435
      %v3532 = vunpack.c.h.b16 %v3435
      %v3533 = vunpack.c.l.b16 %v3436
      %v3534 = vunpack.c.h.b16 %v3436
      %v3535 = vunpack.c.l.b16 %v3437
      %v3536 = vunpack.c.h.b16 %v3437
      %v3537 = vunpack.c.l.b16 %v3438
      %v3538 = vunpack.c.h.b16 %v3438
      %v3539 = vunpack.c.l.b16 %v3439
      %v3540 = vunpack.c.h.b16 %v3439
      %v3541 = vunpack.c.l.b16 %v3440
      %v3542 = vunpack.c.h.b16 %v3440
      %v3543 = vunpack.c.l.b16 %v3441
      %v3544 = vunpack.c.h.b16 %v3441
      %v3545 = vunpack.c.l.b16 %v3442
      %v3546 = vunpack.c.h.b16 %v3442
      %v3547 = vunpack.c.l.b16 %v3443
      %v3548 = vunpack.c.h.b16 %v3443
      %v3549 = vunpack.c.l.b16 %v3444
      %v3550 = vunpack.c.h.b16 %v3444
      %v3551 = vunpack.c.l.b16 %v3445
      %v3552 = vunpack.c.h.b16 %v3445
      %v3553 = vunpack.c.l.b16 %v3446
      %v3554 = vunpack.c.h.b16 %v3446
      %v3555 = vunpack.c.l.b16 %v3447
      %v3556 = vunpack.c.h.b16 %v3447
      %v3557 = vunpack.c.l.b16 %v3448
      %v3558 = vunpack.c.h.b16 %v3448
      %v3559 = vunpack.c.l.b16 %v3449
      %v3560 = vunpack.c.h.b16 %v3449
      %v3561 = vunpack.c.l.b16 %v3450
      %v3562 = vunpack.c.h.b16 %v3450
      %v3563 = vunpack.c.l.b16 %v3451
      %v3564 = vunpack.c.h.b16 %v3451
      %v3565 = vunpack.c.l.b16 %v3452
      %v3566 = vunpack.c.h.b16 %v3452
      %v3567 = vunpack.c.l.b16 %v3453
      %v3568 = vunpack.c.h.b16 %v3453
      %v3569 = vunpack.c.l.b16 %v3454
      %v3570 = vunpack.c.h.b16 %v3454
      %v3571 = vunpack.c.l.b16 %v3455
      %v3572 = vunpack.c.h.b16 %v3455
      %v3573 = vpack.c.b16 %v3505, %v3501
      %v3574 = vpack.c.b16 %v3506, %v3502
      %v3575 = vpack.c.b16 %v3507, %v3503
      %v3576 = vpack.c.b16 %v3508, %v3504
      %v3577 = vpack.c.b16 %v3513, %v3509
      %v3578 = vpack.c.b16 %v3514, %v3510
      %v3579 = vpack.c.b16 %v3515, %v3511
      %v3580 = vpack.c.b16 %v3516, %v3512
      %v3581 = vpack.c.b16 %v3521, %v3517
      %v3582 = vpack.c.b16 %v3522, %v3518
      %v3583 = vpack.c.b16 %v3523, %v3519
      %v3584 = vpack.c.b16 %v3524, %v3520
      %v3585 = vpack.c.b16 %v3529, %v3525
      %v3586 = vpack.c.b16 %v3530, %v3526
      %v3587 = vpack.c.b16 %v3531, %v3527
      %v3588 = vpack.c.b16 %v3532, %v3528
      %v3589 = vpack.c.b16 %v3537, %v3533
      %v3590 = vpack.c.b16 %v3538, %v3534
      %v3591 = vpack.c.b16 %v3539, %v3535
      %v3592 = vpack.c.b16 %v3540, %v3536
      %v3593 = vpack.c.b16 %v3545, %v3541
      %v3594 = vpack.c.b16 %v3546, %v3542
      %v3595 = vpack.c.b16 %v3547, %v3543
      %v3596 = vpack.c.b16 %v3548, %v3544
      %v3597 = vpack.c.b16 %v3553, %v3549
      %v3598 = vpack.c.b16 %v3554, %v3550
      %v3599 = vpack.c.b16 %v3555, %v3551
      %v3600 = vpack.c.b16 %v3556, %v3552
      %v3601 = vpack.c.b16 %v3561, %v3557
      %v3602 = vpack.c.b16 %v3562, %v3558
      %v3603 = vpack.c.b16 %v3563, %v3559
      %v3604 = vpack.c.b16 %v3564, %v3560
      %v3605 = vpack.c.b16 %v3569, %v3565
      %v3606 = vpack.c.b16 %v3570, %v3566
      %v3607 = vpack.c.b16 %v3571, %v3567
      %v3608 = vpack.c.b16 %v3572, %v3568
      %v3646 = vsel %vm876, %v3463, 0
      %3648 = vmatprep.subr.bf16.mxu0 %v3602
      %3649 = vmatpush1.bf16.msra.mxu0 %v3601
      %3650 = vmatprep.subr.bf16.mxu0 %v3598
      %3651 = vmatpush1.bf16.msra.mxu0 %v3597
      %3652 = vmatprep.subr.bf16.mxu0 %v3594
      %3653 = vmatpush1.bf16.msra.mxu0 %v3593
      %3654 = vmatprep.subr.bf16.mxu0 %v3590
      %3655 = vmatpush1.bf16.msra.mxu0 %v3589
      %3656 = vmatprep.subr.bf16.mxu0 %v3586
      %3657 = vmatpush1.bf16.msra.mxu0 %v3585
      %3658 = vmatprep.subr.bf16.mxu0 %v3582
      %3659 = vmatpush1.bf16.msra.mxu0 %v3581
      %3660 = vmatprep.subr.bf16.mxu0 %v3578
      %3661 = vmatpush1.bf16.msra.mxu0 %v3577
      %3662 = vmatprep.subr.bf16.mxu0 %v3574
      %3663 = vmatpush1.bf16.msra.mxu0 %v3573
      %3664 = vmatprep.subr.bf16.mxu0 0
      %3665 = vmatpush2.bf16.msra.mxu0 0
      %3666 = vmatprep.subr.bf16.mxu0 0
      %3667 = vmatpush2.bf16.msra.mxu0 0
      %3668 = vmatprep.subr.bf16.mxu0 0
      %3669 = vmatpush2.bf16.msra.mxu0 0
      %3670 = vmatprep.subr.bf16.mxu0 0
      %3671 = vmatpush2.bf16.msra.mxu0 0
      %3672 = vmatprep.subr.bf16.mxu0 0
      %3673 = vmatpush2.bf16.msra.mxu0 0
      %3674 = vmatprep.subr.bf16.mxu0 0
      %3675 = vmatpush2.bf16.msra.mxu0 0
      %3676 = vmatprep.subr.bf16.mxu0 0
      %3677 = vmatpush2.bf16.msra.mxu0 0
      %3678 = vmatprep.subr.bf16.mxu0 %v3606
      %3679 = vmatpush2.bf16.msra.mxu0 %v3605
      %3680 = vmatprep.mubr.bf16.mxu0 %v3646
      %3681 = vmatmul.mubr.bf16.gmra.mxu0 %v3462
      %v3682 = vpop.f32.mrf.mxu0
      %v3683 = vadd.f32 0.0, %v3682
      %v3684 = vpop.f32.mrf.mxu0
      %v3685 = vadd.f32 0.0, %v3684
      %v3686 = vpop.f32.mrf.mxu0
      %v3687 = vadd.f32 0.0, %v3686
      %v3688 = vpop.f32.mrf.mxu0
      %v3689 = vadd.f32 0.0, %v3688
      %3690 = vdwg.mxu0
      %3691 = vmatprep.subr.bf16.mxu0 %v3604
      %3692 = vmatpush1.bf16.msra.mxu0 %v3603
      %3693 = vmatprep.subr.bf16.mxu0 %v3600
      %3694 = vmatpush1.bf16.msra.mxu0 %v3599
      %3695 = vmatprep.subr.bf16.mxu0 %v3596
      %3696 = vmatpush1.bf16.msra.mxu0 %v3595
      %3697 = vmatprep.subr.bf16.mxu0 %v3592
      %3698 = vmatpush1.bf16.msra.mxu0 %v3591
      %3699 = vmatprep.subr.bf16.mxu0 %v3588
      %3700 = vmatpush1.bf16.msra.mxu0 %v3587
      %3701 = vmatprep.subr.bf16.mxu0 %v3584
      %3702 = vmatpush1.bf16.msra.mxu0 %v3583
      %3703 = vmatprep.subr.bf16.mxu0 %v3580
      %3704 = vmatpush1.bf16.msra.mxu0 %v3579
      %3705 = vmatprep.subr.bf16.mxu0 %v3576
      %3706 = vmatpush1.bf16.msra.mxu0 %v3575
      %3707 = vmatprep.subr.bf16.mxu0 0
      %3708 = vmatpush2.bf16.msra.mxu0 0
      %3709 = vmatprep.subr.bf16.mxu0 0
      %3710 = vmatpush2.bf16.msra.mxu0 0
      %3711 = vmatprep.subr.bf16.mxu0 0
      %3712 = vmatpush2.bf16.msra.mxu0 0
      %3713 = vmatprep.subr.bf16.mxu0 0
      %3714 = vmatpush2.bf16.msra.mxu0 0
      %3715 = vmatprep.subr.bf16.mxu0 0
      %3716 = vmatpush2.bf16.msra.mxu0 0
      %3717 = vmatprep.subr.bf16.mxu0 0
      %3718 = vmatpush2.bf16.msra.mxu0 0
      %3719 = vmatprep.subr.bf16.mxu0 0
      %3720 = vmatpush2.bf16.msra.mxu0 0
      %3721 = vmatprep.subr.bf16.mxu0 %v3608
      %3722 = vmatpush2.bf16.msra.mxu0 %v3607
      %3723 = vmatprep.mubr.bf16.mxu0 %v3646
      %3724 = vmatmul.mubr.bf16.gmra.mxu0 %v3462
      %v3725 = vpop.f32.mrf.mxu0
      %v3726 = vadd.f32 0.0, %v3725
      %v3727 = vpop.f32.mrf.mxu0
      %v3728 = vadd.f32 0.0, %v3727
      %v3729 = vpop.f32.mrf.mxu0
      %v3730 = vadd.f32 0.0, %v3729
      %v3731 = vpop.f32.mrf.mxu0
      %v3732 = vadd.f32 0.0, %v3731
      %3733 = vdwg.mxu0
      %3735 = vset.pattern.permute.xlu0 0
      %3736 = vperm.xlu0 %3735, %v3135
      %v3737 = vpop.permute.xlu0 %3736
      %3740 = vset.pattern.permute.xlu0 0
      %3741 = vperm.xlu0 %3740, %v3136
      %v3742 = vpop.permute.xlu0 %3741
      %v3744 = vmul.f32 %v3683, %v3737
      %v3745 = vmul.f32 %v3685, %v3737
      %v3746 = vmul.f32 %v3726, %v3737
      %v3747 = vmul.f32 %v3728, %v3737
      %v3748 = vmul.f32 %v3687, %v3742
      %v3749 = vmul.f32 %v3689, %v3742
      %v3750 = vmul.f32 %v3730, %v3742
      %v3751 = vmul.f32 %v3732, %v3742
      %3753 = vset.pattern.permute.xlu0 0
      %3754 = vperm.xlu0 %3753, %v3138
      %v3755 = vpop.permute.xlu0 %3754
      %3758 = vset.pattern.permute.xlu0 0
      %3759 = vperm.xlu0 %3758, %v3139
      %v3760 = vpop.permute.xlu0 %3759
      %v3762 = vadd.f32 %v3744, %v3755
      %v3763 = vadd.f32 %v3745, %v3755
      %v3764 = vadd.f32 %v3746, %v3755
      %v3765 = vadd.f32 %v3747, %v3755
      %v3766 = vadd.f32 %v3748, %v3760
      %v3767 = vadd.f32 %v3749, %v3760
      %v3768 = vadd.f32 %v3750, %v3760
      %v3769 = vadd.f32 %v3751, %v3760
      %v3770 = vsel %vm1019, %v3762, 0.0
      %v3771 = vsel %vm1020, %v3763, 0.0
      %v3772 = vsel %vm1021, %v3764, 0.0
      %v3773 = vsel %vm1022, %v3765, 0.0
      %v3774 = vsel %vm1019, %v3766, 0.0
      %v3775 = vsel %vm1020, %v3767, 0.0
      %v3776 = vsel %vm1021, %v3768, 0.0
      %v3777 = vsel %vm1022, %v3769, 0.0
      %v3778 = vpack.c.bf16 %v3774, %v3770
      %v3779 = vpack.c.bf16 %v3775, %v3771
      %v3780 = vpack.c.bf16 %v3776, %v3772
      %v3781 = vpack.c.bf16 %v3777, %v3773
      %v3786 = vunpack.c.l.b16 %v3778
      %v3787 = vunpack.c.l.b16 %v3779
      %v3788 = vunpack.c.l.b16 %v3780
      %v3789 = vunpack.c.l.b16 %v3781
      %v3790 = vunpack.c.h.b16 %v3778
      %v3791 = vunpack.c.h.b16 %v3779
      %v3792 = vunpack.c.h.b16 %v3780
      %v3793 = vunpack.c.h.b16 %v3781
      %v3794 = vpack.c.b16 %v3787, %v3786
      %v3795 = vpack.c.b16 %v3789, %v3788
      %v3796 = vpack.c.b16 %v3791, %v3790
      %v3797 = vpack.c.b16 %v3793, %v3792
      %3802 = vst [vmem:[#allocation4 + $0x40] sm:$0xff] %v3794
      %3803 = vst.msk [vmem:[#allocation4 + $0x48] sm:$0xff] %vm380, %v3795
      %3804 = vst [vmem:[#allocation4 + $0x50] sm:$0xff] %v3796
      %3805 = vst.msk [vmem:[#allocation4 + $0x58] sm:$0xff] %vm380, %v3797
      %v3806 = vld [vmem:[%s3] sm:$0xff]
      %v3807 = vld [vmem:[%s3 + $0x8] sm:$0xff]
      %v3808 = vld [vmem:[%s6] sm:$0xff]
      %v3809 = vld [vmem:[%s7] sm:$0xff]
      %v3810 = vld [vmem:[#allocation4] sm:$0xff]
      %v3811 = vld [vmem:[#allocation4 + $0x8] sm:$0xff]
      %v3812 = vld [vmem:[#allocation4 + $0x10] sm:$0xff]
      %v3813 = vld [vmem:[#allocation4 + $0x18] sm:$0xff]
      %v3814 = vld [vmem:[#allocation4 + $0x20] sm:$0xff]
      %v3815 = vld [vmem:[#allocation4 + $0x28] sm:$0xff]
      %v3816 = vld [vmem:[#allocation4 + $0x30] sm:$0xff]
      %v3817 = vld [vmem:[#allocation4 + $0x38] sm:$0xff]
      %v3818 = vld [vmem:[#allocation4 + $0x40] sm:$0xff]
      %v3819 = vld [vmem:[#allocation4 + $0x48] sm:$0xff]
      %v3820 = vld [vmem:[#allocation4 + $0x50] sm:$0xff]
      %v3821 = vld [vmem:[#allocation4 + $0x58] sm:$0xff]
      %3834 = vrot.lane.b32.xlu0 %v3810, 23
      %v3835 = vpop.permute.xlu0 %3834
      %3836 = vrot.lane.b32.xlu0 %v3811, 23
      %v3837 = vpop.permute.xlu0 %3836
      %3838 = vrot.lane.b32.xlu0 %v3812, 23
      %v3839 = vpop.permute.xlu0 %3838
      %3840 = vrot.lane.b32.xlu0 %v3813, 23
      %v3841 = vpop.permute.xlu0 %3840
      %3842 = vrot.lane.b32.xlu0 %v3814, 23
      %v3843 = vpop.permute.xlu0 %3842
      %3844 = vrot.lane.b32.xlu0 %v3815, 23
      %v3845 = vpop.permute.xlu0 %3844
      %3846 = vrot.lane.b32.xlu0 %v3816, 23
      %v3847 = vpop.permute.xlu0 %3846
      %3848 = vrot.lane.b32.xlu0 %v3817, 23
      %v3849 = vpop.permute.xlu0 %3848
      %3850 = vrot.lane.b32.xlu0 %v3818, 23
      %v3851 = vpop.permute.xlu0 %3850
      %3852 = vrot.lane.b32.xlu0 %v3819, 23
      %v3853 = vpop.permute.xlu0 %3852
      %3854 = vrot.lane.b32.xlu0 %v3820, 23
      %v3855 = vpop.permute.xlu0 %3854
      %3856 = vrot.lane.b32.xlu0 %v3821, 23
      %v3857 = vpop.permute.xlu0 %3856
      %v3858 = vrot.slane %v3835, 4
      %v3859 = vrot.slane %v3837, 4
      %v3860 = vrot.slane %v3839, 4
      %v3861 = vrot.slane %v3841, 4
      %v3862 = vrot.slane %v3843, 4
      %v3863 = vrot.slane %v3845, 4
      %v3864 = vrot.slane %v3847, 4
      %v3865 = vrot.slane %v3849, 4
      %v3866 = vrot.slane %v3851, 4
      %v3867 = vrot.slane %v3853, 4
      %v3868 = vrot.slane %v3855, 4
      %v3869 = vrot.slane %v3857, 4
      %v3870 = vsel %vm362, %v3858, %v3835
      %v3871 = vsel %vm364, %v3858, %v3859
      %v3872 = vsel %vm362, %v3871, %v3837
      %v3873 = vsel %vm362, %v3860, %v3839
      %v3874 = vsel %vm364, %v3860, %v3861
      %v3875 = vsel %vm362, %v3874, %v3841
      %v3876 = vsel %vm362, %v3862, %v3843
      %v3877 = vsel %vm364, %v3862, %v3863
      %v3878 = vsel %vm362, %v3877, %v3845
      %v3879 = vsel %vm362, %v3864, %v3847
      %v3880 = vsel %vm364, %v3864, %v3865
      %v3881 = vsel %vm362, %v3880, %v3849
      %v3882 = vsel %vm362, %v3866, %v3851
      %v3883 = vsel %vm364, %v3866, %v3867
      %v3884 = vsel %vm362, %v3883, %v3853
      %v3885 = vsel %vm362, %v3868, %v3855
      %v3886 = vsel %vm364, %v3868, %v3869
      %v3887 = vsel %vm362, %v3886, %v3857
      %3900 = vst.msk [vmem:[#allocation5] sm:$0xff] %vm376, %v3870
      %3901 = vst.msk [vmem:[#allocation5 + $0x8] sm:$0xff] %vm380, %v3872
      %3902 = vst.msk [vmem:[#allocation5 + $0x10] sm:$0xff] %vm376, %v3873
      %3903 = vst.msk [vmem:[#allocation5 + $0x18] sm:$0xff] %vm380, %v3875
      %3904 = vst.msk [vmem:[#allocation5 + $0x20] sm:$0xff] %vm376, %v3876
      %3905 = vst.msk [vmem:[#allocation5 + $0x28] sm:$0xff] %vm380, %v3878
      %3906 = vst.msk [vmem:[#allocation5 + $0x30] sm:$0xff] %vm376, %v3879
      %3907 = vst.msk [vmem:[#allocation5 + $0x38] sm:$0xff] %vm380, %v3881
      %3908 = vst.msk [vmem:[#allocation5 + $0x40] sm:$0xff] %vm376, %v3882
      %3909 = vst.msk [vmem:[#allocation5 + $0x48] sm:$0xff] %vm380, %v3884
      %3910 = vst.msk [vmem:[#allocation5 + $0x50] sm:$0xff] %vm376, %v3885
      %3911 = vst.msk [vmem:[#allocation5 + $0x58] sm:$0xff] %vm380, %v3887
      %v3912 = vld [vmem:[#allocation4] sm:$0xff]
      %v3913 = vld [vmem:[#allocation4 + $0x8] sm:$0xff]
      %v3914 = vld [vmem:[#allocation4 + $0x10] sm:$0xff]
      %v3915 = vld [vmem:[#allocation4 + $0x18] sm:$0xff]
      %v3916 = vld [vmem:[#allocation4 + $0x20] sm:$0xff]
      %v3917 = vld [vmem:[#allocation4 + $0x28] sm:$0xff]
      %v3918 = vld [vmem:[#allocation4 + $0x30] sm:$0xff]
      %v3919 = vld [vmem:[#allocation4 + $0x38] sm:$0xff]
      %v3920 = vld [vmem:[#allocation4 + $0x40] sm:$0xff]
      %v3921 = vld [vmem:[#allocation4 + $0x48] sm:$0xff]
      %v3922 = vld [vmem:[#allocation4 + $0x50] sm:$0xff]
      %v3923 = vld [vmem:[#allocation4 + $0x58] sm:$0xff]
      %3936 = vrot.lane.b32.xlu0 %v3912, 22
      %v3937 = vpop.permute.xlu0 %3936
      %3938 = vrot.lane.b32.xlu0 %v3913, 22
      %v3939 = vpop.permute.xlu0 %3938
      %3940 = vrot.lane.b32.xlu0 %v3914, 22
      %v3941 = vpop.permute.xlu0 %3940
      %3942 = vrot.lane.b32.xlu0 %v3915, 22
      %v3943 = vpop.permute.xlu0 %3942
      %3944 = vrot.lane.b32.xlu0 %v3916, 22
      %v3945 = vpop.permute.xlu0 %3944
      %3946 = vrot.lane.b32.xlu0 %v3917, 22
      %v3947 = vpop.permute.xlu0 %3946
      %3948 = vrot.lane.b32.xlu0 %v3918, 22
      %v3949 = vpop.permute.xlu0 %3948
      %3950 = vrot.lane.b32.xlu0 %v3919, 22
      %v3951 = vpop.permute.xlu0 %3950
      %3952 = vrot.lane.b32.xlu0 %v3920, 22
      %v3953 = vpop.permute.xlu0 %3952
      %3954 = vrot.lane.b32.xlu0 %v3921, 22
      %v3955 = vpop.permute.xlu0 %3954
      %3956 = vrot.lane.b32.xlu0 %v3922, 22
      %v3957 = vpop.permute.xlu0 %3956
      %3958 = vrot.lane.b32.xlu0 %v3923, 22
      %v3959 = vpop.permute.xlu0 %3958
      %v3960 = vrot.slane %v3937, 4
      %v3961 = vrot.slane %v3939, 4
      %v3962 = vrot.slane %v3941, 4
      %v3963 = vrot.slane %v3943, 4
      %v3964 = vrot.slane %v3945, 4
      %v3965 = vrot.slane %v3947, 4
      %v3966 = vrot.slane %v3949, 4
      %v3967 = vrot.slane %v3951, 4
      %v3968 = vrot.slane %v3953, 4
      %v3969 = vrot.slane %v3955, 4
      %v3970 = vrot.slane %v3957, 4
      %v3971 = vrot.slane %v3959, 4
      %v3972 = vsel %vm404, %v3960, %v3937
      %v3973 = vsel %vm364, %v3960, %v3961
      %v3974 = vsel %vm404, %v3973, %v3939
      %v3975 = vsel %vm404, %v3962, %v3941
      %v3976 = vsel %vm364, %v3962, %v3963
      %v3977 = vsel %vm404, %v3976, %v3943
      %v3978 = vsel %vm404, %v3964, %v3945
      %v3979 = vsel %vm364, %v3964, %v3965
      %v3980 = vsel %vm404, %v3979, %v3947
      %v3981 = vsel %vm404, %v3966, %v3949
      %v3982 = vsel %vm364, %v3966, %v3967
      %v3983 = vsel %vm404, %v3982, %v3951
      %v3984 = vsel %vm404, %v3968, %v3953
      %v3985 = vsel %vm364, %v3968, %v3969
      %v3986 = vsel %vm404, %v3985, %v3955
      %v3987 = vsel %vm404, %v3970, %v3957
      %v3988 = vsel %vm364, %v3970, %v3971
      %v3989 = vsel %vm404, %v3988, %v3959
      %4002 = vst.msk [vmem:[#allocation5 + $0x60] sm:$0xff] %vm416, %v3972
      %4003 = vst.msk [vmem:[#allocation5 + $0x68] sm:$0xff] %vm380, %v3974
      %4004 = vst.msk [vmem:[#allocation5 + $0x70] sm:$0xff] %vm416, %v3975
      %4005 = vst.msk [vmem:[#allocation5 + $0x78] sm:$0xff] %vm380, %v3977
      %4006 = vst.msk [vmem:[#allocation5 + $0x80] sm:$0xff] %vm416, %v3978
      %4007 = vst.msk [vmem:[#allocation5 + $0x88] sm:$0xff] %vm380, %v3980
      %4008 = vst.msk [vmem:[#allocation5 + $0x90] sm:$0xff] %vm416, %v3981
      %4009 = vst.msk [vmem:[#allocation5 + $0x98] sm:$0xff] %vm380, %v3983
      %4010 = vst.msk [vmem:[#allocation5 + $0xa0] sm:$0xff] %vm416, %v3984
      %4011 = vst.msk [vmem:[#allocation5 + $0xa8] sm:$0xff] %vm380, %v3986
      %4012 = vst.msk [vmem:[#allocation5 + $0xb0] sm:$0xff] %vm416, %v3987
      %4013 = vst.msk [vmem:[#allocation5 + $0xb8] sm:$0xff] %vm380, %v3989
      %v4014 = vld [vmem:[#allocation4] sm:$0xff]
      %v4015 = vld [vmem:[#allocation4 + $0x8] sm:$0xff]
      %v4016 = vld [vmem:[#allocation4 + $0x10] sm:$0xff]
      %v4017 = vld [vmem:[#allocation4 + $0x18] sm:$0xff]
      %v4018 = vld [vmem:[#allocation4 + $0x20] sm:$0xff]
      %v4019 = vld [vmem:[#allocation4 + $0x28] sm:$0xff]
      %v4020 = vld [vmem:[#allocation4 + $0x30] sm:$0xff]
      %v4021 = vld [vmem:[#allocation4 + $0x38] sm:$0xff]
      %v4022 = vld [vmem:[#allocation4 + $0x40] sm:$0xff]
      %v4023 = vld [vmem:[#allocation4 + $0x48] sm:$0xff]
      %v4024 = vld [vmem:[#allocation4 + $0x50] sm:$0xff]
      %v4025 = vld [vmem:[#allocation4 + $0x58] sm:$0xff]
      %4038 = vrot.lane.b32.xlu0 %v4014, 21
      %v4039 = vpop.permute.xlu0 %4038
      %4040 = vrot.lane.b32.xlu0 %v4015, 21
      %v4041 = vpop.permute.xlu0 %4040
      %4042 = vrot.lane.b32.xlu0 %v4016, 21
      %v4043 = vpop.permute.xlu0 %4042
      %4044 = vrot.lane.b32.xlu0 %v4017, 21
      %v4045 = vpop.permute.xlu0 %4044
      %4046 = vrot.lane.b32.xlu0 %v4018, 21
      %v4047 = vpop.permute.xlu0 %4046
      %4048 = vrot.lane.b32.xlu0 %v4019, 21
      %v4049 = vpop.permute.xlu0 %4048
      %4050 = vrot.lane.b32.xlu0 %v4020, 21
      %v4051 = vpop.permute.xlu0 %4050
      %4052 = vrot.lane.b32.xlu0 %v4021, 21
      %v4053 = vpop.permute.xlu0 %4052
      %4054 = vrot.lane.b32.xlu0 %v4022, 21
      %v4055 = vpop.permute.xlu0 %4054
      %4056 = vrot.lane.b32.xlu0 %v4023, 21
      %v4057 = vpop.permute.xlu0 %4056
      %4058 = vrot.lane.b32.xlu0 %v4024, 21
      %v4059 = vpop.permute.xlu0 %4058
      %4060 = vrot.lane.b32.xlu0 %v4025, 21
      %v4061 = vpop.permute.xlu0 %4060
      %v4062 = vrot.slane %v4039, 4
      %v4063 = vrot.slane %v4041, 4
      %v4064 = vrot.slane %v4043, 4
      %v4065 = vrot.slane %v4045, 4
      %v4066 = vrot.slane %v4047, 4
      %v4067 = vrot.slane %v4049, 4
      %v4068 = vrot.slane %v4051, 4
      %v4069 = vrot.slane %v4053, 4
      %v4070 = vrot.slane %v4055, 4
      %v4071 = vrot.slane %v4057, 4
      %v4072 = vrot.slane %v4059, 4
      %v4073 = vrot.slane %v4061, 4
      %v4074 = vsel %vm441, %v4062, %v4039
      %v4075 = vsel %vm364, %v4062, %v4063
      %v4076 = vsel %vm441, %v4075, %v4041
      %v4077 = vsel %vm441, %v4064, %v4043
      %v4078 = vsel %vm364, %v4064, %v4065
      %v4079 = vsel %vm441, %v4078, %v4045
      %v4080 = vsel %vm441, %v4066, %v4047
      %v4081 = vsel %vm364, %v4066, %v4067
      %v4082 = vsel %vm441, %v4081, %v4049
      %v4083 = vsel %vm441, %v4068, %v4051
      %v4084 = vsel %vm364, %v4068, %v4069
      %v4085 = vsel %vm441, %v4084, %v4053
      %v4086 = vsel %vm441, %v4070, %v4055
      %v4087 = vsel %vm364, %v4070, %v4071
      %v4088 = vsel %vm441, %v4087, %v4057
      %v4089 = vsel %vm441, %v4072, %v4059
      %v4090 = vsel %vm364, %v4072, %v4073
      %v4091 = vsel %vm441, %v4090, %v4061
      %4104 = vst.msk [vmem:[#allocation5 + $0xc0] sm:$0xff] %vm453, %v4074
      %4105 = vst.msk [vmem:[#allocation5 + $0xc8] sm:$0xff] %vm380, %v4076
      %4106 = vst.msk [vmem:[#allocation5 + $0xd0] sm:$0xff] %vm453, %v4077
      %4107 = vst.msk [vmem:[#allocation5 + $0xd8] sm:$0xff] %vm380, %v4079
      %4108 = vst.msk [vmem:[#allocation5 + $0xe0] sm:$0xff] %vm453, %v4080
      %4109 = vst.msk [vmem:[#allocation5 + $0xe8] sm:$0xff] %vm380, %v4082
      %4110 = vst.msk [vmem:[#allocation5 + $0xf0] sm:$0xff] %vm453, %v4083
      %4111 = vst.msk [vmem:[#allocation5 + $0xf8] sm:$0xff] %vm380, %v4085
      %4112 = vst.msk [vmem:[#allocation5 + $0x100] sm:$0xff] %vm453, %v4086
      %4113 = vst.msk [vmem:[#allocation5 + $0x108] sm:$0xff] %vm380, %v4088
      %4114 = vst.msk [vmem:[#allocation5 + $0x110] sm:$0xff] %vm453, %v4089
      %4115 = vst.msk [vmem:[#allocation5 + $0x118] sm:$0xff] %vm380, %v4091
      %v4116 = vld [vmem:[#allocation4] sm:$0xff]
      %v4117 = vld [vmem:[#allocation4 + $0x8] sm:$0xff]
      %v4118 = vld [vmem:[#allocation4 + $0x10] sm:$0xff]
      %v4119 = vld [vmem:[#allocation4 + $0x18] sm:$0xff]
      %v4120 = vld [vmem:[#allocation4 + $0x20] sm:$0xff]
      %v4121 = vld [vmem:[#allocation4 + $0x28] sm:$0xff]
      %v4122 = vld [vmem:[#allocation4 + $0x30] sm:$0xff]
      %v4123 = vld [vmem:[#allocation4 + $0x38] sm:$0xff]
      %v4124 = vld [vmem:[#allocation4 + $0x40] sm:$0xff]
      %v4125 = vld [vmem:[#allocation4 + $0x48] sm:$0xff]
      %v4126 = vld [vmem:[#allocation4 + $0x50] sm:$0xff]
      %v4127 = vld [vmem:[#allocation4 + $0x58] sm:$0xff]
      %4140 = vrot.lane.b32.xlu0 %v4116, 1
      %v4141 = vpop.permute.xlu0 %4140
      %4142 = vrot.lane.b32.xlu0 %v4117, 1
      %v4143 = vpop.permute.xlu0 %4142
      %4144 = vrot.lane.b32.xlu0 %v4118, 1
      %v4145 = vpop.permute.xlu0 %4144
      %4146 = vrot.lane.b32.xlu0 %v4119, 1
      %v4147 = vpop.permute.xlu0 %4146
      %4148 = vrot.lane.b32.xlu0 %v4120, 1
      %v4149 = vpop.permute.xlu0 %4148
      %4150 = vrot.lane.b32.xlu0 %v4121, 1
      %v4151 = vpop.permute.xlu0 %4150
      %4152 = vrot.lane.b32.xlu0 %v4122, 1
      %v4153 = vpop.permute.xlu0 %4152
      %4154 = vrot.lane.b32.xlu0 %v4123, 1
      %v4155 = vpop.permute.xlu0 %4154
      %4156 = vrot.lane.b32.xlu0 %v4124, 1
      %v4157 = vpop.permute.xlu0 %4156
      %4158 = vrot.lane.b32.xlu0 %v4125, 1
      %v4159 = vpop.permute.xlu0 %4158
      %4160 = vrot.lane.b32.xlu0 %v4126, 1
      %v4161 = vpop.permute.xlu0 %4160
      %4162 = vrot.lane.b32.xlu0 %v4127, 1
      %v4163 = vpop.permute.xlu0 %4162
      %v4164 = vrot.slane %v4141, 4
      %v4165 = vrot.slane %v4143, 4
      %v4166 = vrot.slane %v4145, 4
      %v4167 = vrot.slane %v4147, 4
      %v4168 = vrot.slane %v4149, 4
      %v4169 = vrot.slane %v4151, 4
      %v4170 = vrot.slane %v4153, 4
      %v4171 = vrot.slane %v4155, 4
      %v4172 = vrot.slane %v4157, 4
      %v4173 = vrot.slane %v4159, 4
      %v4174 = vrot.slane %v4161, 4
      %v4175 = vrot.slane %v4163, 4
      %v4176 = vsel %vm478, %v4164, %v4141
      %v4177 = vsel %vm364, %v4164, %v4165
      %v4178 = vsel %vm478, %v4177, %v4143
      %v4179 = vsel %vm478, %v4166, %v4145
      %v4180 = vsel %vm364, %v4166, %v4167
      %v4181 = vsel %vm478, %v4180, %v4147
      %v4182 = vsel %vm478, %v4168, %v4149
      %v4183 = vsel %vm364, %v4168, %v4169
      %v4184 = vsel %vm478, %v4183, %v4151
      %v4185 = vsel %vm478, %v4170, %v4153
      %v4186 = vsel %vm364, %v4170, %v4171
      %v4187 = vsel %vm478, %v4186, %v4155
      %v4188 = vsel %vm478, %v4172, %v4157
      %v4189 = vsel %vm364, %v4172, %v4173
      %v4190 = vsel %vm478, %v4189, %v4159
      %v4191 = vsel %vm478, %v4174, %v4161
      %v4192 = vsel %vm364, %v4174, %v4175
      %v4193 = vsel %vm478, %v4192, %v4163
      %4206 = vst.msk [vmem:[#allocation5 + $0x120] sm:$0xff] %vm490, %v4176
      %4207 = vst.msk [vmem:[#allocation5 + $0x128] sm:$0xff] %vm380, %v4178
      %4208 = vst.msk [vmem:[#allocation5 + $0x130] sm:$0xff] %vm490, %v4179
      %4209 = vst.msk [vmem:[#allocation5 + $0x138] sm:$0xff] %vm380, %v4181
      %4210 = vst.msk [vmem:[#allocation5 + $0x140] sm:$0xff] %vm490, %v4182
      %4211 = vst.msk [vmem:[#allocation5 + $0x148] sm:$0xff] %vm380, %v4184
      %4212 = vst.msk [vmem:[#allocation5 + $0x150] sm:$0xff] %vm490, %v4185
      %4213 = vst.msk [vmem:[#allocation5 + $0x158] sm:$0xff] %vm380, %v4187
      %4214 = vst.msk [vmem:[#allocation5 + $0x160] sm:$0xff] %vm490, %v4188
      %4215 = vst.msk [vmem:[#allocation5 + $0x168] sm:$0xff] %vm380, %v4190
      %4216 = vst.msk [vmem:[#allocation5 + $0x170] sm:$0xff] %vm490, %v4191
      %4217 = vst.msk [vmem:[#allocation5 + $0x178] sm:$0xff] %vm380, %v4193
      %v4218 = vld [vmem:[#allocation4] sm:$0xff]
      %v4219 = vld [vmem:[#allocation4 + $0x8] sm:$0xff]
      %v4220 = vld [vmem:[#allocation4 + $0x10] sm:$0xff]
      %v4221 = vld [vmem:[#allocation4 + $0x18] sm:$0xff]
      %v4222 = vld [vmem:[#allocation4 + $0x20] sm:$0xff]
      %v4223 = vld [vmem:[#allocation4 + $0x28] sm:$0xff]
      %v4224 = vld [vmem:[#allocation4 + $0x30] sm:$0xff]
      %v4225 = vld [vmem:[#allocation4 + $0x38] sm:$0xff]
      %v4226 = vld [vmem:[#allocation4 + $0x40] sm:$0xff]
      %v4227 = vld [vmem:[#allocation4 + $0x48] sm:$0xff]
      %v4228 = vld [vmem:[#allocation4 + $0x50] sm:$0xff]
      %v4229 = vld [vmem:[#allocation4 + $0x58] sm:$0xff]
      %4230 = vst [vmem:[#allocation5 + $0x180] sm:$0xff] %v4218
      %4231 = vst.msk [vmem:[#allocation5 + $0x188] sm:$0xff] %vm380, %v4219
      %4232 = vst [vmem:[#allocation5 + $0x190] sm:$0xff] %v4220
      %4233 = vst.msk [vmem:[#allocation5 + $0x198] sm:$0xff] %vm380, %v4221
      %4234 = vst [vmem:[#allocation5 + $0x1a0] sm:$0xff] %v4222
      %4235 = vst.msk [vmem:[#allocation5 + $0x1a8] sm:$0xff] %vm380, %v4223
      %4236 = vst [vmem:[#allocation5 + $0x1b0] sm:$0xff] %v4224
      %4237 = vst.msk [vmem:[#allocation5 + $0x1b8] sm:$0xff] %vm380, %v4225
      %4238 = vst [vmem:[#allocation5 + $0x1c0] sm:$0xff] %v4226
      %4239 = vst.msk [vmem:[#allocation5 + $0x1c8] sm:$0xff] %vm380, %v4227
      %4240 = vst [vmem:[#allocation5 + $0x1d0] sm:$0xff] %v4228
      %4241 = vst.msk [vmem:[#allocation5 + $0x1d8] sm:$0xff] %vm380, %v4229
      %v4242 = vld [vmem:[#allocation4] sm:$0xff]
      %v4243 = vld [vmem:[#allocation4 + $0x8] sm:$0xff]
      %v4244 = vld [vmem:[#allocation4 + $0x10] sm:$0xff]
      %v4245 = vld [vmem:[#allocation4 + $0x18] sm:$0xff]
      %v4246 = vld [vmem:[#allocation4 + $0x20] sm:$0xff]
      %v4247 = vld [vmem:[#allocation4 + $0x28] sm:$0xff]
      %v4248 = vld [vmem:[#allocation4 + $0x30] sm:$0xff]
      %v4249 = vld [vmem:[#allocation4 + $0x38] sm:$0xff]
      %v4250 = vld [vmem:[#allocation4 + $0x40] sm:$0xff]
      %v4251 = vld [vmem:[#allocation4 + $0x48] sm:$0xff]
      %v4252 = vld [vmem:[#allocation4 + $0x50] sm:$0xff]
      %v4253 = vld [vmem:[#allocation4 + $0x58] sm:$0xff]
      %4266 = vrot.lane.b32.xlu0 %v4242, 127
      %v4267 = vpop.permute.xlu0 %4266
      %4268 = vrot.lane.b32.xlu0 %v4243, 127
      %v4269 = vpop.permute.xlu0 %4268
      %4270 = vrot.lane.b32.xlu0 %v4244, 127
      %v4271 = vpop.permute.xlu0 %4270
      %4272 = vrot.lane.b32.xlu0 %v4245, 127
      %v4273 = vpop.permute.xlu0 %4272
      %4274 = vrot.lane.b32.xlu0 %v4246, 127
      %v4275 = vpop.permute.xlu0 %4274
      %4276 = vrot.lane.b32.xlu0 %v4247, 127
      %v4277 = vpop.permute.xlu0 %4276
      %4278 = vrot.lane.b32.xlu0 %v4248, 127
      %v4279 = vpop.permute.xlu0 %4278
      %4280 = vrot.lane.b32.xlu0 %v4249, 127
      %v4281 = vpop.permute.xlu0 %4280
      %4282 = vrot.lane.b32.xlu0 %v4250, 127
      %v4283 = vpop.permute.xlu0 %4282
      %4284 = vrot.lane.b32.xlu0 %v4251, 127
      %v4285 = vpop.permute.xlu0 %4284
      %4286 = vrot.lane.b32.xlu0 %v4252, 127
      %v4287 = vpop.permute.xlu0 %4286
      %4288 = vrot.lane.b32.xlu0 %v4253, 127
      %v4289 = vpop.permute.xlu0 %4288
      %v4290 = vrot.slane %v4267, 4
      %v4291 = vrot.slane %v4269, 4
      %v4292 = vrot.slane %v4271, 4
      %v4293 = vrot.slane %v4273, 4
      %v4294 = vrot.slane %v4275, 4
      %v4295 = vrot.slane %v4277, 4
      %v4296 = vrot.slane %v4279, 4
      %v4297 = vrot.slane %v4281, 4
      %v4298 = vrot.slane %v4283, 4
      %v4299 = vrot.slane %v4285, 4
      %v4300 = vrot.slane %v4287, 4
      %v4301 = vrot.slane %v4289, 4
      %v4302 = vsel %vm364, %v4290, %v4291
      %v4303 = vsel %vm524, %v4267, %v4302
      %v4304 = vsel %vm524, %v4269, %v4291
      %v4305 = vsel %vm364, %v4292, %v4293
      %v4306 = vsel %vm524, %v4271, %v4305
      %v4307 = vsel %vm524, %v4273, %v4293
      %v4308 = vsel %vm364, %v4294, %v4295
      %v4309 = vsel %vm524, %v4275, %v4308
      %v4310 = vsel %vm524, %v4277, %v4295
      %v4311 = vsel %vm364, %v4296, %v4297
      %v4312 = vsel %vm524, %v4279, %v4311
      %v4313 = vsel %vm524, %v4281, %v4297
      %v4314 = vsel %vm364, %v4298, %v4299
      %v4315 = vsel %vm524, %v4283, %v4314
      %v4316 = vsel %vm524, %v4285, %v4299
      %v4317 = vsel %vm364, %v4300, %v4301
      %v4318 = vsel %vm524, %v4287, %v4317
      %v4319 = vsel %vm524, %v4289, %v4301
      %4332 = vst [vmem:[#allocation5 + $0x1e0] sm:$0xff] %v4303
      %4333 = vst.msk [vmem:[#allocation5 + $0x1e8] sm:$0xff] %vm536, %v4304
      %4334 = vst [vmem:[#allocation5 + $0x1f0] sm:$0xff] %v4306
      %4335 = vst.msk [vmem:[#allocation5 + $0x1f8] sm:$0xff] %vm536, %v4307
      %4336 = vst [vmem:[#allocation5 + $0x200] sm:$0xff] %v4309
      %4337 = vst.msk [vmem:[#allocation5 + $0x208] sm:$0xff] %vm536, %v4310
      %4338 = vst [vmem:[#allocation5 + $0x210] sm:$0xff] %v4312
      %4339 = vst.msk [vmem:[#allocation5 + $0x218] sm:$0xff] %vm536, %v4313
      %4340 = vst [vmem:[#allocation5 + $0x220] sm:$0xff] %v4315
      %4341 = vst.msk [vmem:[#allocation5 + $0x228] sm:$0xff] %vm536, %v4316
      %4342 = vst [vmem:[#allocation5 + $0x230] sm:$0xff] %v4318
      %4343 = vst.msk [vmem:[#allocation5 + $0x238] sm:$0xff] %vm536, %v4319
      %v4344 = vld [vmem:[#allocation4] sm:$0xff]
      %v4345 = vld [vmem:[#allocation4 + $0x8] sm:$0xff]
      %v4346 = vld [vmem:[#allocation4 + $0x10] sm:$0xff]
      %v4347 = vld [vmem:[#allocation4 + $0x18] sm:$0xff]
      %v4348 = vld [vmem:[#allocation4 + $0x20] sm:$0xff]
      %v4349 = vld [vmem:[#allocation4 + $0x28] sm:$0xff]
      %v4350 = vld [vmem:[#allocation4 + $0x30] sm:$0xff]
      %v4351 = vld [vmem:[#allocation4 + $0x38] sm:$0xff]
      %v4352 = vld [vmem:[#allocation4 + $0x40] sm:$0xff]
      %v4353 = vld [vmem:[#allocation4 + $0x48] sm:$0xff]
      %v4354 = vld [vmem:[#allocation4 + $0x50] sm:$0xff]
      %v4355 = vld [vmem:[#allocation4 + $0x58] sm:$0xff]
      %4368 = vrot.lane.b32.xlu0 %v4344, 107
      %v4369 = vpop.permute.xlu0 %4368
      %4370 = vrot.lane.b32.xlu0 %v4345, 107
      %v4371 = vpop.permute.xlu0 %4370
      %4372 = vrot.lane.b32.xlu0 %v4346, 107
      %v4373 = vpop.permute.xlu0 %4372
      %4374 = vrot.lane.b32.xlu0 %v4347, 107
      %v4375 = vpop.permute.xlu0 %4374
      %4376 = vrot.lane.b32.xlu0 %v4348, 107
      %v4377 = vpop.permute.xlu0 %4376
      %4378 = vrot.lane.b32.xlu0 %v4349, 107
      %v4379 = vpop.permute.xlu0 %4378
      %4380 = vrot.lane.b32.xlu0 %v4350, 107
      %v4381 = vpop.permute.xlu0 %4380
      %4382 = vrot.lane.b32.xlu0 %v4351, 107
      %v4383 = vpop.permute.xlu0 %4382
      %4384 = vrot.lane.b32.xlu0 %v4352, 107
      %v4385 = vpop.permute.xlu0 %4384
      %4386 = vrot.lane.b32.xlu0 %v4353, 107
      %v4387 = vpop.permute.xlu0 %4386
      %4388 = vrot.lane.b32.xlu0 %v4354, 107
      %v4389 = vpop.permute.xlu0 %4388
      %4390 = vrot.lane.b32.xlu0 %v4355, 107
      %v4391 = vpop.permute.xlu0 %4390
      %v4392 = vrot.slane %v4369, 4
      %v4393 = vrot.slane %v4371, 4
      %v4394 = vrot.slane %v4373, 4
      %v4395 = vrot.slane %v4375, 4
      %v4396 = vrot.slane %v4377, 4
      %v4397 = vrot.slane %v4379, 4
      %v4398 = vrot.slane %v4381, 4
      %v4399 = vrot.slane %v4383, 4
      %v4400 = vrot.slane %v4385, 4
      %v4401 = vrot.slane %v4387, 4
      %v4402 = vrot.slane %v4389, 4
      %v4403 = vrot.slane %v4391, 4
      %v4404 = vsel %vm364, %v4392, %v4393
      %v4405 = vsel %vm561, %v4369, %v4404
      %v4406 = vsel %vm561, %v4371, %v4393
      %v4407 = vsel %vm364, %v4394, %v4395
      %v4408 = vsel %vm561, %v4373, %v4407
      %v4409 = vsel %vm561, %v4375, %v4395
      %v4410 = vsel %vm364, %v4396, %v4397
      %v4411 = vsel %vm561, %v4377, %v4410
      %v4412 = vsel %vm561, %v4379, %v4397
      %v4413 = vsel %vm364, %v4398, %v4399
      %v4414 = vsel %vm561, %v4381, %v4413
      %v4415 = vsel %vm561, %v4383, %v4399
      %v4416 = vsel %vm364, %v4400, %v4401
      %v4417 = vsel %vm561, %v4385, %v4416
      %v4418 = vsel %vm561, %v4387, %v4401
      %v4419 = vsel %vm364, %v4402, %v4403
      %v4420 = vsel %vm561, %v4389, %v4419
      %v4421 = vsel %vm561, %v4391, %v4403
      %4434 = vst [vmem:[#allocation5 + $0x240] sm:$0xff] %v4405
      %4435 = vst.msk [vmem:[#allocation5 + $0x248] sm:$0xff] %vm573, %v4406
      %4436 = vst [vmem:[#allocation5 + $0x250] sm:$0xff] %v4408
      %4437 = vst.msk [vmem:[#allocation5 + $0x258] sm:$0xff] %vm573, %v4409
      %4438 = vst [vmem:[#allocation5 + $0x260] sm:$0xff] %v4411
      %4439 = vst.msk [vmem:[#allocation5 + $0x268] sm:$0xff] %vm573, %v4412
      %4440 = vst [vmem:[#allocation5 + $0x270] sm:$0xff] %v4414
      %4441 = vst.msk [vmem:[#allocation5 + $0x278] sm:$0xff] %vm573, %v4415
      %4442 = vst [vmem:[#allocation5 + $0x280] sm:$0xff] %v4417
      %4443 = vst.msk [vmem:[#allocation5 + $0x288] sm:$0xff] %vm573, %v4418
      %4444 = vst [vmem:[#allocation5 + $0x290] sm:$0xff] %v4420
      %4445 = vst.msk [vmem:[#allocation5 + $0x298] sm:$0xff] %vm573, %v4421
      %v4446 = vld [vmem:[#allocation4] sm:$0xff]
      %v4447 = vld [vmem:[#allocation4 + $0x8] sm:$0xff]
      %v4448 = vld [vmem:[#allocation4 + $0x10] sm:$0xff]
      %v4449 = vld [vmem:[#allocation4 + $0x18] sm:$0xff]
      %v4450 = vld [vmem:[#allocation4 + $0x20] sm:$0xff]
      %v4451 = vld [vmem:[#allocation4 + $0x28] sm:$0xff]
      %v4452 = vld [vmem:[#allocation4 + $0x30] sm:$0xff]
      %v4453 = vld [vmem:[#allocation4 + $0x38] sm:$0xff]
      %v4454 = vld [vmem:[#allocation4 + $0x40] sm:$0xff]
      %v4455 = vld [vmem:[#allocation4 + $0x48] sm:$0xff]
      %v4456 = vld [vmem:[#allocation4 + $0x50] sm:$0xff]
      %v4457 = vld [vmem:[#allocation4 + $0x58] sm:$0xff]
      %4470 = vrot.lane.b32.xlu0 %v4446, 106
      %v4471 = vpop.permute.xlu0 %4470
      %4472 = vrot.lane.b32.xlu0 %v4447, 106
      %v4473 = vpop.permute.xlu0 %4472
      %4474 = vrot.lane.b32.xlu0 %v4448, 106
      %v4475 = vpop.permute.xlu0 %4474
      %4476 = vrot.lane.b32.xlu0 %v4449, 106
      %v4477 = vpop.permute.xlu0 %4476
      %4478 = vrot.lane.b32.xlu0 %v4450, 106
      %v4479 = vpop.permute.xlu0 %4478
      %4480 = vrot.lane.b32.xlu0 %v4451, 106
      %v4481 = vpop.permute.xlu0 %4480
      %4482 = vrot.lane.b32.xlu0 %v4452, 106
      %v4483 = vpop.permute.xlu0 %4482
      %4484 = vrot.lane.b32.xlu0 %v4453, 106
      %v4485 = vpop.permute.xlu0 %4484
      %4486 = vrot.lane.b32.xlu0 %v4454, 106
      %v4487 = vpop.permute.xlu0 %4486
      %4488 = vrot.lane.b32.xlu0 %v4455, 106
      %v4489 = vpop.permute.xlu0 %4488
      %4490 = vrot.lane.b32.xlu0 %v4456, 106
      %v4491 = vpop.permute.xlu0 %4490
      %4492 = vrot.lane.b32.xlu0 %v4457, 106
      %v4493 = vpop.permute.xlu0 %4492
      %v4494 = vrot.slane %v4471, 4
      %v4495 = vrot.slane %v4473, 4
      %v4496 = vrot.slane %v4475, 4
      %v4497 = vrot.slane %v4477, 4
      %v4498 = vrot.slane %v4479, 4
      %v4499 = vrot.slane %v4481, 4
      %v4500 = vrot.slane %v4483, 4
      %v4501 = vrot.slane %v4485, 4
      %v4502 = vrot.slane %v4487, 4
      %v4503 = vrot.slane %v4489, 4
      %v4504 = vrot.slane %v4491, 4
      %v4505 = vrot.slane %v4493, 4
      %v4506 = vsel %vm364, %v4494, %v4495
      %v4507 = vsel %vm598, %v4471, %v4506
      %v4508 = vsel %vm598, %v4473, %v4495
      %v4509 = vsel %vm364, %v4496, %v4497
      %v4510 = vsel %vm598, %v4475, %v4509
      %v4511 = vsel %vm598, %v4477, %v4497
      %v4512 = vsel %vm364, %v4498, %v4499
      %v4513 = vsel %vm598, %v4479, %v4512
      %v4514 = vsel %vm598, %v4481, %v4499
      %v4515 = vsel %vm364, %v4500, %v4501
      %v4516 = vsel %vm598, %v4483, %v4515
      %v4517 = vsel %vm598, %v4485, %v4501
      %v4518 = vsel %vm364, %v4502, %v4503
      %v4519 = vsel %vm598, %v4487, %v4518
      %v4520 = vsel %vm598, %v4489, %v4503
      %v4521 = vsel %vm364, %v4504, %v4505
      %v4522 = vsel %vm598, %v4491, %v4521
      %v4523 = vsel %vm598, %v4493, %v4505
      %4536 = vst [vmem:[#allocation5 + $0x2a0] sm:$0xff] %v4507
      %4537 = vst.msk [vmem:[#allocation5 + $0x2a8] sm:$0xff] %vm610, %v4508
      %4538 = vst [vmem:[#allocation5 + $0x2b0] sm:$0xff] %v4510
      %4539 = vst.msk [vmem:[#allocation5 + $0x2b8] sm:$0xff] %vm610, %v4511
      %4540 = vst [vmem:[#allocation5 + $0x2c0] sm:$0xff] %v4513
      %4541 = vst.msk [vmem:[#allocation5 + $0x2c8] sm:$0xff] %vm610, %v4514
      %4542 = vst [vmem:[#allocation5 + $0x2d0] sm:$0xff] %v4516
      %4543 = vst.msk [vmem:[#allocation5 + $0x2d8] sm:$0xff] %vm610, %v4517
      %4544 = vst [vmem:[#allocation5 + $0x2e0] sm:$0xff] %v4519
      %4545 = vst.msk [vmem:[#allocation5 + $0x2e8] sm:$0xff] %vm610, %v4520
      %4546 = vst [vmem:[#allocation5 + $0x2f0] sm:$0xff] %v4522
      %4547 = vst.msk [vmem:[#allocation5 + $0x2f8] sm:$0xff] %vm610, %v4523
      %v4548 = vld [vmem:[#allocation4] sm:$0xff]
      %v4549 = vld [vmem:[#allocation4 + $0x8] sm:$0xff]
      %v4550 = vld [vmem:[#allocation4 + $0x10] sm:$0xff]
      %v4551 = vld [vmem:[#allocation4 + $0x18] sm:$0xff]
      %v4552 = vld [vmem:[#allocation4 + $0x20] sm:$0xff]
      %v4553 = vld [vmem:[#allocation4 + $0x28] sm:$0xff]
      %v4554 = vld [vmem:[#allocation4 + $0x30] sm:$0xff]
      %v4555 = vld [vmem:[#allocation4 + $0x38] sm:$0xff]
      %v4556 = vld [vmem:[#allocation4 + $0x40] sm:$0xff]
      %v4557 = vld [vmem:[#allocation4 + $0x48] sm:$0xff]
      %v4558 = vld [vmem:[#allocation4 + $0x50] sm:$0xff]
      %v4559 = vld [vmem:[#allocation4 + $0x58] sm:$0xff]
      %4572 = vrot.lane.b32.xlu0 %v4548, 105
      %v4573 = vpop.permute.xlu0 %4572
      %4574 = vrot.lane.b32.xlu0 %v4549, 105
      %v4575 = vpop.permute.xlu0 %4574
      %4576 = vrot.lane.b32.xlu0 %v4550, 105
      %v4577 = vpop.permute.xlu0 %4576
      %4578 = vrot.lane.b32.xlu0 %v4551, 105
      %v4579 = vpop.permute.xlu0 %4578
      %4580 = vrot.lane.b32.xlu0 %v4552, 105
      %v4581 = vpop.permute.xlu0 %4580
      %4582 = vrot.lane.b32.xlu0 %v4553, 105
      %v4583 = vpop.permute.xlu0 %4582
      %4584 = vrot.lane.b32.xlu0 %v4554, 105
      %v4585 = vpop.permute.xlu0 %4584
      %4586 = vrot.lane.b32.xlu0 %v4555, 105
      %v4587 = vpop.permute.xlu0 %4586
      %4588 = vrot.lane.b32.xlu0 %v4556, 105
      %v4589 = vpop.permute.xlu0 %4588
      %4590 = vrot.lane.b32.xlu0 %v4557, 105
      %v4591 = vpop.permute.xlu0 %4590
      %4592 = vrot.lane.b32.xlu0 %v4558, 105
      %v4593 = vpop.permute.xlu0 %4592
      %4594 = vrot.lane.b32.xlu0 %v4559, 105
      %v4595 = vpop.permute.xlu0 %4594
      %v4596 = vrot.slane %v4573, 4
      %v4597 = vrot.slane %v4575, 4
      %v4598 = vrot.slane %v4577, 4
      %v4599 = vrot.slane %v4579, 4
      %v4600 = vrot.slane %v4581, 4
      %v4601 = vrot.slane %v4583, 4
      %v4602 = vrot.slane %v4585, 4
      %v4603 = vrot.slane %v4587, 4
      %v4604 = vrot.slane %v4589, 4
      %v4605 = vrot.slane %v4591, 4
      %v4606 = vrot.slane %v4593, 4
      %v4607 = vrot.slane %v4595, 4
      %v4608 = vsel %vm364, %v4596, %v4597
      %v4609 = vsel %vm635, %v4573, %v4608
      %v4610 = vsel %vm635, %v4575, %v4597
      %v4611 = vsel %vm364, %v4598, %v4599
      %v4612 = vsel %vm635, %v4577, %v4611
      %v4613 = vsel %vm635, %v4579, %v4599
      %v4614 = vsel %vm364, %v4600, %v4601
      %v4615 = vsel %vm635, %v4581, %v4614
      %v4616 = vsel %vm635, %v4583, %v4601
      %v4617 = vsel %vm364, %v4602, %v4603
      %v4618 = vsel %vm635, %v4585, %v4617
      %v4619 = vsel %vm635, %v4587, %v4603
      %v4620 = vsel %vm364, %v4604, %v4605
      %v4621 = vsel %vm635, %v4589, %v4620
      %v4622 = vsel %vm635, %v4591, %v4605
      %v4623 = vsel %vm364, %v4606, %v4607
      %v4624 = vsel %vm635, %v4593, %v4623
      %v4625 = vsel %vm635, %v4595, %v4607
      %4638 = vst [vmem:[#allocation5 + $0x300] sm:$0xff] %v4609
      %4639 = vst.msk [vmem:[#allocation5 + $0x308] sm:$0xff] %vm647, %v4610
      %4640 = vst [vmem:[#allocation5 + $0x310] sm:$0xff] %v4612
      %4641 = vst.msk [vmem:[#allocation5 + $0x318] sm:$0xff] %vm647, %v4613
      %4642 = vst [vmem:[#allocation5 + $0x320] sm:$0xff] %v4615
      %4643 = vst.msk [vmem:[#allocation5 + $0x328] sm:$0xff] %vm647, %v4616
      %4644 = vst [vmem:[#allocation5 + $0x330] sm:$0xff] %v4618
      %4645 = vst.msk [vmem:[#allocation5 + $0x338] sm:$0xff] %vm647, %v4619
      %4646 = vst [vmem:[#allocation5 + $0x340] sm:$0xff] %v4621
      %4647 = vst.msk [vmem:[#allocation5 + $0x348] sm:$0xff] %vm647, %v4622
      %4648 = vst [vmem:[#allocation5 + $0x350] sm:$0xff] %v4624
      %4649 = vst.msk [vmem:[#allocation5 + $0x358] sm:$0xff] %vm647, %v4625
      %v4650 = vld [vmem:[#allocation5] sm:$0xff]
      %v4651 = vld [vmem:[#allocation5 + $0x8] sm:$0xff]
      %v4652 = vld [vmem:[#allocation5 + $0x10] sm:$0xff]
      %v4653 = vld [vmem:[#allocation5 + $0x18] sm:$0xff]
      %v4654 = vld [vmem:[#allocation5 + $0x20] sm:$0xff]
      %v4655 = vld [vmem:[#allocation5 + $0x28] sm:$0xff]
      %v4656 = vld [vmem:[#allocation5 + $0x30] sm:$0xff]
      %v4657 = vld [vmem:[#allocation5 + $0x38] sm:$0xff]
      %v4658 = vld [vmem:[#allocation5 + $0x40] sm:$0xff]
      %v4659 = vld [vmem:[#allocation5 + $0x48] sm:$0xff]
      %v4660 = vld [vmem:[#allocation5 + $0x50] sm:$0xff]
      %v4661 = vld [vmem:[#allocation5 + $0x58] sm:$0xff]
      %v4662 = vld [vmem:[#allocation5 + $0x60] sm:$0xff]
      %v4663 = vld [vmem:[#allocation5 + $0x68] sm:$0xff]
      %v4664 = vld [vmem:[#allocation5 + $0x70] sm:$0xff]
      %v4665 = vld [vmem:[#allocation5 + $0x78] sm:$0xff]
      %v4666 = vld [vmem:[#allocation5 + $0x80] sm:$0xff]
      %v4667 = vld [vmem:[#allocation5 + $0x88] sm:$0xff]
      %v4668 = vld [vmem:[#allocation5 + $0x90] sm:$0xff]
      %v4669 = vld [vmem:[#allocation5 + $0x98] sm:$0xff]
      %v4670 = vld [vmem:[#allocation5 + $0xa0] sm:$0xff]
      %v4671 = vld [vmem:[#allocation5 + $0xa8] sm:$0xff]
      %v4672 = vld [vmem:[#allocation5 + $0xb0] sm:$0xff]
      %v4673 = vld [vmem:[#allocation5 + $0xb8] sm:$0xff]
      %v4674 = vld [vmem:[#allocation5 + $0xc0] sm:$0xff]
      %v4675 = vld [vmem:[#allocation5 + $0xc8] sm:$0xff]
      %v4676 = vld [vmem:[#allocation5 + $0xd0] sm:$0xff]
      %v4677 = vld [vmem:[#allocation5 + $0xd8] sm:$0xff]
      %v4678 = vld [vmem:[#allocation5 + $0xe0] sm:$0xff]
      %v4679 = vld [vmem:[#allocation5 + $0xe8] sm:$0xff]
      %v4680 = vld [vmem:[#allocation5 + $0xf0] sm:$0xff]
      %v4681 = vld [vmem:[#allocation5 + $0xf8] sm:$0xff]
      %v4682 = vld [vmem:[#allocation5 + $0x100] sm:$0xff]
      %v4683 = vld [vmem:[#allocation5 + $0x108] sm:$0xff]
      %v4684 = vld [vmem:[#allocation5 + $0x110] sm:$0xff]
      %v4685 = vld [vmem:[#allocation5 + $0x118] sm:$0xff]
      %v4686 = vld [vmem:[#allocation5 + $0x120] sm:$0xff]
      %v4687 = vld [vmem:[#allocation5 + $0x128] sm:$0xff]
      %v4688 = vld [vmem:[#allocation5 + $0x130] sm:$0xff]
      %v4689 = vld [vmem:[#allocation5 + $0x138] sm:$0xff]
      %v4690 = vld [vmem:[#allocation5 + $0x140] sm:$0xff]
      %v4691 = vld [vmem:[#allocation5 + $0x148] sm:$0xff]
      %v4692 = vld [vmem:[#allocation5 + $0x150] sm:$0xff]
      %v4693 = vld [vmem:[#allocation5 + $0x158] sm:$0xff]
      %v4694 = vld [vmem:[#allocation5 + $0x160] sm:$0xff]
      %v4695 = vld [vmem:[#allocation5 + $0x168] sm:$0xff]
      %v4696 = vld [vmem:[#allocation5 + $0x170] sm:$0xff]
      %v4697 = vld [vmem:[#allocation5 + $0x178] sm:$0xff]
      %v4698 = vld [vmem:[#allocation5 + $0x180] sm:$0xff]
      %v4699 = vld [vmem:[#allocation5 + $0x188] sm:$0xff]
      %v4700 = vld [vmem:[#allocation5 + $0x190] sm:$0xff]
      %v4701 = vld [vmem:[#allocation5 + $0x198] sm:$0xff]
      %v4702 = vld [vmem:[#allocation5 + $0x1a0] sm:$0xff]
      %v4703 = vld [vmem:[#allocation5 + $0x1a8] sm:$0xff]
      %v4704 = vld [vmem:[#allocation5 + $0x1b0] sm:$0xff]
      %v4705 = vld [vmem:[#allocation5 + $0x1b8] sm:$0xff]
      %v4706 = vld [vmem:[#allocation5 + $0x1c0] sm:$0xff]
      %v4707 = vld [vmem:[#allocation5 + $0x1c8] sm:$0xff]
      %v4708 = vld [vmem:[#allocation5 + $0x1d0] sm:$0xff]
      %v4709 = vld [vmem:[#allocation5 + $0x1d8] sm:$0xff]
      %v4710 = vld [vmem:[#allocation5 + $0x1e0] sm:$0xff]
      %v4711 = vld [vmem:[#allocation5 + $0x1e8] sm:$0xff]
      %v4712 = vld [vmem:[#allocation5 + $0x1f0] sm:$0xff]
      %v4713 = vld [vmem:[#allocation5 + $0x1f8] sm:$0xff]
      %v4714 = vld [vmem:[#allocation5 + $0x200] sm:$0xff]
      %v4715 = vld [vmem:[#allocation5 + $0x208] sm:$0xff]
      %v4716 = vld [vmem:[#allocation5 + $0x210] sm:$0xff]
      %v4717 = vld [vmem:[#allocation5 + $0x218] sm:$0xff]
      %v4718 = vld [vmem:[#allocation5 + $0x220] sm:$0xff]
      %v4719 = vld [vmem:[#allocation5 + $0x228] sm:$0xff]
      %v4720 = vld [vmem:[#allocation5 + $0x230] sm:$0xff]
      %v4721 = vld [vmem:[#allocation5 + $0x238] sm:$0xff]
      %v4722 = vld [vmem:[#allocation5 + $0x240] sm:$0xff]
      %v4723 = vld [vmem:[#allocation5 + $0x248] sm:$0xff]
      %v4724 = vld [vmem:[#allocation5 + $0x250] sm:$0xff]
      %v4725 = vld [vmem:[#allocation5 + $0x258] sm:$0xff]
      %v4726 = vld [vmem:[#allocation5 + $0x260] sm:$0xff]
      %v4727 = vld [vmem:[#allocation5 + $0x268] sm:$0xff]
      %v4728 = vld [vmem:[#allocation5 + $0x270] sm:$0xff]
      %v4729 = vld [vmem:[#allocation5 + $0x278] sm:$0xff]
      %v4730 = vld [vmem:[#allocation5 + $0x280] sm:$0xff]
      %v4731 = vld [vmem:[#allocation5 + $0x288] sm:$0xff]
      %v4732 = vld [vmem:[#allocation5 + $0x290] sm:$0xff]
      %v4733 = vld [vmem:[#allocation5 + $0x298] sm:$0xff]
      %v4734 = vld [vmem:[#allocation5 + $0x2a0] sm:$0xff]
      %v4735 = vld [vmem:[#allocation5 + $0x2a8] sm:$0xff]
      %v4736 = vld [vmem:[#allocation5 + $0x2b0] sm:$0xff]
      %v4737 = vld [vmem:[#allocation5 + $0x2b8] sm:$0xff]
      %v4738 = vld [vmem:[#allocation5 + $0x2c0] sm:$0xff]
      %v4739 = vld [vmem:[#allocation5 + $0x2c8] sm:$0xff]
      %v4740 = vld [vmem:[#allocation5 + $0x2d0] sm:$0xff]
      %v4741 = vld [vmem:[#allocation5 + $0x2d8] sm:$0xff]
      %v4742 = vld [vmem:[#allocation5 + $0x2e0] sm:$0xff]
      %v4743 = vld [vmem:[#allocation5 + $0x2e8] sm:$0xff]
      %v4744 = vld [vmem:[#allocation5 + $0x2f0] sm:$0xff]
      %v4745 = vld [vmem:[#allocation5 + $0x2f8] sm:$0xff]
      %v4746 = vld [vmem:[#allocation5 + $0x300] sm:$0xff]
      %v4747 = vld [vmem:[#allocation5 + $0x308] sm:$0xff]
      %v4748 = vld [vmem:[#allocation5 + $0x310] sm:$0xff]
      %v4749 = vld [vmem:[#allocation5 + $0x318] sm:$0xff]
      %v4750 = vld [vmem:[#allocation5 + $0x320] sm:$0xff]
      %v4751 = vld [vmem:[#allocation5 + $0x328] sm:$0xff]
      %v4752 = vld [vmem:[#allocation5 + $0x330] sm:$0xff]
      %v4753 = vld [vmem:[#allocation5 + $0x338] sm:$0xff]
      %v4754 = vld [vmem:[#allocation5 + $0x340] sm:$0xff]
      %v4755 = vld [vmem:[#allocation5 + $0x348] sm:$0xff]
      %v4756 = vld [vmem:[#allocation5 + $0x350] sm:$0xff]
      %v4757 = vld [vmem:[#allocation5 + $0x358] sm:$0xff]
      %v4760 = vunpack.c.l.b16 %v3806
      %v4761 = vunpack.c.h.b16 %v3806
      %v4762 = vunpack.c.l.b16 %v3807
      %v4763 = vunpack.c.h.b16 %v3807
      %v4764 = vpack.c.b16 %v4760, %v4760
      %v4765 = vpack.c.b16 %v4761, %v4761
      %v4766 = vpack.c.b16 %v4762, %v4762
      %v4767 = vpack.c.b16 %v4763, %v4763
      %v4879 = vunpack.c.l.b16 %v4650
      %v4880 = vunpack.c.h.b16 %v4650
      %v4881 = vunpack.c.l.b16 %v4651
      %v4882 = vunpack.c.h.b16 %v4651
      %v4883 = vunpack.c.l.b16 %v4652
      %v4884 = vunpack.c.h.b16 %v4652
      %v4885 = vunpack.c.l.b16 %v4653
      %v4886 = vunpack.c.h.b16 %v4653
      %v4887 = vunpack.c.l.b16 %v4654
      %v4888 = vunpack.c.h.b16 %v4654
      %v4889 = vunpack.c.l.b16 %v4655
      %v4890 = vunpack.c.h.b16 %v4655
      %v4891 = vunpack.c.l.b16 %v4656
      %v4892 = vunpack.c.h.b16 %v4656
      %v4893 = vunpack.c.l.b16 %v4657
      %v4894 = vunpack.c.h.b16 %v4657
      %v4895 = vunpack.c.l.b16 %v4658
      %v4896 = vunpack.c.h.b16 %v4658
      %v4897 = vunpack.c.l.b16 %v4659
      %v4898 = vunpack.c.h.b16 %v4659
      %v4899 = vunpack.c.l.b16 %v4660
      %v4900 = vunpack.c.h.b16 %v4660
      %v4901 = vunpack.c.l.b16 %v4661
      %v4902 = vunpack.c.h.b16 %v4661
      %v4903 = vunpack.c.l.b16 %v4662
      %v4904 = vunpack.c.h.b16 %v4662
      %v4905 = vunpack.c.l.b16 %v4663
      %v4906 = vunpack.c.h.b16 %v4663
      %v4907 = vunpack.c.l.b16 %v4664
      %v4908 = vunpack.c.h.b16 %v4664
      %v4909 = vunpack.c.l.b16 %v4665
      %v4910 = vunpack.c.h.b16 %v4665
      %v4911 = vunpack.c.l.b16 %v4666
      %v4912 = vunpack.c.h.b16 %v4666
      %v4913 = vunpack.c.l.b16 %v4667
      %v4914 = vunpack.c.h.b16 %v4667
      %v4915 = vunpack.c.l.b16 %v4668
      %v4916 = vunpack.c.h.b16 %v4668
      %v4917 = vunpack.c.l.b16 %v4669
      %v4918 = vunpack.c.h.b16 %v4669
      %v4919 = vunpack.c.l.b16 %v4670
      %v4920 = vunpack.c.h.b16 %v4670
      %v4921 = vunpack.c.l.b16 %v4671
      %v4922 = vunpack.c.h.b16 %v4671
      %v4923 = vunpack.c.l.b16 %v4672
      %v4924 = vunpack.c.h.b16 %v4672
      %v4925 = vunpack.c.l.b16 %v4673
      %v4926 = vunpack.c.h.b16 %v4673
      %v4927 = vunpack.c.l.b16 %v4674
      %v4928 = vunpack.c.h.b16 %v4674
      %v4929 = vunpack.c.l.b16 %v4675
      %v4930 = vunpack.c.h.b16 %v4675
      %v4931 = vunpack.c.l.b16 %v4676
      %v4932 = vunpack.c.h.b16 %v4676
      %v4933 = vunpack.c.l.b16 %v4677
      %v4934 = vunpack.c.h.b16 %v4677
      %v4935 = vunpack.c.l.b16 %v4678
      %v4936 = vunpack.c.h.b16 %v4678
      %v4937 = vunpack.c.l.b16 %v4679
      %v4938 = vunpack.c.h.b16 %v4679
      %v4939 = vunpack.c.l.b16 %v4680
      %v4940 = vunpack.c.h.b16 %v4680
      %v4941 = vunpack.c.l.b16 %v4681
      %v4942 = vunpack.c.h.b16 %v4681
      %v4943 = vunpack.c.l.b16 %v4682
      %v4944 = vunpack.c.h.b16 %v4682
      %v4945 = vunpack.c.l.b16 %v4683
      %v4946 = vunpack.c.h.b16 %v4683
      %v4947 = vunpack.c.l.b16 %v4684
      %v4948 = vunpack.c.h.b16 %v4684
      %v4949 = vunpack.c.l.b16 %v4685
      %v4950 = vunpack.c.h.b16 %v4685
      %v4951 = vunpack.c.l.b16 %v4686
      %v4952 = vunpack.c.h.b16 %v4686
      %v4953 = vunpack.c.l.b16 %v4687
      %v4954 = vunpack.c.h.b16 %v4687
      %v4955 = vunpack.c.l.b16 %v4688
      %v4956 = vunpack.c.h.b16 %v4688
      %v4957 = vunpack.c.l.b16 %v4689
      %v4958 = vunpack.c.h.b16 %v4689
      %v4959 = vunpack.c.l.b16 %v4690
      %v4960 = vunpack.c.h.b16 %v4690
      %v4961 = vunpack.c.l.b16 %v4691
      %v4962 = vunpack.c.h.b16 %v4691
      %v4963 = vunpack.c.l.b16 %v4692
      %v4964 = vunpack.c.h.b16 %v4692
      %v4965 = vunpack.c.l.b16 %v4693
      %v4966 = vunpack.c.h.b16 %v4693
      %v4967 = vunpack.c.l.b16 %v4694
      %v4968 = vunpack.c.h.b16 %v4694
      %v4969 = vunpack.c.l.b16 %v4695
      %v4970 = vunpack.c.h.b16 %v4695
      %v4971 = vunpack.c.l.b16 %v4696
      %v4972 = vunpack.c.h.b16 %v4696
      %v4973 = vunpack.c.l.b16 %v4697
      %v4974 = vunpack.c.h.b16 %v4697
      %v4975 = vunpack.c.l.b16 %v4698
      %v4976 = vunpack.c.h.b16 %v4698
      %v4977 = vunpack.c.l.b16 %v4699
      %v4978 = vunpack.c.h.b16 %v4699
      %v4979 = vunpack.c.l.b16 %v4700
      %v4980 = vunpack.c.h.b16 %v4700
      %v4981 = vunpack.c.l.b16 %v4701
      %v4982 = vunpack.c.h.b16 %v4701
      %v4983 = vunpack.c.l.b16 %v4702
      %v4984 = vunpack.c.h.b16 %v4702
      %v4985 = vunpack.c.l.b16 %v4703
      %v4986 = vunpack.c.h.b16 %v4703
      %v4987 = vunpack.c.l.b16 %v4704
      %v4988 = vunpack.c.h.b16 %v4704
      %v4989 = vunpack.c.l.b16 %v4705
      %v4990 = vunpack.c.h.b16 %v4705
      %v4991 = vunpack.c.l.b16 %v4706
      %v4992 = vunpack.c.h.b16 %v4706
      %v4993 = vunpack.c.l.b16 %v4707
      %v4994 = vunpack.c.h.b16 %v4707
      %v4995 = vunpack.c.l.b16 %v4708
      %v4996 = vunpack.c.h.b16 %v4708
      %v4997 = vunpack.c.l.b16 %v4709
      %v4998 = vunpack.c.h.b16 %v4709
      %v4999 = vunpack.c.l.b16 %v4710
      %v5000 = vunpack.c.h.b16 %v4710
      %v5001 = vunpack.c.l.b16 %v4711
      %v5002 = vunpack.c.h.b16 %v4711
      %v5003 = vunpack.c.l.b16 %v4712
      %v5004 = vunpack.c.h.b16 %v4712
      %v5005 = vunpack.c.l.b16 %v4713
      %v5006 = vunpack.c.h.b16 %v4713
      %v5007 = vunpack.c.l.b16 %v4714
      %v5008 = vunpack.c.h.b16 %v4714
      %v5009 = vunpack.c.l.b16 %v4715
      %v5010 = vunpack.c.h.b16 %v4715
      %v5011 = vunpack.c.l.b16 %v4716
      %v5012 = vunpack.c.h.b16 %v4716
      %v5013 = vunpack.c.l.b16 %v4717
      %v5014 = vunpack.c.h.b16 %v4717
      %v5015 = vunpack.c.l.b16 %v4718
      %v5016 = vunpack.c.h.b16 %v4718
      %v5017 = vunpack.c.l.b16 %v4719
      %v5018 = vunpack.c.h.b16 %v4719
      %v5019 = vunpack.c.l.b16 %v4720
      %v5020 = vunpack.c.h.b16 %v4720
      %v5021 = vunpack.c.l.b16 %v4721
      %v5022 = vunpack.c.h.b16 %v4721
      %v5023 = vunpack.c.l.b16 %v4722
      %v5024 = vunpack.c.h.b16 %v4722
      %v5025 = vunpack.c.l.b16 %v4723
      %v5026 = vunpack.c.h.b16 %v4723
      %v5027 = vunpack.c.l.b16 %v4724
      %v5028 = vunpack.c.h.b16 %v4724
      %v5029 = vunpack.c.l.b16 %v4725
      %v5030 = vunpack.c.h.b16 %v4725
      %v5031 = vunpack.c.l.b16 %v4726
      %v5032 = vunpack.c.h.b16 %v4726
      %v5033 = vunpack.c.l.b16 %v4727
      %v5034 = vunpack.c.h.b16 %v4727
      %v5035 = vunpack.c.l.b16 %v4728
      %v5036 = vunpack.c.h.b16 %v4728
      %v5037 = vunpack.c.l.b16 %v4729
      %v5038 = vunpack.c.h.b16 %v4729
      %v5039 = vunpack.c.l.b16 %v4730
      %v5040 = vunpack.c.h.b16 %v4730
      %v5041 = vunpack.c.l.b16 %v4731
      %v5042 = vunpack.c.h.b16 %v4731
      %v5043 = vunpack.c.l.b16 %v4732
      %v5044 = vunpack.c.h.b16 %v4732
      %v5045 = vunpack.c.l.b16 %v4733
      %v5046 = vunpack.c.h.b16 %v4733
      %v5047 = vunpack.c.l.b16 %v4734
      %v5048 = vunpack.c.h.b16 %v4734
      %v5049 = vunpack.c.l.b16 %v4735
      %v5050 = vunpack.c.h.b16 %v4735
      %v5051 = vunpack.c.l.b16 %v4736
      %v5052 = vunpack.c.h.b16 %v4736
      %v5053 = vunpack.c.l.b16 %v4737
      %v5054 = vunpack.c.h.b16 %v4737
      %v5055 = vunpack.c.l.b16 %v4738
      %v5056 = vunpack.c.h.b16 %v4738
      %v5057 = vunpack.c.l.b16 %v4739
      %v5058 = vunpack.c.h.b16 %v4739
      %v5059 = vunpack.c.l.b16 %v4740
      %v5060 = vunpack.c.h.b16 %v4740
      %v5061 = vunpack.c.l.b16 %v4741
      %v5062 = vunpack.c.h.b16 %v4741
      %v5063 = vunpack.c.l.b16 %v4742
      %v5064 = vunpack.c.h.b16 %v4742
      %v5065 = vunpack.c.l.b16 %v4743
      %v5066 = vunpack.c.h.b16 %v4743
      %v5067 = vunpack.c.l.b16 %v4744
      %v5068 = vunpack.c.h.b16 %v4744
      %v5069 = vunpack.c.l.b16 %v4745
      %v5070 = vunpack.c.h.b16 %v4745
      %v5071 = vunpack.c.l.b16 %v4746
      %v5072 = vunpack.c.h.b16 %v4746
      %v5073 = vunpack.c.l.b16 %v4747
      %v5074 = vunpack.c.h.b16 %v4747
      %v5075 = vunpack.c.l.b16 %v4748
      %v5076 = vunpack.c.h.b16 %v4748
      %v5077 = vunpack.c.l.b16 %v4749
      %v5078 = vunpack.c.h.b16 %v4749
      %v5079 = vunpack.c.l.b16 %v4750
      %v5080 = vunpack.c.h.b16 %v4750
      %v5081 = vunpack.c.l.b16 %v4751
      %v5082 = vunpack.c.h.b16 %v4751
      %v5083 = vunpack.c.l.b16 %v4752
      %v5084 = vunpack.c.h.b16 %v4752
      %v5085 = vunpack.c.l.b16 %v4753
      %v5086 = vunpack.c.h.b16 %v4753
      %v5087 = vunpack.c.l.b16 %v4754
      %v5088 = vunpack.c.h.b16 %v4754
      %v5089 = vunpack.c.l.b16 %v4755
      %v5090 = vunpack.c.h.b16 %v4755
      %v5091 = vunpack.c.l.b16 %v4756
      %v5092 = vunpack.c.h.b16 %v4756
      %v5093 = vunpack.c.l.b16 %v4757
      %v5094 = vunpack.c.h.b16 %v4757
      %v5095 = vpack.c.b16 %v4883, %v4879
      %v5096 = vpack.c.b16 %v4884, %v4880
      %v5097 = vpack.c.b16 %v4885, %v4881
      %v5098 = vpack.c.b16 %v4886, %v4882
      %v5099 = vpack.c.b16 %v4891, %v4887
      %v5100 = vpack.c.b16 %v4892, %v4888
      %v5101 = vpack.c.b16 %v4893, %v4889
      %v5102 = vpack.c.b16 %v4894, %v4890
      %v5103 = vpack.c.b16 %v4899, %v4895
      %v5104 = vpack.c.b16 %v4900, %v4896
      %v5105 = vpack.c.b16 %v4901, %v4897
      %v5106 = vpack.c.b16 %v4902, %v4898
      %v5107 = vpack.c.b16 %v4907, %v4903
      %v5108 = vpack.c.b16 %v4908, %v4904
      %v5109 = vpack.c.b16 %v4909, %v4905
      %v5110 = vpack.c.b16 %v4910, %v4906
      %v5111 = vpack.c.b16 %v4915, %v4911
      %v5112 = vpack.c.b16 %v4916, %v4912
      %v5113 = vpack.c.b16 %v4917, %v4913
      %v5114 = vpack.c.b16 %v4918, %v4914
      %v5115 = vpack.c.b16 %v4923, %v4919
      %v5116 = vpack.c.b16 %v4924, %v4920
      %v5117 = vpack.c.b16 %v4925, %v4921
      %v5118 = vpack.c.b16 %v4926, %v4922
      %v5119 = vpack.c.b16 %v4931, %v4927
      %v5120 = vpack.c.b16 %v4932, %v4928
      %v5121 = vpack.c.b16 %v4933, %v4929
      %v5122 = vpack.c.b16 %v4934, %v4930
      %v5123 = vpack.c.b16 %v4939, %v4935
      %v5124 = vpack.c.b16 %v4940, %v4936
      %v5125 = vpack.c.b16 %v4941, %v4937
      %v5126 = vpack.c.b16 %v4942, %v4938
      %v5127 = vpack.c.b16 %v4947, %v4943
      %v5128 = vpack.c.b16 %v4948, %v4944
      %v5129 = vpack.c.b16 %v4949, %v4945
      %v5130 = vpack.c.b16 %v4950, %v4946
      %v5131 = vpack.c.b16 %v4955, %v4951
      %v5132 = vpack.c.b16 %v4956, %v4952
      %v5133 = vpack.c.b16 %v4957, %v4953
      %v5134 = vpack.c.b16 %v4958, %v4954
      %v5135 = vpack.c.b16 %v4963, %v4959
      %v5136 = vpack.c.b16 %v4964, %v4960
      %v5137 = vpack.c.b16 %v4965, %v4961
      %v5138 = vpack.c.b16 %v4966, %v4962
      %v5139 = vpack.c.b16 %v4971, %v4967
      %v5140 = vpack.c.b16 %v4972, %v4968
      %v5141 = vpack.c.b16 %v4973, %v4969
      %v5142 = vpack.c.b16 %v4974, %v4970
      %v5143 = vpack.c.b16 %v4979, %v4975
      %v5144 = vpack.c.b16 %v4980, %v4976
      %v5145 = vpack.c.b16 %v4981, %v4977
      %v5146 = vpack.c.b16 %v4982, %v4978
      %v5147 = vpack.c.b16 %v4987, %v4983
      %v5148 = vpack.c.b16 %v4988, %v4984
      %v5149 = vpack.c.b16 %v4989, %v4985
      %v5150 = vpack.c.b16 %v4990, %v4986
      %v5151 = vpack.c.b16 %v4995, %v4991
      %v5152 = vpack.c.b16 %v4996, %v4992
      %v5153 = vpack.c.b16 %v4997, %v4993
      %v5154 = vpack.c.b16 %v4998, %v4994
      %v5155 = vpack.c.b16 %v5003, %v4999
      %v5156 = vpack.c.b16 %v5004, %v5000
      %v5157 = vpack.c.b16 %v5005, %v5001
      %v5158 = vpack.c.b16 %v5006, %v5002
      %v5159 = vpack.c.b16 %v5011, %v5007
      %v5160 = vpack.c.b16 %v5012, %v5008
      %v5161 = vpack.c.b16 %v5013, %v5009
      %v5162 = vpack.c.b16 %v5014, %v5010
      %v5163 = vpack.c.b16 %v5019, %v5015
      %v5164 = vpack.c.b16 %v5020, %v5016
      %v5165 = vpack.c.b16 %v5021, %v5017
      %v5166 = vpack.c.b16 %v5022, %v5018
      %v5167 = vpack.c.b16 %v5027, %v5023
      %v5168 = vpack.c.b16 %v5028, %v5024
      %v5169 = vpack.c.b16 %v5029, %v5025
      %v5170 = vpack.c.b16 %v5030, %v5026
      %v5171 = vpack.c.b16 %v5035, %v5031
      %v5172 = vpack.c.b16 %v5036, %v5032
      %v5173 = vpack.c.b16 %v5037, %v5033
      %v5174 = vpack.c.b16 %v5038, %v5034
      %v5175 = vpack.c.b16 %v5043, %v5039
      %v5176 = vpack.c.b16 %v5044, %v5040
      %v5177 = vpack.c.b16 %v5045, %v5041
      %v5178 = vpack.c.b16 %v5046, %v5042
      %v5179 = vpack.c.b16 %v5051, %v5047
      %v5180 = vpack.c.b16 %v5052, %v5048
      %v5181 = vpack.c.b16 %v5053, %v5049
      %v5182 = vpack.c.b16 %v5054, %v5050
      %v5183 = vpack.c.b16 %v5059, %v5055
      %v5184 = vpack.c.b16 %v5060, %v5056
      %v5185 = vpack.c.b16 %v5061, %v5057
      %v5186 = vpack.c.b16 %v5062, %v5058
      %v5187 = vpack.c.b16 %v5067, %v5063
      %v5188 = vpack.c.b16 %v5068, %v5064
      %v5189 = vpack.c.b16 %v5069, %v5065
      %v5190 = vpack.c.b16 %v5070, %v5066
      %v5191 = vpack.c.b16 %v5075, %v5071
      %v5192 = vpack.c.b16 %v5076, %v5072
      %v5193 = vpack.c.b16 %v5077, %v5073
      %v5194 = vpack.c.b16 %v5078, %v5074
      %v5195 = vpack.c.b16 %v5083, %v5079
      %v5196 = vpack.c.b16 %v5084, %v5080
      %v5197 = vpack.c.b16 %v5085, %v5081
      %v5198 = vpack.c.b16 %v5086, %v5082
      %v5199 = vpack.c.b16 %v5091, %v5087
      %v5200 = vpack.c.b16 %v5092, %v5088
      %v5201 = vpack.c.b16 %v5093, %v5089
      %v5202 = vpack.c.b16 %v5094, %v5090
      %vm5311 = vcmask 392192
      %v5313 = vsel %vm5311, %v4767, 0
      %5315 = vmatprep.subr.bf16.mxu0 %v5124
      %5316 = vmatpush1.bf16.msra.mxu0 %v5123
      %5317 = vmatprep.subr.bf16.mxu0 %v5120
      %5318 = vmatpush1.bf16.msra.mxu0 %v5119
      %5319 = vmatprep.subr.bf16.mxu0 %v5116
      %5320 = vmatpush1.bf16.msra.mxu0 %v5115
      %5321 = vmatprep.subr.bf16.mxu0 %v5112
      %5322 = vmatpush1.bf16.msra.mxu0 %v5111
      %5323 = vmatprep.subr.bf16.mxu0 %v5108
      %5324 = vmatpush1.bf16.msra.mxu0 %v5107
      %5325 = vmatprep.subr.bf16.mxu0 %v5104
      %5326 = vmatpush1.bf16.msra.mxu0 %v5103
      %5327 = vmatprep.subr.bf16.mxu0 %v5100
      %5328 = vmatpush1.bf16.msra.mxu0 %v5099
      %5329 = vmatprep.subr.bf16.mxu0 %v5096
      %5330 = vmatpush1.bf16.msra.mxu0 %v5095
      %5331 = vmatprep.subr.bf16.mxu0 %v5156
      %5332 = vmatpush2.bf16.msra.mxu0 %v5155
      %5333 = vmatprep.subr.bf16.mxu0 %v5152
      %5334 = vmatpush2.bf16.msra.mxu0 %v5151
      %5335 = vmatprep.subr.bf16.mxu0 %v5148
      %5336 = vmatpush2.bf16.msra.mxu0 %v5147
      %5337 = vmatprep.subr.bf16.mxu0 %v5144
      %5338 = vmatpush2.bf16.msra.mxu0 %v5143
      %5339 = vmatprep.subr.bf16.mxu0 %v5140
      %5340 = vmatpush2.bf16.msra.mxu0 %v5139
      %5341 = vmatprep.subr.bf16.mxu0 %v5136
      %5342 = vmatpush2.bf16.msra.mxu0 %v5135
      %5343 = vmatprep.subr.bf16.mxu0 %v5132
      %5344 = vmatpush2.bf16.msra.mxu0 %v5131
      %5345 = vmatprep.subr.bf16.mxu0 %v5128
      %5346 = vmatpush2.bf16.msra.mxu0 %v5127
      %5347 = vmatprep.mubr.bf16.mxu0 %v4765
      %5348 = vmatmul.mubr.bf16.gmra.mxu0 %v4764
      %v5349 = vpop.f32.mrf.mxu0
      %v5350 = vadd.f32 0.0, %v5349
      %v5351 = vpop.f32.mrf.mxu0
      %v5352 = vadd.f32 0.0, %v5351
      %v5353 = vpop.f32.mrf.mxu0
      %v5354 = vpop.f32.mrf.mxu0
      %5355 = vdwg.mxu0
      %5356 = vmatprep.subr.bf16.mxu0 %v5188
      %5357 = vmatpush1.bf16.msra.mxu0 %v5187
      %5358 = vmatprep.subr.bf16.mxu0 %v5184
      %5359 = vmatpush1.bf16.msra.mxu0 %v5183
      %5360 = vmatprep.subr.bf16.mxu0 %v5180
      %5361 = vmatpush1.bf16.msra.mxu0 %v5179
      %5362 = vmatprep.subr.bf16.mxu0 %v5176
      %5363 = vmatpush1.bf16.msra.mxu0 %v5175
      %5364 = vmatprep.subr.bf16.mxu0 %v5172
      %5365 = vmatpush1.bf16.msra.mxu0 %v5171
      %5366 = vmatprep.subr.bf16.mxu0 %v5168
      %5367 = vmatpush1.bf16.msra.mxu0 %v5167
      %5368 = vmatprep.subr.bf16.mxu0 %v5164
      %5369 = vmatpush1.bf16.msra.mxu0 %v5163
      %5370 = vmatprep.subr.bf16.mxu0 %v5160
      %5371 = vmatpush1.bf16.msra.mxu0 %v5159
      %5372 = vmatprep.subr.bf16.mxu0 0
      %5373 = vmatpush2.bf16.msra.mxu0 0
      %5374 = vmatprep.subr.bf16.mxu0 0
      %5375 = vmatpush2.bf16.msra.mxu0 0
      %5376 = vmatprep.subr.bf16.mxu0 0
      %5377 = vmatpush2.bf16.msra.mxu0 0
      %5378 = vmatprep.subr.bf16.mxu0 0
      %5379 = vmatpush2.bf16.msra.mxu0 0
      %5380 = vmatprep.subr.bf16.mxu0 0
      %5381 = vmatpush2.bf16.msra.mxu0 0
      %5382 = vmatprep.subr.bf16.mxu0 %v5200
      %5383 = vmatpush2.bf16.msra.mxu0 %v5199
      %5384 = vmatprep.subr.bf16.mxu0 %v5196
      %5385 = vmatpush2.bf16.msra.mxu0 %v5195
      %5386 = vmatprep.subr.bf16.mxu0 %v5192
      %5387 = vmatpush2.bf16.msra.mxu0 %v5191
      %5388 = vmatprep.mubr.bf16.mxu0 %v5313
      %5389 = vmatmul.mubr.bf16.gmra.mxu0 %v4766
      %v5390 = vpop.f32.mrf.mxu0
      %v5391 = vadd.f32 %v5350, %v5390
      %v5392 = vpop.f32.mrf.mxu0
      %v5393 = vadd.f32 %v5352, %v5392
      %v5394 = vpop.f32.mrf.mxu0
      %v5395 = vpop.f32.mrf.mxu0
      %5396 = vdwg.mxu0
      %5397 = vmatprep.subr.bf16.mxu0 %v5126
      %5398 = vmatpush1.bf16.msra.mxu0 %v5125
      %5399 = vmatprep.subr.bf16.mxu0 %v5122
      %5400 = vmatpush1.bf16.msra.mxu0 %v5121
      %5401 = vmatprep.subr.bf16.mxu0 %v5118
      %5402 = vmatpush1.bf16.msra.mxu0 %v5117
      %5403 = vmatprep.subr.bf16.mxu0 %v5114
      %5404 = vmatpush1.bf16.msra.mxu0 %v5113
      %5405 = vmatprep.subr.bf16.mxu0 %v5110
      %5406 = vmatpush1.bf16.msra.mxu0 %v5109
      %5407 = vmatprep.subr.bf16.mxu0 %v5106
      %5408 = vmatpush1.bf16.msra.mxu0 %v5105
      %5409 = vmatprep.subr.bf16.mxu0 %v5102
      %5410 = vmatpush1.bf16.msra.mxu0 %v5101
      %5411 = vmatprep.subr.bf16.mxu0 %v5098
      %5412 = vmatpush1.bf16.msra.mxu0 %v5097
      %5413 = vmatprep.subr.bf16.mxu0 %v5158
      %5414 = vmatpush2.bf16.msra.mxu0 %v5157
      %5415 = vmatprep.subr.bf16.mxu0 %v5154
      %5416 = vmatpush2.bf16.msra.mxu0 %v5153
      %5417 = vmatprep.subr.bf16.mxu0 %v5150
      %5418 = vmatpush2.bf16.msra.mxu0 %v5149
      %5419 = vmatprep.subr.bf16.mxu0 %v5146
      %5420 = vmatpush2.bf16.msra.mxu0 %v5145
      %5421 = vmatprep.subr.bf16.mxu0 %v5142
      %5422 = vmatpush2.bf16.msra.mxu0 %v5141
      %5423 = vmatprep.subr.bf16.mxu0 %v5138
      %5424 = vmatpush2.bf16.msra.mxu0 %v5137
      %5425 = vmatprep.subr.bf16.mxu0 %v5134
      %5426 = vmatpush2.bf16.msra.mxu0 %v5133
      %5427 = vmatprep.subr.bf16.mxu0 %v5130
      %5428 = vmatpush2.bf16.msra.mxu0 %v5129
      %5429 = vmatprep.mubr.bf16.mxu0 %v4765
      %5430 = vmatmul.mubr.bf16.gmra.mxu0 %v4764
      %v5431 = vpop.f32.mrf.mxu0
      %v5432 = vadd.f32 0.0, %v5431
      %v5433 = vpop.f32.mrf.mxu0
      %v5434 = vadd.f32 0.0, %v5433
      %v5435 = vpop.f32.mrf.mxu0
      %v5436 = vpop.f32.mrf.mxu0
      %5437 = vdwg.mxu0
      %5438 = vmatprep.subr.bf16.mxu0 %v5190
      %5439 = vmatpush1.bf16.msra.mxu0 %v5189
      %5440 = vmatprep.subr.bf16.mxu0 %v5186
      %5441 = vmatpush1.bf16.msra.mxu0 %v5185
      %5442 = vmatprep.subr.bf16.mxu0 %v5182
      %5443 = vmatpush1.bf16.msra.mxu0 %v5181
      %5444 = vmatprep.subr.bf16.mxu0 %v5178
      %5445 = vmatpush1.bf16.msra.mxu0 %v5177
      %5446 = vmatprep.subr.bf16.mxu0 %v5174
      %5447 = vmatpush1.bf16.msra.mxu0 %v5173
      %5448 = vmatprep.subr.bf16.mxu0 %v5170
      %5449 = vmatpush1.bf16.msra.mxu0 %v5169
      %5450 = vmatprep.subr.bf16.mxu0 %v5166
      %5451 = vmatpush1.bf16.msra.mxu0 %v5165
      %5452 = vmatprep.subr.bf16.mxu0 %v5162
      %5453 = vmatpush1.bf16.msra.mxu0 %v5161
      %5454 = vmatprep.subr.bf16.mxu0 0
      %5455 = vmatpush2.bf16.msra.mxu0 0
      %5456 = vmatprep.subr.bf16.mxu0 0
      %5457 = vmatpush2.bf16.msra.mxu0 0
      %5458 = vmatprep.subr.bf16.mxu0 0
      %5459 = vmatpush2.bf16.msra.mxu0 0
      %5460 = vmatprep.subr.bf16.mxu0 0
      %5461 = vmatpush2.bf16.msra.mxu0 0
      %5462 = vmatprep.subr.bf16.mxu0 0
      %5463 = vmatpush2.bf16.msra.mxu0 0
      %5464 = vmatprep.subr.bf16.mxu0 %v5202
      %5465 = vmatpush2.bf16.msra.mxu0 %v5201
      %5466 = vmatprep.subr.bf16.mxu0 %v5198
      %5467 = vmatpush2.bf16.msra.mxu0 %v5197
      %5468 = vmatprep.subr.bf16.mxu0 %v5194
      %5469 = vmatpush2.bf16.msra.mxu0 %v5193
      %5470 = vmatprep.mubr.bf16.mxu0 %v5313
      %5471 = vmatmul.mubr.bf16.gmra.mxu0 %v4766
      %v5472 = vpop.f32.mrf.mxu0
      %v5473 = vadd.f32 %v5432, %v5472
      %v5474 = vpop.f32.mrf.mxu0
      %v5475 = vadd.f32 %v5434, %v5474
      %v5476 = vpop.f32.mrf.mxu0
      %v5477 = vpop.f32.mrf.mxu0
      %5478 = vdwg.mxu0
      %5480 = vset.pattern.permute.xlu0 0
      %5481 = vperm.xlu0 %5480, %v3808
      %v5482 = vpop.permute.xlu0 %5481
      %v5484 = vmul.f32 %v5391, %v5482
      %v5485 = vmul.f32 %v5393, %v5482
      %v5486 = vmul.f32 %v5473, %v5482
      %v5487 = vmul.f32 %v5475, %v5482
      %5489 = vset.pattern.permute.xlu0 0
      %5490 = vperm.xlu0 %5489, %v3809
      %v5491 = vpop.permute.xlu0 %5490
      %v5493 = vadd.f32 %v5484, %v5491
      %v5494 = vadd.f32 %v5485, %v5491
      %v5495 = vadd.f32 %v5486, %v5491
      %v5496 = vadd.f32 %v5487, %v5491
      %v5497 = vsel %vm1019, %v5493, 0.0
      %v5498 = vsel %vm1020, %v5494, 0.0
      %v5499 = vsel %vm1021, %v5495, 0.0
      %v5500 = vsel %vm1022, %v5496, 0.0
      %5501 = vst [vmem:[%s332] sm:$0xff] %v5497
      %5502 = vst [vmem:[%s332 + $0x8] sm:$0xff] %v5498
      %5503 = vst [vmem:[%s332 + $0x10] sm:$0xff] %v5499
      %vm5504 = vcmask 818176
      %5505 = vst.msk [vmem:[%s332 + $0x18] sm:$0xff] %vm5504, %v5500
      %p5506 = scmp.lt.s32.totalorder %s20, 1
      %s5507 = scalar_select %p5506, %s20, 1
      %s5508 = smul.addr %s5507, 4
      %s5509 = smul.addr %s5508, 8
      %s5510 = scalar_lea.vmem %s9, %s5509
      // Predicated region
      $region57: #{bab_decoder_forward.1} parent=55 // pred_check
        %p5511 = pneg %p232
      $region58: #{bab_decoder_forward.1} parent=55 // pred_check_branch
        %5513 = sbr.rel (%p5511) target = $region60
      $region59: #{bab_decoder_forward.1} parent=55 // pred_region
        _
      $region60: #{bab_decoder_forward.1} parent=55 // pred_fallthru
        _
    $region56: #{bab_decoder_forward.1} parent=5 // pred_fallthru
      _
    %p5514 = scmp.le.s32.totalorder 2, %s15
    // Predicated region
    $region61: #{bab_decoder_forward.1} parent=5 // pred_check
      %p5515 = pneg %p5514
    $region62: #{bab_decoder_forward.1} parent=5 // pred_check_branch
      %5517 = sbr.rel (%p5515) target = $region64
    $region63: #{bab_decoder_forward.1} parent=5 // pred_region
      %s5518 = ssub.s32 %s15, 2
      // Predicated region
      $region65: #{bab_decoder_forward.1} parent=63 // pred_check
        %p5519 = pneg %p238
      $region66: #{bab_decoder_forward.1} parent=63 // pred_check_branch
        %5521 = sbr.rel (%p5519) target = $region68
      $region67: #{bab_decoder_forward.1} parent=63 // pred_region
        %p5522 = scmp.lt.s32.totalorder %s21, 1
        %s5523 = scalar_select %p5522, %s21, 1
        %s5524 = smul.addr %s5523, 4
        %s5525 = smul.addr %s5524, 8
        %s5526 = scalar_lea.vmem %s9, %s5525
      $region68: #{bab_decoder_forward.1} parent=63 // pred_fallthru
        _
    $region64: #{bab_decoder_forward.1} parent=5 // pred_fallthru
      _
  $region6: #{bab_decoder_forward.1} parent=0 // loop_footer
    %s19 = sadd.s32 1, %s15
  $region7: #{bab_decoder_forward.1} parent=0 // loop_footer_branch
    %14 = sbr.rel target = $region3
  $region8: #{bab_decoder_forward.1} parent=0 // loop_exit
    _

</llo_original>
